<compile_context>
chip_gen: v5e
topology: v5e:2x2
jax: 0.10.0
libtpu: 0.0.40
codegen_flags: <defaults>
</compile_context>

<pallas_src>
import functools

import jax
import jax.numpy as jnp
from jax.experimental import pallas as pl
from jax.experimental.pallas import tpu as pltpu

BN_EPS = 1e-5
C = 64        # fixed by the module definition
PAD = 2       # halo for the dilated (d=2) conv; d=1 convs use the inner ring


# ----------------------------------------------------------------------------
# Fused kernel: one grid step == one batch element, fully resident in VMEM.
# ----------------------------------------------------------------------------
def _mfa_fused_kernel(x_ref, last_ref, w_sa_ref,
                      w1_ref, b1_ref, w2_ref, b2_ref, w3_ref, b3_ref,
                      out_ref,
                      pad_a, pad_b, sa_pad, patches_ref, *, H, W, RH):
    Wp = W + 2 * PAD

    # ---- zero ONLY the halo strips of the ping-pong pad buffers -------------
    # (interiors are always fully overwritten before being read).
    def zero_halo(ref):
        z_row = jnp.zeros((PAD, Wp, C), jnp.float32)
        z_col = jnp.zeros((H, PAD, C), jnp.float32)
        ref[0:PAD, :, :] = z_row
        ref[PAD + H:PAD + H + PAD, :, :] = z_row
        ref[PAD:PAD + H, 0:PAD, :] = z_col
        ref[PAD:PAD + H, PAD + W:PAD + W + PAD, :] = z_col

    zero_halo(pad_a)
    zero_halo(pad_b)
    sa_pad[...] = jnp.zeros_like(sa_pad)                   # tiny (2, H+2, W+2)

    # ---- SpatialAttention(3): mean/max over C -> 3x3 conv -> sigmoid --------
    last = last_ref[0]                                     # [H, W, C] f32
    sa_pad[0, 1:H + 1, 1:W + 1] = jnp.mean(last, axis=-1)
    sa_pad[1, 1:H + 1, 1:W + 1] = jnp.max(last, axis=-1)
    acc = jnp.zeros((H, W), jnp.float32)
    for dy in range(3):                                    # 9 taps, scalar weights from SMEM
        for dx in range(3):
            t = dy * 3 + dx
            acc = acc + sa_pad[0, dy:dy + H, dx:dx + W] * w_sa_ref[t]
            acc = acc + sa_pad[1, dy:dy + H, dx:dx + W] * w_sa_ref[9 + t]
    att = jax.nn.sigmoid(acc)                              # [H, W] f32

    # ---- x into pad_a's interior --------------------------------------------
    x = x_ref[0]                                           # [H, W, C] f32
    pad_a[PAD:PAD + H, PAD:PAD + W, :] = x

    # ---- one 3x3 conv (+ folded-BN bias), strip-mined over output rows ------
    def conv3x3(src_pad, w_ref, b_ref, dilation, emit):
        for r0 in range(0, H, RH):                         # static strip loop
            rows = min(RH, H - r0)
            Ms = rows * W
            for dy in range(3):
                for dx in range(3):
                    t = dy * 3 + dx
                    ry = r0 + PAD + (dy - 1) * dilation
                    cx = PAD + (dx - 1) * dilation
                    tap = src_pad[ry:ry + rows, cx:cx + W, :]   # [rows, W, C] f32
                    patches_ref[0:Ms, t * C:(t + 1) * C] = (
                        tap.reshape(Ms, C).astype(jnp.bfloat16))
            y = jnp.dot(patches_ref[0:Ms, :], w_ref[...],
                        preferred_element_type=jnp.float32)     # [Ms, C] f32
            emit(r0, rows, y + b_ref[...])                      # + folded-BN bias

    # f1 = BN(Conv3x3(x))                         (pad_a -> pad_b)
    def emit_f1(r0, rows, y):
        pad_b[PAD + r0:PAD + r0 + rows, PAD:PAD + W, :] = y.reshape(rows, W, C)
    conv3x3(pad_a, w1_ref, b1_ref, 1, emit_f1)

    # f1 = BN(DilatedConv3x3(f1, d=2)) * att      (pad_b -> pad_a)
    def emit_f2(r0, rows, y):
        f2 = y.reshape(rows, W, C) * att[r0:r0 + rows, :, None]
        pad_a[PAD + r0:PAD + r0 + rows, PAD:PAD + W, :] = f2
    conv3x3(pad_b, w2_ref, b2_ref, 2, emit_f2)

    # out = relu(BN(Conv3x3(f1))) + x             (pad_a -> out_ref)
    def emit_out(r0, rows, y):
        o = jnp.maximum(y.reshape(rows, W, C), 0.0) + x_ref[0, r0:r0 + rows]
        out_ref[0, r0:r0 + rows, :, :] = o
    conv3x3(pad_a, w3_ref, b3_ref, 1, emit_out)


def mfa_forward(x_nchw, last_nchw, p):
    # TODO(synk): the NCHW<->NHWC transposes cost ~4 extra HBM passes around a
    # small kernel; an NHWC-native caller (or allow_input_fusion with adjacent
    # XLA ops) avoids that traffic.  Kept to preserve the PyTorch-facing layout.
    x = jnp.transpose(x_nchw, (0, 2, 3, 1))                # NCHW -> NHWC
    last = jnp.transpose(last_nchw, (0, 2, 3, 1))
    B, H, W, Cc = x.shape
    assert Cc == C, "MFA is defined for 64 channels"
    assert W % 8 == 0, "W must be a multiple of 8 (f32 sublane tile)"

    # Strip size: aim for >= ~512 output pixels per im2col matmul while keeping
    # patches_ref ~0.5 MiB regardless of image size (bounded VMEM; needed for
    # v7x's 64 MiB VMEM and large images on any generation).
    RH = max(1, min(H, -(-512 // W)))

    # VMEM budget derived from the actual tiles (double-buffered in/out blocks
    # + weights + scratch); 32 MiB floor covers the v5e/v6e default scoped
    # limits, cap at 100 MiB (v6e/v5e have 128 MiB physical; v7x only 64 MiB --
    # very large images would additionally need H-tiling of the grid).
    act_block = H * W * C * 4
    w_block = 9 * C * C * 2 + C * 4
    pad_bytes = (H + 2 * PAD) * (W + 2 * PAD) * C * 4
    sa_bytes = 2 * (H + 2) * max(W + 2, 128) * 4
    patch_bytes = RH * W * 9 * C * 2
    need = (3 * 2 * act_block + 3 * 2 * w_block
            + 2 * pad_bytes + sa_bytes + patch_bytes + (2 << 20))
    vmem_limit = int(min(max(need * 5 // 4, 32 * 1024 * 1024), 100 * 1024 * 1024))

    kernel = functools.partial(_mfa_fused_kernel, H=H, W=W, RH=RH)
    act_spec = pl.BlockSpec((1, H, W, C), lambda b: (b, 0, 0, 0))
    w_spec = pl.BlockSpec((9 * C, C), lambda b: (0, 0))
    b_spec = pl.BlockSpec((1, C), lambda b: (0, 0))

    out_nhwc = pl.pallas_call(
        kernel,
        out_shape=jax.ShapeDtypeStruct((B, H, W, C), jnp.float32),
        grid=(B,),
        in_specs=[
            act_spec,                                          # x
            act_spec,                                          # last
            pl.BlockSpec(memory_space=pltpu.MemorySpace.SMEM), # w_sa (flat 18)
            w_spec, b_spec,                                    # fx1
            w_spec, b_spec,                                    # f1_r2
            w_spec, b_spec,                                    # out
        ],
        out_specs=act_spec,
        scratch_shapes=[
            pltpu.VMEM((H + 2 * PAD, W + 2 * PAD, C), jnp.float32),  # pad_a
            pltpu.VMEM((H + 2 * PAD, W + 2 * PAD, C), jnp.float32),  # pad_b
            pltpu.VMEM((2, H + 2, W + 2), jnp.float32),              # SA mean/max pad
            pltpu.VMEM((RH * W, 9 * C), jnp.bfloat16),               # im2col strip
        ],
        compiler_params=pltpu.CompilerParams(
            dimension_semantics=("parallel",),            # both TCs on v7x
            vmem_limit_bytes=vmem_limit),
    )(x, last, p["w_sa"],
      p["w_fx1"], p["b_fx1"],
      p["w_f1r2"], p["b_f1r2"],
      p["w_out"], p["b_out"])
    return jnp.transpose(out_nhwc, (0, 3, 1, 2))               # NHWC -> NCHW


# ----------------------------------------------------------------------------
# Parameters (deterministic, synthetic).  BN (eval) is folded: the scale goes
# into the bf16 conv weights, only the bias stays separate.
# ----------------------------------------------------------------------------
def init_mfa_params(key):
    ks = jax.random.split(key, 10)

    def conv_bn(kw, kg, kb):
        w = 0.05 * jax.random.normal(kw, (3, 3, C, C), jnp.float32)     # HWIO
        gamma = 1.0 + 0.1 * jax.random.normal(kg, (C,), jnp.float32)
        beta = 0.1 * jax.random.normal(kb, (C,), jnp.float32)
        running_mean = jnp.zeros((C,), jnp.float32)   # PyTorch BN defaults (eval)
        running_var = jnp.ones((C,), jnp.float32)
        scale = gamma / jnp.sqrt(running_var + BN_EPS)
        bias = beta - running_mean * scale
        w_im2col = (w.reshape(9 * C, C) * scale[None, :]).astype(jnp.bfloat16)
        return w_im2col, bias.reshape(1, C)

    p = {}
    p["w_fx1"], p["b_fx1"] = conv_bn(ks[0], ks[1], ks[2])
    p["w_f1r2"], p["b_f1r2"] = conv_bn(ks[3], ks[4], ks[5])
    p["w_out"], p["b_out"] = conv_bn(ks[6], ks[7], ks[8])
    # SpatialAttention 3x3 conv weights, flat: [mean taps 0..8, max taps 9..17]
    p["w_sa"] = (0.2 * jax.random.normal(ks[9], (2, 3, 3), jnp.float32)).reshape(18)
    return p


# ----------------------------------------------------------------------------
# Pure-JAX reference (same bf16-operand / f32-accumulation precision contract)
# ----------------------------------------------------------------------------
def _conv_ref(x, w_im2col_bf16, bias, dilation, relu):
    w = w_im2col_bf16.astype(jnp.float32).reshape(3, 3, C, C)        # HWIO
    xb = x.astype(jnp.bfloat16).astype(jnp.float32)                  # match kernel's bf16 patches
    y = jax.lax.conv_general_dilated(
        xb, w, window_strides=(1, 1),
        padding=((dilation, dilation), (dilation, dilation)),
        rhs_dilation=(dilation, dilation),
        dimension_numbers=("NHWC", "HWIO", "NHWC"),
        precision=jax.lax.Precision.HIGHEST)
    y = y + bias.reshape(1, 1, 1, -1)
    return jnp.maximum(y, 0.0) if relu else y


def _mfa_ref(x_nchw, last_nchw, p):
    x = jnp.transpose(x_nchw, (0, 2, 3, 1))
    last = jnp.transpose(last_nchw, (0, 2, 3, 1))
    avg = jnp.mean(last, axis=-1, keepdims=True)
    mx = jnp.max(last, axis=-1, keepdims=True)
    am = jnp.concatenate([avg, mx], axis=-1)
    w_sa = jnp.transpose(p["w_sa"].reshape(2, 3, 3), (1, 2, 0)).reshape(3, 3, 2, 1)
    att = jax.nn.sigmoid(jax.lax.conv_general_dilated(
        am, w_sa, (1, 1), ((1, 1), (1, 1)),
        dimension_numbers=("NHWC", "HWIO", "NHWC"),
        precision=jax.lax.Precision.HIGHEST))
    f1 = _conv_ref(x, p["w_fx1"], p["b_fx1"], 1, False)
    f1 = _conv_ref(f1, p["w_f1r2"], p["b_f1r2"], 2, False) * att
    out = _conv_ref(f1, p["w_out"], p["b_out"], 1, True) + x
    return jnp.transpose(out, (0, 3, 1, 2))


if __name__ == "__main__":
    key = jax.random.PRNGKey(0)
    k_x, k_last, k_p = jax.random.split(key, 3)

    B, H, W = 2, 8, 8
    x = jax.random.normal(k_x, (B, C, H, W), jnp.float32)
    last = jax.random.normal(k_last, (B, C, H, W), jnp.float32)
    params = init_mfa_params(k_p)

    out = jax.block_until_ready(mfa_forward(x, last, params))

    ref = _mfa_ref(x, last, params)
    assert out.shape == (B, C, H, W)
    assert bool(jnp.all(jnp.isfinite(out)))
    # bf16 (BN-folded) weights + bf16 activations, f32 accumulation; reference
    # uses the same rounding, so only summation order differs.
    assert bool(jnp.allclose(out, ref, atol=2e-3, rtol=2e-3)), "mismatch vs JAX reference"
    print("KERNEL_OK")
</pallas_src>

<mosaic_0001>
module attributes {stable_mosaic.version = 11 : i64} {
  func.func @_mfa_fused_kernel(%arg0: i32, %arg1: memref<1x8x8x64xf32, #tpu.memory_space<vmem>>, %arg2: memref<1x8x8x64xf32, #tpu.memory_space<vmem>>, %arg3: memref<18xf32, #tpu.memory_space<smem>>, %arg4: memref<576x64xbf16, #tpu.memory_space<vmem>>, %arg5: memref<1x64xf32, #tpu.memory_space<vmem>>, %arg6: memref<576x64xbf16, #tpu.memory_space<vmem>>, %arg7: memref<1x64xf32, #tpu.memory_space<vmem>>, %arg8: memref<576x64xbf16, #tpu.memory_space<vmem>>, %arg9: memref<1x64xf32, #tpu.memory_space<vmem>>, %arg10: memref<1x8x8x64xf32, #tpu.memory_space<vmem>>, %arg11: memref<12x12x64xf32, #tpu.memory_space<vmem>>, %arg12: memref<12x12x64xf32, #tpu.memory_space<vmem>>, %arg13: memref<2x10x10xf32, #tpu.memory_space<vmem>>, %arg14: memref<64x576xbf16, #tpu.memory_space<vmem>>) attributes {dimension_semantics = [#tpu.dimension_semantics<parallel>], iteration_bounds = array<i64: 2>, scalar_prefetch = 0 : i64, scratch_operands = 4 : i64, tpu.core_type = #tpu.core_type<tc>, window_params = [{transform_indices = @transform_0, window_bounds = array<i64: 1, 8, 8, 64>}, {transform_indices = @transform_1, window_bounds = array<i64: 1, 8, 8, 64>}, {transform_indices = @transform_2, window_bounds = array<i64: 18>}, {pipeline_mode = #tpu.pipeline_mode<synchronous>, transform_indices = @transform_3, window_bounds = array<i64: 576, 64>}, {pipeline_mode = #tpu.pipeline_mode<synchronous>, transform_indices = @transform_4, window_bounds = array<i64: 1, 64>}, {pipeline_mode = #tpu.pipeline_mode<synchronous>, transform_indices = @transform_5, window_bounds = array<i64: 576, 64>}, {pipeline_mode = #tpu.pipeline_mode<synchronous>, transform_indices = @transform_6, window_bounds = array<i64: 1, 64>}, {pipeline_mode = #tpu.pipeline_mode<synchronous>, transform_indices = @transform_7, window_bounds = array<i64: 576, 64>}, {pipeline_mode = #tpu.pipeline_mode<synchronous>, transform_indices = @transform_8, window_bounds = array<i64: 1, 64>}, {transform_indices = @transform_9, window_bounds = array<i64: 1, 8, 8, 64>}]} {
    %cst = arith.constant 0.000000e+00 : f32
    %0 = vector.broadcast %cst : f32 to vector<2x12x64xf32>
    %cst_0 = arith.constant 0.000000e+00 : f32
    %1 = vector.broadcast %cst_0 : f32 to vector<8x2x64xf32>
    %c0 = arith.constant 0 : index
    %c0_1 = arith.constant 0 : index
    %c0_2 = arith.constant 0 : index
    %2 = vector.load %arg11[%c0, %c0_1, %c0_2] : memref<12x12x64xf32, #tpu.memory_space<vmem>>, vector<2x12x64xf32>
    tpu.vector_store %arg11[%c0, %c0_1, %c0_2], %0 {strides = array<i32>} : memref<12x12x64xf32, #tpu.memory_space<vmem>>, vector<2x12x64xf32>,
    %c10 = arith.constant 10 : index
    %c0_3 = arith.constant 0 : index
    %c0_4 = arith.constant 0 : index
    %3 = vector.load %arg11[%c10, %c0_3, %c0_4] : memref<12x12x64xf32, #tpu.memory_space<vmem>>, vector<2x12x64xf32>
    tpu.vector_store %arg11[%c10, %c0_3, %c0_4], %0 {strides = array<i32>} : memref<12x12x64xf32, #tpu.memory_space<vmem>>, vector<2x12x64xf32>,
    %c2 = arith.constant 2 : index
    %c0_5 = arith.constant 0 : index
    %c0_6 = arith.constant 0 : index
    %4 = vector.load %arg11[%c2, %c0_5, %c0_6] : memref<12x12x64xf32, #tpu.memory_space<vmem>>, vector<8x2x64xf32>
    tpu.vector_store %arg11[%c2, %c0_5, %c0_6], %1 {strides = array<i32>} : memref<12x12x64xf32, #tpu.memory_space<vmem>>, vector<8x2x64xf32>,
    %c2_7 = arith.constant 2 : index
    %c10_8 = arith.constant 10 : index
    %c0_9 = arith.constant 0 : index
    %5 = vector.load %arg11[%c2_7, %c10_8, %c0_9] : memref<12x12x64xf32, #tpu.memory_space<vmem>>, vector<8x2x64xf32>
    tpu.vector_store %arg11[%c2_7, %c10_8, %c0_9], %1 {strides = array<i32>} : memref<12x12x64xf32, #tpu.memory_space<vmem>>, vector<8x2x64xf32>,
    %cst_10 = arith.constant 0.000000e+00 : f32
    %6 = vector.broadcast %cst_10 : f32 to vector<2x12x64xf32>
    %cst_11 = arith.constant 0.000000e+00 : f32
    %7 = vector.broadcast %cst_11 : f32 to vector<8x2x64xf32>
    %c0_12 = arith.constant 0 : index
    %c0_13 = arith.constant 0 : index
    %c0_14 = arith.constant 0 : index
    %8 = vector.load %arg12[%c0_12, %c0_13, %c0_14] : memref<12x12x64xf32, #tpu.memory_space<vmem>>, vector<2x12x64xf32>
    tpu.vector_store %arg12[%c0_12, %c0_13, %c0_14], %6 {strides = array<i32>} : memref<12x12x64xf32, #tpu.memory_space<vmem>>, vector<2x12x64xf32>,
    %c10_15 = arith.constant 10 : index
    %c0_16 = arith.constant 0 : index
    %c0_17 = arith.constant 0 : index
    %9 = vector.load %arg12[%c10_15, %c0_16, %c0_17] : memref<12x12x64xf32, #tpu.memory_space<vmem>>, vector<2x12x64xf32>
    tpu.vector_store %arg12[%c10_15, %c0_16, %c0_17], %6 {strides = array<i32>} : memref<12x12x64xf32, #tpu.memory_space<vmem>>, vector<2x12x64xf32>,
    %c2_18 = arith.constant 2 : index
    %c0_19 = arith.constant 0 : index
    %c0_20 = arith.constant 0 : index
    %10 = vector.load %arg12[%c2_18, %c0_19, %c0_20] : memref<12x12x64xf32, #tpu.memory_space<vmem>>, vector<8x2x64xf32>
    tpu.vector_store %arg12[%c2_18, %c0_19, %c0_20], %7 {strides = array<i32>} : memref<12x12x64xf32, #tpu.memory_space<vmem>>, vector<8x2x64xf32>,
    %c2_21 = arith.constant 2 : index
    %c10_22 = arith.constant 10 : index
    %c0_23 = arith.constant 0 : index
    %11 = vector.load %arg12[%c2_21, %c10_22, %c0_23] : memref<12x12x64xf32, #tpu.memory_space<vmem>>, vector<8x2x64xf32>
    tpu.vector_store %arg12[%c2_21, %c10_22, %c0_23], %7 {strides = array<i32>} : memref<12x12x64xf32, #tpu.memory_space<vmem>>, vector<8x2x64xf32>,
    %cst_24 = arith.constant 0.000000e+00 : f32
    %12 = vector.broadcast %cst_24 : f32 to vector<2x10x10xf32>
    %c0_25 = arith.constant 0 : index
    %c0_26 = arith.constant 0 : index
    %c0_27 = arith.constant 0 : index
    %13 = vector.load %arg13[%c0_25, %c0_26, %c0_27] : memref<2x10x10xf32, #tpu.memory_space<vmem>>, vector<2x10x10xf32>
    tpu.vector_store %arg13[%c0_25, %c0_26, %c0_27], %12 {strides = array<i32>} : memref<2x10x10xf32, #tpu.memory_space<vmem>>, vector<2x10x10xf32>,
    %c0_28 = arith.constant 0 : index
    %c0_29 = arith.constant 0 : index
    %c0_30 = arith.constant 0 : index
    %c0_31 = arith.constant 0 : index
    %14 = vector.load %arg2[%c0_28, %c0_29, %c0_30, %c0_31] : memref<1x8x8x64xf32, #tpu.memory_space<vmem>>, vector<1x8x8x64xf32>
    %15 = vector.shape_cast %14 : vector<1x8x8x64xf32> to vector<8x8x64xf32>
    %cst_32 = arith.constant dense<0.000000e+00> : vector<8x8xf32>
    %16 = vector.multi_reduction <add>, %15, %cst_32 [2] : vector<8x8x64xf32> to vector<8x8xf32>
    %cst_33 = arith.constant 6.400000e+01 : f32
    %17 = vector.broadcast %cst_33 : f32 to vector<8x8xf32>
    %18 = arith.divf %16, %17 : vector<8x8xf32>
    %c0_34 = arith.constant 0 : index
    %c1 = arith.constant 1 : index
    %c1_35 = arith.constant 1 : index
    %19 = vector.load %arg13[%c0_34, %c1, %c1_35] : memref<2x10x10xf32, #tpu.memory_space<vmem>>, vector<1x8x8xf32>
    %20 = vector.shape_cast %19 : vector<1x8x8xf32> to vector<8x8xf32>
    %21 = vector.shape_cast %18 : vector<8x8xf32> to vector<1x8x8xf32>
    tpu.vector_store %arg13[%c0_34, %c1, %c1_35], %21 {strides = array<i32>} : memref<2x10x10xf32, #tpu.memory_space<vmem>>, vector<1x8x8xf32>,
    %cst_36 = arith.constant dense<0xFF800000> : vector<8x8xf32>
    %22 = vector.multi_reduction <maximumf>, %15, %cst_36 [2] : vector<8x8x64xf32> to vector<8x8xf32>
    %c1_37 = arith.constant 1 : index
    %c1_38 = arith.constant 1 : index
    %c1_39 = arith.constant 1 : index
    %23 = vector.load %arg13[%c1_37, %c1_38, %c1_39] : memref<2x10x10xf32, #tpu.memory_space<vmem>>, vector<1x8x8xf32>
    %24 = vector.shape_cast %23 : vector<1x8x8xf32> to vector<8x8xf32>
    %25 = vector.shape_cast %22 : vector<8x8xf32> to vector<1x8x8xf32>
    tpu.vector_store %arg13[%c1_37, %c1_38, %c1_39], %25 {strides = array<i32>} : memref<2x10x10xf32, #tpu.memory_space<vmem>>, vector<1x8x8xf32>,
    %cst_40 = arith.constant 0.000000e+00 : f32
    %26 = vector.broadcast %cst_40 : f32 to vector<8x8xf32>
    %c0_41 = arith.constant 0 : index
    %c0_42 = arith.constant 0 : index
    %c0_43 = arith.constant 0 : index
    %27 = vector.load %arg13[%c0_41, %c0_42, %c0_43] : memref<2x10x10xf32, #tpu.memory_space<vmem>>, vector<1x8x8xf32>
    %28 = vector.shape_cast %27 : vector<1x8x8xf32> to vector<8x8xf32>
    %c0_44 = arith.constant 0 : index
    %29 = memref.load %arg3[%c0_44] : memref<18xf32, #tpu.memory_space<smem>>
    %30 = vector.broadcast %29 : f32 to vector<8x8xf32>
    %31 = arith.mulf %28, %30 : vector<8x8xf32>
    %32 = arith.addf %26, %31 : vector<8x8xf32>
    %c1_45 = arith.constant 1 : index
    %c0_46 = arith.constant 0 : index
    %c0_47 = arith.constant 0 : index
    %33 = vector.load %arg13[%c1_45, %c0_46, %c0_47] : memref<2x10x10xf32, #tpu.memory_space<vmem>>, vector<1x8x8xf32>
    %34 = vector.shape_cast %33 : vector<1x8x8xf32> to vector<8x8xf32>
    %c9 = arith.constant 9 : index
    %35 = memref.load %arg3[%c9] : memref<18xf32, #tpu.memory_space<smem>>
    %36 = vector.broadcast %35 : f32 to vector<8x8xf32>
    %37 = arith.mulf %34, %36 : vector<8x8xf32>
    %38 = arith.addf %32, %37 : vector<8x8xf32>
    %c0_48 = arith.constant 0 : index
    %c0_49 = arith.constant 0 : index
    %c1_50 = arith.constant 1 : index
    %39 = vector.load %arg13[%c0_48, %c0_49, %c1_50] : memref<2x10x10xf32, #tpu.memory_space<vmem>>, vector<1x8x8xf32>
    %40 = vector.shape_cast %39 : vector<1x8x8xf32> to vector<8x8xf32>
    %c1_51 = arith.constant 1 : index
    %41 = memref.load %arg3[%c1_51] : memref<18xf32, #tpu.memory_space<smem>>
    %42 = vector.broadcast %41 : f32 to vector<8x8xf32>
    %43 = arith.mulf %40, %42 : vector<8x8xf32>
    %44 = arith.addf %38, %43 : vector<8x8xf32>
    %c1_52 = arith.constant 1 : index
    %c0_53 = arith.constant 0 : index
    %c1_54 = arith.constant 1 : index
    %45 = vector.load %arg13[%c1_52, %c0_53, %c1_54] : memref<2x10x10xf32, #tpu.memory_space<vmem>>, vector<1x8x8xf32>
    %46 = vector.shape_cast %45 : vector<1x8x8xf32> to vector<8x8xf32>
    %c10_55 = arith.constant 10 : index
    %47 = memref.load %arg3[%c10_55] : memref<18xf32, #tpu.memory_space<smem>>
    %48 = vector.broadcast %47 : f32 to vector<8x8xf32>
    %49 = arith.mulf %46, %48 : vector<8x8xf32>
    %50 = arith.addf %44, %49 : vector<8x8xf32>
    %c0_56 = arith.constant 0 : index
    %c0_57 = arith.constant 0 : index
    %c2_58 = arith.constant 2 : index
    %51 = vector.load %arg13[%c0_56, %c0_57, %c2_58] : memref<2x10x10xf32, #tpu.memory_space<vmem>>, vector<1x8x8xf32>
    %52 = vector.shape_cast %51 : vector<1x8x8xf32> to vector<8x8xf32>
    %c2_59 = arith.constant 2 : index
    %53 = memref.load %arg3[%c2_59] : memref<18xf32, #tpu.memory_space<smem>>
    %54 = vector.broadcast %53 : f32 to vector<8x8xf32>
    %55 = arith.mulf %52, %54 : vector<8x8xf32>
    %56 = arith.addf %50, %55 : vector<8x8xf32>
    %c1_60 = arith.constant 1 : index
    %c0_61 = arith.constant 0 : index
    %c2_62 = arith.constant 2 : index
    %57 = vector.load %arg13[%c1_60, %c0_61, %c2_62] : memref<2x10x10xf32, #tpu.memory_space<vmem>>, vector<1x8x8xf32>
    %58 = vector.shape_cast %57 : vector<1x8x8xf32> to vector<8x8xf32>
    %c11 = arith.constant 11 : index
    %59 = memref.load %arg3[%c11] : memref<18xf32, #tpu.memory_space<smem>>
    %60 = vector.broadcast %59 : f32 to vector<8x8xf32>
    %61 = arith.mulf %58, %60 : vector<8x8xf32>
    %62 = arith.addf %56, %61 : vector<8x8xf32>
    %c0_63 = arith.constant 0 : index
    %c1_64 = arith.constant 1 : index
    %c0_65 = arith.constant 0 : index
    %63 = vector.load %arg13[%c0_63, %c1_64, %c0_65] : memref<2x10x10xf32, #tpu.memory_space<vmem>>, vector<1x8x8xf32>
    %64 = vector.shape_cast %63 : vector<1x8x8xf32> to vector<8x8xf32>
    %c3 = arith.constant 3 : index
    %65 = memref.load %arg3[%c3] : memref<18xf32, #tpu.memory_space<smem>>
    %66 = vector.broadcast %65 : f32 to vector<8x8xf32>
    %67 = arith.mulf %64, %66 : vector<8x8xf32>
    %68 = arith.addf %62, %67 : vector<8x8xf32>
    %c1_66 = arith.constant 1 : index
    %c1_67 = arith.constant 1 : index
    %c0_68 = arith.constant 0 : index
    %69 = vector.load %arg13[%c1_66, %c1_67, %c0_68] : memref<2x10x10xf32, #tpu.memory_space<vmem>>, vector<1x8x8xf32>
    %70 = vector.shape_cast %69 : vector<1x8x8xf32> to vector<8x8xf32>
    %c12 = arith.constant 12 : index
    %71 = memref.load %arg3[%c12] : memref<18xf32, #tpu.memory_space<smem>>
    %72 = vector.broadcast %71 : f32 to vector<8x8xf32>
    %73 = arith.mulf %70, %72 : vector<8x8xf32>
    %74 = arith.addf %68, %73 : vector<8x8xf32>
    %c0_69 = arith.constant 0 : index
    %c1_70 = arith.constant 1 : index
    %c1_71 = arith.constant 1 : index
    %75 = vector.load %arg13[%c0_69, %c1_70, %c1_71] : memref<2x10x10xf32, #tpu.memory_space<vmem>>, vector<1x8x8xf32>
    %76 = vector.shape_cast %75 : vector<1x8x8xf32> to vector<8x8xf32>
    %c4 = arith.constant 4 : index
    %77 = memref.load %arg3[%c4] : memref<18xf32, #tpu.memory_space<smem>>
    %78 = vector.broadcast %77 : f32 to vector<8x8xf32>
    %79 = arith.mulf %76, %78 : vector<8x8xf32>
    %80 = arith.addf %74, %79 : vector<8x8xf32>
    %c1_72 = arith.constant 1 : index
    %c1_73 = arith.constant 1 : index
    %c1_74 = arith.constant 1 : index
    %81 = vector.load %arg13[%c1_72, %c1_73, %c1_74] : memref<2x10x10xf32, #tpu.memory_space<vmem>>, vector<1x8x8xf32>
    %82 = vector.shape_cast %81 : vector<1x8x8xf32> to vector<8x8xf32>
    %c13 = arith.constant 13 : index
    %83 = memref.load %arg3[%c13] : memref<18xf32, #tpu.memory_space<smem>>
    %84 = vector.broadcast %83 : f32 to vector<8x8xf32>
    %85 = arith.mulf %82, %84 : vector<8x8xf32>
    %86 = arith.addf %80, %85 : vector<8x8xf32>
    %c0_75 = arith.constant 0 : index
    %c1_76 = arith.constant 1 : index
    %c2_77 = arith.constant 2 : index
    %87 = vector.load %arg13[%c0_75, %c1_76, %c2_77] : memref<2x10x10xf32, #tpu.memory_space<vmem>>, vector<1x8x8xf32>
    %88 = vector.shape_cast %87 : vector<1x8x8xf32> to vector<8x8xf32>
    %c5 = arith.constant 5 : index
    %89 = memref.load %arg3[%c5] : memref<18xf32, #tpu.memory_space<smem>>
    %90 = vector.broadcast %89 : f32 to vector<8x8xf32>
    %91 = arith.mulf %88, %90 : vector<8x8xf32>
    %92 = arith.addf %86, %91 : vector<8x8xf32>
    %c1_78 = arith.constant 1 : index
    %c1_79 = arith.constant 1 : index
    %c2_80 = arith.constant 2 : index
    %93 = vector.load %arg13[%c1_78, %c1_79, %c2_80] : memref<2x10x10xf32, #tpu.memory_space<vmem>>, vector<1x8x8xf32>
    %94 = vector.shape_cast %93 : vector<1x8x8xf32> to vector<8x8xf32>
    %c14 = arith.constant 14 : index
    %95 = memref.load %arg3[%c14] : memref<18xf32, #tpu.memory_space<smem>>
    %96 = vector.broadcast %95 : f32 to vector<8x8xf32>
    %97 = arith.mulf %94, %96 : vector<8x8xf32>
    %98 = arith.addf %92, %97 : vector<8x8xf32>
    %c0_81 = arith.constant 0 : index
    %c2_82 = arith.constant 2 : index
    %c0_83 = arith.constant 0 : index
    %99 = vector.load %arg13[%c0_81, %c2_82, %c0_83] : memref<2x10x10xf32, #tpu.memory_space<vmem>>, vector<1x8x8xf32>
    %100 = vector.shape_cast %99 : vector<1x8x8xf32> to vector<8x8xf32>
    %c6 = arith.constant 6 : index
    %101 = memref.load %arg3[%c6] : memref<18xf32, #tpu.memory_space<smem>>
    %102 = vector.broadcast %101 : f32 to vector<8x8xf32>
    %103 = arith.mulf %100, %102 : vector<8x8xf32>
    %104 = arith.addf %98, %103 : vector<8x8xf32>
    %c1_84 = arith.constant 1 : index
    %c2_85 = arith.constant 2 : index
    %c0_86 = arith.constant 0 : index
    %105 = vector.load %arg13[%c1_84, %c2_85, %c0_86] : memref<2x10x10xf32, #tpu.memory_space<vmem>>, vector<1x8x8xf32>
    %106 = vector.shape_cast %105 : vector<1x8x8xf32> to vector<8x8xf32>
    %c15 = arith.constant 15 : index
    %107 = memref.load %arg3[%c15] : memref<18xf32, #tpu.memory_space<smem>>
    %108 = vector.broadcast %107 : f32 to vector<8x8xf32>
    %109 = arith.mulf %106, %108 : vector<8x8xf32>
    %110 = arith.addf %104, %109 : vector<8x8xf32>
    %c0_87 = arith.constant 0 : index
    %c2_88 = arith.constant 2 : index
    %c1_89 = arith.constant 1 : index
    %111 = vector.load %arg13[%c0_87, %c2_88, %c1_89] : memref<2x10x10xf32, #tpu.memory_space<vmem>>, vector<1x8x8xf32>
    %112 = vector.shape_cast %111 : vector<1x8x8xf32> to vector<8x8xf32>
    %c7 = arith.constant 7 : index
    %113 = memref.load %arg3[%c7] : memref<18xf32, #tpu.memory_space<smem>>
    %114 = vector.broadcast %113 : f32 to vector<8x8xf32>
    %115 = arith.mulf %112, %114 : vector<8x8xf32>
    %116 = arith.addf %110, %115 : vector<8x8xf32>
    %c1_90 = arith.constant 1 : index
    %c2_91 = arith.constant 2 : index
    %c1_92 = arith.constant 1 : index
    %117 = vector.load %arg13[%c1_90, %c2_91, %c1_92] : memref<2x10x10xf32, #tpu.memory_space<vmem>>, vector<1x8x8xf32>
    %118 = vector.shape_cast %117 : vector<1x8x8xf32> to vector<8x8xf32>
    %c16 = arith.constant 16 : index
    %119 = memref.load %arg3[%c16] : memref<18xf32, #tpu.memory_space<smem>>
    %120 = vector.broadcast %119 : f32 to vector<8x8xf32>
    %121 = arith.mulf %118, %120 : vector<8x8xf32>
    %122 = arith.addf %116, %121 : vector<8x8xf32>
    %c0_93 = arith.constant 0 : index
    %c2_94 = arith.constant 2 : index
    %c2_95 = arith.constant 2 : index
    %123 = vector.load %arg13[%c0_93, %c2_94, %c2_95] : memref<2x10x10xf32, #tpu.memory_space<vmem>>, vector<1x8x8xf32>
    %124 = vector.shape_cast %123 : vector<1x8x8xf32> to vector<8x8xf32>
    %c8 = arith.constant 8 : index
    %125 = memref.load %arg3[%c8] : memref<18xf32, #tpu.memory_space<smem>>
    %126 = vector.broadcast %125 : f32 to vector<8x8xf32>
    %127 = arith.mulf %124, %126 : vector<8x8xf32>
    %128 = arith.addf %122, %127 : vector<8x8xf32>
    %c1_96 = arith.constant 1 : index
    %c2_97 = arith.constant 2 : index
    %c2_98 = arith.constant 2 : index
    %129 = vector.load %arg13[%c1_96, %c2_97, %c2_98] : memref<2x10x10xf32, #tpu.memory_space<vmem>>, vector<1x8x8xf32>
    %130 = vector.shape_cast %129 : vector<1x8x8xf32> to vector<8x8xf32>
    %c17 = arith.constant 17 : index
    %131 = memref.load %arg3[%c17] : memref<18xf32, #tpu.memory_space<smem>>
    %132 = vector.broadcast %131 : f32 to vector<8x8xf32>
    %133 = arith.mulf %130, %132 : vector<8x8xf32>
    %134 = arith.addf %128, %133 : vector<8x8xf32>
    %135 = arith.negf %134 : vector<8x8xf32>
    %136 = math.exp %135 : vector<8x8xf32>
    %cst_99 = arith.constant 1.000000e+00 : f32
    %137 = vector.broadcast %cst_99 : f32 to vector<8x8xf32>
    %138 = arith.addf %137, %136 : vector<8x8xf32>
    %139 = arith.divf %137, %138 : vector<8x8xf32>
    %c0_100 = arith.constant 0 : index
    %c0_101 = arith.constant 0 : index
    %c0_102 = arith.constant 0 : index
    %c0_103 = arith.constant 0 : index
    %140 = vector.load %arg1[%c0_100, %c0_101, %c0_102, %c0_103] : memref<1x8x8x64xf32, #tpu.memory_space<vmem>>, vector<1x8x8x64xf32>
    %141 = vector.shape_cast %140 : vector<1x8x8x64xf32> to vector<8x8x64xf32>
    %c2_104 = arith.constant 2 : index
    %c2_105 = arith.constant 2 : index
    %c0_106 = arith.constant 0 : index
    %142 = vector.load %arg11[%c2_104, %c2_105, %c0_106] : memref<12x12x64xf32, #tpu.memory_space<vmem>>, vector<8x8x64xf32>
    tpu.vector_store %arg11[%c2_104, %c2_105, %c0_106], %141 {strides = array<i32>} : memref<12x12x64xf32, #tpu.memory_space<vmem>>, vector<8x8x64xf32>,
    %c1_107 = arith.constant 1 : index
    %c1_108 = arith.constant 1 : index
    %c0_109 = arith.constant 0 : index
    %143 = vector.load %arg11[%c1_107, %c1_108, %c0_109] : memref<12x12x64xf32, #tpu.memory_space<vmem>>, vector<8x8x64xf32>
    %144 = vector.shape_cast %143 : vector<8x8x64xf32> to vector<64x64xf32>
    %145 = arith.truncf %144 : vector<64x64xf32> to vector<64x64xbf16>
    %c0_110 = arith.constant 0 : index
    %c0_111 = arith.constant 0 : index
    %146 = vector.load %arg14[%c0_110, %c0_111] : memref<64x576xbf16, #tpu.memory_space<vmem>>, vector<64x64xbf16>
    tpu.vector_store %arg14[%c0_110, %c0_111], %145 {strides = array<i32>} : memref<64x576xbf16, #tpu.memory_space<vmem>>, vector<64x64xbf16>,
    %c1_112 = arith.constant 1 : index
    %c2_113 = arith.constant 2 : index
    %c0_114 = arith.constant 0 : index
    %147 = vector.load %arg11[%c1_112, %c2_113, %c0_114] : memref<12x12x64xf32, #tpu.memory_space<vmem>>, vector<8x8x64xf32>
    %148 = vector.shape_cast %147 : vector<8x8x64xf32> to vector<64x64xf32>
    %149 = arith.truncf %148 : vector<64x64xf32> to vector<64x64xbf16>
    %c0_115 = arith.constant 0 : index
    %c64 = arith.constant 64 : index
    %150 = vector.load %arg14[%c0_115, %c64] : memref<64x576xbf16, #tpu.memory_space<vmem>>, vector<64x64xbf16>
    tpu.vector_store %arg14[%c0_115, %c64], %149 {strides = array<i32>} : memref<64x576xbf16, #tpu.memory_space<vmem>>, vector<64x64xbf16>,
    %c1_116 = arith.constant 1 : index
    %c3_117 = arith.constant 3 : index
    %c0_118 = arith.constant 0 : index
    %151 = vector.load %arg11[%c1_116, %c3_117, %c0_118] : memref<12x12x64xf32, #tpu.memory_space<vmem>>, vector<8x8x64xf32>
    %152 = vector.shape_cast %151 : vector<8x8x64xf32> to vector<64x64xf32>
    %153 = arith.truncf %152 : vector<64x64xf32> to vector<64x64xbf16>
    %c0_119 = arith.constant 0 : index
    %c128 = arith.constant 128 : index
    %154 = vector.load %arg14[%c0_119, %c128] : memref<64x576xbf16, #tpu.memory_space<vmem>>, vector<64x64xbf16>
    tpu.vector_store %arg14[%c0_119, %c128], %153 {strides = array<i32>} : memref<64x576xbf16, #tpu.memory_space<vmem>>, vector<64x64xbf16>,
    %c2_120 = arith.constant 2 : index
    %c1_121 = arith.constant 1 : index
    %c0_122 = arith.constant 0 : index
    %155 = vector.load %arg11[%c2_120, %c1_121, %c0_122] : memref<12x12x64xf32, #tpu.memory_space<vmem>>, vector<8x8x64xf32>
    %156 = vector.shape_cast %155 : vector<8x8x64xf32> to vector<64x64xf32>
    %157 = arith.truncf %156 : vector<64x64xf32> to vector<64x64xbf16>
    %c0_123 = arith.constant 0 : index
    %c192 = arith.constant 192 : index
    %158 = vector.load %arg14[%c0_123, %c192] : memref<64x576xbf16, #tpu.memory_space<vmem>>, vector<64x64xbf16>
    tpu.vector_store %arg14[%c0_123, %c192], %157 {strides = array<i32>} : memref<64x576xbf16, #tpu.memory_space<vmem>>, vector<64x64xbf16>,
    %c2_124 = arith.constant 2 : index
    %c2_125 = arith.constant 2 : index
    %c0_126 = arith.constant 0 : index
    %159 = vector.load %arg11[%c2_124, %c2_125, %c0_126] : memref<12x12x64xf32, #tpu.memory_space<vmem>>, vector<8x8x64xf32>
    %160 = vector.shape_cast %159 : vector<8x8x64xf32> to vector<64x64xf32>
    %161 = arith.truncf %160 : vector<64x64xf32> to vector<64x64xbf16>
    %c0_127 = arith.constant 0 : index
    %c256 = arith.constant 256 : index
    %162 = vector.load %arg14[%c0_127, %c256] : memref<64x576xbf16, #tpu.memory_space<vmem>>, vector<64x64xbf16>
    tpu.vector_store %arg14[%c0_127, %c256], %161 {strides = array<i32>} : memref<64x576xbf16, #tpu.memory_space<vmem>>, vector<64x64xbf16>,
    %c2_128 = arith.constant 2 : index
    %c3_129 = arith.constant 3 : index
    %c0_130 = arith.constant 0 : index
    %163 = vector.load %arg11[%c2_128, %c3_129, %c0_130] : memref<12x12x64xf32, #tpu.memory_space<vmem>>, vector<8x8x64xf32>
    %164 = vector.shape_cast %163 : vector<8x8x64xf32> to vector<64x64xf32>
    %165 = arith.truncf %164 : vector<64x64xf32> to vector<64x64xbf16>
    %c0_131 = arith.constant 0 : index
    %c320 = arith.constant 320 : index
    %166 = vector.load %arg14[%c0_131, %c320] : memref<64x576xbf16, #tpu.memory_space<vmem>>, vector<64x64xbf16>
    tpu.vector_store %arg14[%c0_131, %c320], %165 {strides = array<i32>} : memref<64x576xbf16, #tpu.memory_space<vmem>>, vector<64x64xbf16>,
    %c3_132 = arith.constant 3 : index
    %c1_133 = arith.constant 1 : index
    %c0_134 = arith.constant 0 : index
    %167 = vector.load %arg11[%c3_132, %c1_133, %c0_134] : memref<12x12x64xf32, #tpu.memory_space<vmem>>, vector<8x8x64xf32>
    %168 = vector.shape_cast %167 : vector<8x8x64xf32> to vector<64x64xf32>
    %169 = arith.truncf %168 : vector<64x64xf32> to vector<64x64xbf16>
    %c0_135 = arith.constant 0 : index
    %c384 = arith.constant 384 : index
    %170 = vector.load %arg14[%c0_135, %c384] : memref<64x576xbf16, #tpu.memory_space<vmem>>, vector<64x64xbf16>
    tpu.vector_store %arg14[%c0_135, %c384], %169 {strides = array<i32>} : memref<64x576xbf16, #tpu.memory_space<vmem>>, vector<64x64xbf16>,
    %c3_136 = arith.constant 3 : index
    %c2_137 = arith.constant 2 : index
    %c0_138 = arith.constant 0 : index
    %171 = vector.load %arg11[%c3_136, %c2_137, %c0_138] : memref<12x12x64xf32, #tpu.memory_space<vmem>>, vector<8x8x64xf32>
    %172 = vector.shape_cast %171 : vector<8x8x64xf32> to vector<64x64xf32>
    %173 = arith.truncf %172 : vector<64x64xf32> to vector<64x64xbf16>
    %c0_139 = arith.constant 0 : index
    %c448 = arith.constant 448 : index
    %174 = vector.load %arg14[%c0_139, %c448] : memref<64x576xbf16, #tpu.memory_space<vmem>>, vector<64x64xbf16>
    tpu.vector_store %arg14[%c0_139, %c448], %173 {strides = array<i32>} : memref<64x576xbf16, #tpu.memory_space<vmem>>, vector<64x64xbf16>,
    %c3_140 = arith.constant 3 : index
    %c3_141 = arith.constant 3 : index
    %c0_142 = arith.constant 0 : index
    %175 = vector.load %arg11[%c3_140, %c3_141, %c0_142] : memref<12x12x64xf32, #tpu.memory_space<vmem>>, vector<8x8x64xf32>
    %176 = vector.shape_cast %175 : vector<8x8x64xf32> to vector<64x64xf32>
    %177 = arith.truncf %176 : vector<64x64xf32> to vector<64x64xbf16>
    %c0_143 = arith.constant 0 : index
    %c512 = arith.constant 512 : index
    %178 = vector.load %arg14[%c0_143, %c512] : memref<64x576xbf16, #tpu.memory_space<vmem>>, vector<64x64xbf16>
    tpu.vector_store %arg14[%c0_143, %c512], %177 {strides = array<i32>} : memref<64x576xbf16, #tpu.memory_space<vmem>>, vector<64x64xbf16>,
    %c0_144 = arith.constant 0 : index
    %c0_145 = arith.constant 0 : index
    %179 = vector.load %arg14[%c0_144, %c0_145] : memref<64x576xbf16, #tpu.memory_space<vmem>>, vector<64x576xbf16>
    %c0_146 = arith.constant 0 : index
    %c0_147 = arith.constant 0 : index
    %180 = vector.load %arg4[%c0_146, %c0_147] : memref<576x64xbf16, #tpu.memory_space<vmem>>, vector<576x64xbf16>
    %cst_148 = arith.constant dense<0.000000e+00> : vector<64x64xf32>
    %181 = tpu.matmul %179, %180, %cst_148 {dimension_numbers = #tpu.dot_dimension_numbers<[1], [0], [0], [1], [0, 0, 1, 1], [], []>} : vector<64x576xbf16>, vector<576x64xbf16>, vector<64x64xf32> -> vector<64x64xf32>
    %c0_149 = arith.constant 0 : index
    %c0_150 = arith.constant 0 : index
    %182 = vector.load %arg5[%c0_149, %c0_150] : memref<1x64xf32, #tpu.memory_space<vmem>>, vector<1x64xf32>
    %183 = vector.broadcast %182 : vector<1x64xf32> to vector<64x64xf32>
    %184 = arith.addf %181, %183 : vector<64x64xf32>
    %185 = vector.shape_cast %184 : vector<64x64xf32> to vector<8x8x64xf32>
    %c2_151 = arith.constant 2 : index
    %c2_152 = arith.constant 2 : index
    %c0_153 = arith.constant 0 : index
    %186 = vector.load %arg12[%c2_151, %c2_152, %c0_153] : memref<12x12x64xf32, #tpu.memory_space<vmem>>, vector<8x8x64xf32>
    tpu.vector_store %arg12[%c2_151, %c2_152, %c0_153], %185 {strides = array<i32>} : memref<12x12x64xf32, #tpu.memory_space<vmem>>, vector<8x8x64xf32>,
    %c0_154 = arith.constant 0 : index
    %c0_155 = arith.constant 0 : index
    %c0_156 = arith.constant 0 : index
    %187 = vector.load %arg12[%c0_154, %c0_155, %c0_156] : memref<12x12x64xf32, #tpu.memory_space<vmem>>, vector<8x8x64xf32>
    %188 = vector.shape_cast %187 : vector<8x8x64xf32> to vector<64x64xf32>
    %189 = arith.truncf %188 : vector<64x64xf32> to vector<64x64xbf16>
    %c0_157 = arith.constant 0 : index
    %c0_158 = arith.constant 0 : index
    %190 = vector.load %arg14[%c0_157, %c0_158] : memref<64x576xbf16, #tpu.memory_space<vmem>>, vector<64x64xbf16>
    tpu.vector_store %arg14[%c0_157, %c0_158], %189 {strides = array<i32>} : memref<64x576xbf16, #tpu.memory_space<vmem>>, vector<64x64xbf16>,
    %c0_159 = arith.constant 0 : index
    %c2_160 = arith.constant 2 : index
    %c0_161 = arith.constant 0 : index
    %191 = vector.load %arg12[%c0_159, %c2_160, %c0_161] : memref<12x12x64xf32, #tpu.memory_space<vmem>>, vector<8x8x64xf32>
    %192 = vector.shape_cast %191 : vector<8x8x64xf32> to vector<64x64xf32>
    %193 = arith.truncf %192 : vector<64x64xf32> to vector<64x64xbf16>
    %c0_162 = arith.constant 0 : index
    %c64_163 = arith.constant 64 : index
    %194 = vector.load %arg14[%c0_162, %c64_163] : memref<64x576xbf16, #tpu.memory_space<vmem>>, vector<64x64xbf16>
    tpu.vector_store %arg14[%c0_162, %c64_163], %193 {strides = array<i32>} : memref<64x576xbf16, #tpu.memory_space<vmem>>, vector<64x64xbf16>,
    %c0_164 = arith.constant 0 : index
    %c4_165 = arith.constant 4 : index
    %c0_166 = arith.constant 0 : index
    %195 = vector.load %arg12[%c0_164, %c4_165, %c0_166] : memref<12x12x64xf32, #tpu.memory_space<vmem>>, vector<8x8x64xf32>
    %196 = vector.shape_cast %195 : vector<8x8x64xf32> to vector<64x64xf32>
    %197 = arith.truncf %196 : vector<64x64xf32> to vector<64x64xbf16>
    %c0_167 = arith.constant 0 : index
    %c128_168 = arith.constant 128 : index
    %198 = vector.load %arg14[%c0_167, %c128_168] : memref<64x576xbf16, #tpu.memory_space<vmem>>, vector<64x64xbf16>
    tpu.vector_store %arg14[%c0_167, %c128_168], %197 {strides = array<i32>} : memref<64x576xbf16, #tpu.memory_space<vmem>>, vector<64x64xbf16>,
    %c2_169 = arith.constant 2 : index
    %c0_170 = arith.constant 0 : index
    %c0_171 = arith.constant 0 : index
    %199 = vector.load %arg12[%c2_169, %c0_170, %c0_171] : memref<12x12x64xf32, #tpu.memory_space<vmem>>, vector<8x8x64xf32>
    %200 = vector.shape_cast %199 : vector<8x8x64xf32> to vector<64x64xf32>
    %201 = arith.truncf %200 : vector<64x64xf32> to vector<64x64xbf16>
    %c0_172 = arith.constant 0 : index
    %c192_173 = arith.constant 192 : index
    %202 = vector.load %arg14[%c0_172, %c192_173] : memref<64x576xbf16, #tpu.memory_space<vmem>>, vector<64x64xbf16>
    tpu.vector_store %arg14[%c0_172, %c192_173], %201 {strides = array<i32>} : memref<64x576xbf16, #tpu.memory_space<vmem>>, vector<64x64xbf16>,
    %c2_174 = arith.constant 2 : index
    %c2_175 = arith.constant 2 : index
    %c0_176 = arith.constant 0 : index
    %203 = vector.load %arg12[%c2_174, %c2_175, %c0_176] : memref<12x12x64xf32, #tpu.memory_space<vmem>>, vector<8x8x64xf32>
    %204 = vector.shape_cast %203 : vector<8x8x64xf32> to vector<64x64xf32>
    %205 = arith.truncf %204 : vector<64x64xf32> to vector<64x64xbf16>
    %c0_177 = arith.constant 0 : index
    %c256_178 = arith.constant 256 : index
    %206 = vector.load %arg14[%c0_177, %c256_178] : memref<64x576xbf16, #tpu.memory_space<vmem>>, vector<64x64xbf16>
    tpu.vector_store %arg14[%c0_177, %c256_178], %205 {strides = array<i32>} : memref<64x576xbf16, #tpu.memory_space<vmem>>, vector<64x64xbf16>,
    %c2_179 = arith.constant 2 : index
    %c4_180 = arith.constant 4 : index
    %c0_181 = arith.constant 0 : index
    %207 = vector.load %arg12[%c2_179, %c4_180, %c0_181] : memref<12x12x64xf32, #tpu.memory_space<vmem>>, vector<8x8x64xf32>
    %208 = vector.shape_cast %207 : vector<8x8x64xf32> to vector<64x64xf32>
    %209 = arith.truncf %208 : vector<64x64xf32> to vector<64x64xbf16>
    %c0_182 = arith.constant 0 : index
    %c320_183 = arith.constant 320 : index
    %210 = vector.load %arg14[%c0_182, %c320_183] : memref<64x576xbf16, #tpu.memory_space<vmem>>, vector<64x64xbf16>
    tpu.vector_store %arg14[%c0_182, %c320_183], %209 {strides = array<i32>} : memref<64x576xbf16, #tpu.memory_space<vmem>>, vector<64x64xbf16>,
    %c4_184 = arith.constant 4 : index
    %c0_185 = arith.constant 0 : index
    %c0_186 = arith.constant 0 : index
    %211 = vector.load %arg12[%c4_184, %c0_185, %c0_186] : memref<12x12x64xf32, #tpu.memory_space<vmem>>, vector<8x8x64xf32>
    %212 = vector.shape_cast %211 : vector<8x8x64xf32> to vector<64x64xf32>
    %213 = arith.truncf %212 : vector<64x64xf32> to vector<64x64xbf16>
    %c0_187 = arith.constant 0 : index
    %c384_188 = arith.constant 384 : index
    %214 = vector.load %arg14[%c0_187, %c384_188] : memref<64x576xbf16, #tpu.memory_space<vmem>>, vector<64x64xbf16>
    tpu.vector_store %arg14[%c0_187, %c384_188], %213 {strides = array<i32>} : memref<64x576xbf16, #tpu.memory_space<vmem>>, vector<64x64xbf16>,
    %c4_189 = arith.constant 4 : index
    %c2_190 = arith.constant 2 : index
    %c0_191 = arith.constant 0 : index
    %215 = vector.load %arg12[%c4_189, %c2_190, %c0_191] : memref<12x12x64xf32, #tpu.memory_space<vmem>>, vector<8x8x64xf32>
    %216 = vector.shape_cast %215 : vector<8x8x64xf32> to vector<64x64xf32>
    %217 = arith.truncf %216 : vector<64x64xf32> to vector<64x64xbf16>
    %c0_192 = arith.constant 0 : index
    %c448_193 = arith.constant 448 : index
    %218 = vector.load %arg14[%c0_192, %c448_193] : memref<64x576xbf16, #tpu.memory_space<vmem>>, vector<64x64xbf16>
    tpu.vector_store %arg14[%c0_192, %c448_193], %217 {strides = array<i32>} : memref<64x576xbf16, #tpu.memory_space<vmem>>, vector<64x64xbf16>,
    %c4_194 = arith.constant 4 : index
    %c4_195 = arith.constant 4 : index
    %c0_196 = arith.constant 0 : index
    %219 = vector.load %arg12[%c4_194, %c4_195, %c0_196] : memref<12x12x64xf32, #tpu.memory_space<vmem>>, vector<8x8x64xf32>
    %220 = vector.shape_cast %219 : vector<8x8x64xf32> to vector<64x64xf32>
    %221 = arith.truncf %220 : vector<64x64xf32> to vector<64x64xbf16>
    %c0_197 = arith.constant 0 : index
    %c512_198 = arith.constant 512 : index
    %222 = vector.load %arg14[%c0_197, %c512_198] : memref<64x576xbf16, #tpu.memory_space<vmem>>, vector<64x64xbf16>
    tpu.vector_store %arg14[%c0_197, %c512_198], %221 {strides = array<i32>} : memref<64x576xbf16, #tpu.memory_space<vmem>>, vector<64x64xbf16>,
    %c0_199 = arith.constant 0 : index
    %c0_200 = arith.constant 0 : index
    %223 = vector.load %arg14[%c0_199, %c0_200] : memref<64x576xbf16, #tpu.memory_space<vmem>>, vector<64x576xbf16>
    %c0_201 = arith.constant 0 : index
    %c0_202 = arith.constant 0 : index
    %224 = vector.load %arg6[%c0_201, %c0_202] : memref<576x64xbf16, #tpu.memory_space<vmem>>, vector<576x64xbf16>
    %cst_203 = arith.constant dense<0.000000e+00> : vector<64x64xf32>
    %225 = tpu.matmul %223, %224, %cst_203 {dimension_numbers = #tpu.dot_dimension_numbers<[1], [0], [0], [1], [0, 0, 1, 1], [], []>} : vector<64x576xbf16>, vector<576x64xbf16>, vector<64x64xf32> -> vector<64x64xf32>
    %c0_204 = arith.constant 0 : index
    %c0_205 = arith.constant 0 : index
    %226 = vector.load %arg7[%c0_204, %c0_205] : memref<1x64xf32, #tpu.memory_space<vmem>>, vector<1x64xf32>
    %227 = vector.broadcast %226 : vector<1x64xf32> to vector<64x64xf32>
    %228 = arith.addf %225, %227 : vector<64x64xf32>
    %229 = vector.shape_cast %228 : vector<64x64xf32> to vector<8x8x64xf32>
    %230 = vector.shape_cast %139 : vector<8x8xf32> to vector<8x8x1xf32>
    %231 = vector.broadcast %230 : vector<8x8x1xf32> to vector<8x8x64xf32>
    %232 = arith.mulf %229, %231 : vector<8x8x64xf32>
    %c2_206 = arith.constant 2 : index
    %c2_207 = arith.constant 2 : index
    %c0_208 = arith.constant 0 : index
    %233 = vector.load %arg11[%c2_206, %c2_207, %c0_208] : memref<12x12x64xf32, #tpu.memory_space<vmem>>, vector<8x8x64xf32>
    tpu.vector_store %arg11[%c2_206, %c2_207, %c0_208], %232 {strides = array<i32>} : memref<12x12x64xf32, #tpu.memory_space<vmem>>, vector<8x8x64xf32>,
    %c1_209 = arith.constant 1 : index
    %c1_210 = arith.constant 1 : index
    %c0_211 = arith.constant 0 : index
    %234 = vector.load %arg11[%c1_209, %c1_210, %c0_211] : memref<12x12x64xf32, #tpu.memory_space<vmem>>, vector<8x8x64xf32>
    %235 = vector.shape_cast %234 : vector<8x8x64xf32> to vector<64x64xf32>
    %236 = arith.truncf %235 : vector<64x64xf32> to vector<64x64xbf16>
    %c0_212 = arith.constant 0 : index
    %c0_213 = arith.constant 0 : index
    %237 = vector.load %arg14[%c0_212, %c0_213] : memref<64x576xbf16, #tpu.memory_space<vmem>>, vector<64x64xbf16>
    tpu.vector_store %arg14[%c0_212, %c0_213], %236 {strides = array<i32>} : memref<64x576xbf16, #tpu.memory_space<vmem>>, vector<64x64xbf16>,
    %c1_214 = arith.constant 1 : index
    %c2_215 = arith.constant 2 : index
    %c0_216 = arith.constant 0 : index
    %238 = vector.load %arg11[%c1_214, %c2_215, %c0_216] : memref<12x12x64xf32, #tpu.memory_space<vmem>>, vector<8x8x64xf32>
    %239 = vector.shape_cast %238 : vector<8x8x64xf32> to vector<64x64xf32>
    %240 = arith.truncf %239 : vector<64x64xf32> to vector<64x64xbf16>
    %c0_217 = arith.constant 0 : index
    %c64_218 = arith.constant 64 : index
    %241 = vector.load %arg14[%c0_217, %c64_218] : memref<64x576xbf16, #tpu.memory_space<vmem>>, vector<64x64xbf16>
    tpu.vector_store %arg14[%c0_217, %c64_218], %240 {strides = array<i32>} : memref<64x576xbf16, #tpu.memory_space<vmem>>, vector<64x64xbf16>,
    %c1_219 = arith.constant 1 : index
    %c3_220 = arith.constant 3 : index
    %c0_221 = arith.constant 0 : index
    %242 = vector.load %arg11[%c1_219, %c3_220, %c0_221] : memref<12x12x64xf32, #tpu.memory_space<vmem>>, vector<8x8x64xf32>
    %243 = vector.shape_cast %242 : vector<8x8x64xf32> to vector<64x64xf32>
    %244 = arith.truncf %243 : vector<64x64xf32> to vector<64x64xbf16>
    %c0_222 = arith.constant 0 : index
    %c128_223 = arith.constant 128 : index
    %245 = vector.load %arg14[%c0_222, %c128_223] : memref<64x576xbf16, #tpu.memory_space<vmem>>, vector<64x64xbf16>
    tpu.vector_store %arg14[%c0_222, %c128_223], %244 {strides = array<i32>} : memref<64x576xbf16, #tpu.memory_space<vmem>>, vector<64x64xbf16>,
    %c2_224 = arith.constant 2 : index
    %c1_225 = arith.constant 1 : index
    %c0_226 = arith.constant 0 : index
    %246 = vector.load %arg11[%c2_224, %c1_225, %c0_226] : memref<12x12x64xf32, #tpu.memory_space<vmem>>, vector<8x8x64xf32>
    %247 = vector.shape_cast %246 : vector<8x8x64xf32> to vector<64x64xf32>
    %248 = arith.truncf %247 : vector<64x64xf32> to vector<64x64xbf16>
    %c0_227 = arith.constant 0 : index
    %c192_228 = arith.constant 192 : index
    %249 = vector.load %arg14[%c0_227, %c192_228] : memref<64x576xbf16, #tpu.memory_space<vmem>>, vector<64x64xbf16>
    tpu.vector_store %arg14[%c0_227, %c192_228], %248 {strides = array<i32>} : memref<64x576xbf16, #tpu.memory_space<vmem>>, vector<64x64xbf16>,
    %c2_229 = arith.constant 2 : index
    %c2_230 = arith.constant 2 : index
    %c0_231 = arith.constant 0 : index
    %250 = vector.load %arg11[%c2_229, %c2_230, %c0_231] : memref<12x12x64xf32, #tpu.memory_space<vmem>>, vector<8x8x64xf32>
    %251 = vector.shape_cast %250 : vector<8x8x64xf32> to vector<64x64xf32>
    %252 = arith.truncf %251 : vector<64x64xf32> to vector<64x64xbf16>
    %c0_232 = arith.constant 0 : index
    %c256_233 = arith.constant 256 : index
    %253 = vector.load %arg14[%c0_232, %c256_233] : memref<64x576xbf16, #tpu.memory_space<vmem>>, vector<64x64xbf16>
    tpu.vector_store %arg14[%c0_232, %c256_233], %252 {strides = array<i32>} : memref<64x576xbf16, #tpu.memory_space<vmem>>, vector<64x64xbf16>,
    %c2_234 = arith.constant 2 : index
    %c3_235 = arith.constant 3 : index
    %c0_236 = arith.constant 0 : index
    %254 = vector.load %arg11[%c2_234, %c3_235, %c0_236] : memref<12x12x64xf32, #tpu.memory_space<vmem>>, vector<8x8x64xf32>
    %255 = vector.shape_cast %254 : vector<8x8x64xf32> to vector<64x64xf32>
    %256 = arith.truncf %255 : vector<64x64xf32> to vector<64x64xbf16>
    %c0_237 = arith.constant 0 : index
    %c320_238 = arith.constant 320 : index
    %257 = vector.load %arg14[%c0_237, %c320_238] : memref<64x576xbf16, #tpu.memory_space<vmem>>, vector<64x64xbf16>
    tpu.vector_store %arg14[%c0_237, %c320_238], %256 {strides = array<i32>} : memref<64x576xbf16, #tpu.memory_space<vmem>>, vector<64x64xbf16>,
    %c3_239 = arith.constant 3 : index
    %c1_240 = arith.constant 1 : index
    %c0_241 = arith.constant 0 : index
    %258 = vector.load %arg11[%c3_239, %c1_240, %c0_241] : memref<12x12x64xf32, #tpu.memory_space<vmem>>, vector<8x8x64xf32>
    %259 = vector.shape_cast %258 : vector<8x8x64xf32> to vector<64x64xf32>
    %260 = arith.truncf %259 : vector<64x64xf32> to vector<64x64xbf16>
    %c0_242 = arith.constant 0 : index
    %c384_243 = arith.constant 384 : index
    %261 = vector.load %arg14[%c0_242, %c384_243] : memref<64x576xbf16, #tpu.memory_space<vmem>>, vector<64x64xbf16>
    tpu.vector_store %arg14[%c0_242, %c384_243], %260 {strides = array<i32>} : memref<64x576xbf16, #tpu.memory_space<vmem>>, vector<64x64xbf16>,
    %c3_244 = arith.constant 3 : index
    %c2_245 = arith.constant 2 : index
    %c0_246 = arith.constant 0 : index
    %262 = vector.load %arg11[%c3_244, %c2_245, %c0_246] : memref<12x12x64xf32, #tpu.memory_space<vmem>>, vector<8x8x64xf32>
    %263 = vector.shape_cast %262 : vector<8x8x64xf32> to vector<64x64xf32>
    %264 = arith.truncf %263 : vector<64x64xf32> to vector<64x64xbf16>
    %c0_247 = arith.constant 0 : index
    %c448_248 = arith.constant 448 : index
    %265 = vector.load %arg14[%c0_247, %c448_248] : memref<64x576xbf16, #tpu.memory_space<vmem>>, vector<64x64xbf16>
    tpu.vector_store %arg14[%c0_247, %c448_248], %264 {strides = array<i32>} : memref<64x576xbf16, #tpu.memory_space<vmem>>, vector<64x64xbf16>,
    %c3_249 = arith.constant 3 : index
    %c3_250 = arith.constant 3 : index
    %c0_251 = arith.constant 0 : index
    %266 = vector.load %arg11[%c3_249, %c3_250, %c0_251] : memref<12x12x64xf32, #tpu.memory_space<vmem>>, vector<8x8x64xf32>
    %267 = vector.shape_cast %266 : vector<8x8x64xf32> to vector<64x64xf32>
    %268 = arith.truncf %267 : vector<64x64xf32> to vector<64x64xbf16>
    %c0_252 = arith.constant 0 : index
    %c512_253 = arith.constant 512 : index
    %269 = vector.load %arg14[%c0_252, %c512_253] : memref<64x576xbf16, #tpu.memory_space<vmem>>, vector<64x64xbf16>
    tpu.vector_store %arg14[%c0_252, %c512_253], %268 {strides = array<i32>} : memref<64x576xbf16, #tpu.memory_space<vmem>>, vector<64x64xbf16>,
    %c0_254 = arith.constant 0 : index
    %c0_255 = arith.constant 0 : index
    %270 = vector.load %arg14[%c0_254, %c0_255] : memref<64x576xbf16, #tpu.memory_space<vmem>>, vector<64x576xbf16>
    %c0_256 = arith.constant 0 : index
    %c0_257 = arith.constant 0 : index
    %271 = vector.load %arg8[%c0_256, %c0_257] : memref<576x64xbf16, #tpu.memory_space<vmem>>, vector<576x64xbf16>
    %cst_258 = arith.constant dense<0.000000e+00> : vector<64x64xf32>
    %272 = tpu.matmul %270, %271, %cst_258 {dimension_numbers = #tpu.dot_dimension_numbers<[1], [0], [0], [1], [0, 0, 1, 1], [], []>} : vector<64x576xbf16>, vector<576x64xbf16>, vector<64x64xf32> -> vector<64x64xf32>
    %c0_259 = arith.constant 0 : index
    %c0_260 = arith.constant 0 : index
    %273 = vector.load %arg9[%c0_259, %c0_260] : memref<1x64xf32, #tpu.memory_space<vmem>>, vector<1x64xf32>
    %274 = vector.broadcast %273 : vector<1x64xf32> to vector<64x64xf32>
    %275 = arith.addf %272, %274 : vector<64x64xf32>
    %276 = vector.shape_cast %275 : vector<64x64xf32> to vector<8x8x64xf32>
    %cst_261 = arith.constant 0.000000e+00 : f32
    %277 = vector.broadcast %cst_261 : f32 to vector<8x8x64xf32>
    %278 = arith.maximumf %276, %277 : vector<8x8x64xf32>
    %c0_262 = arith.constant 0 : index
    %c0_263 = arith.constant 0 : index
    %c0_264 = arith.constant 0 : index
    %c0_265 = arith.constant 0 : index
    %279 = vector.load %arg1[%c0_262, %c0_263, %c0_264, %c0_265] : memref<1x8x8x64xf32, #tpu.memory_space<vmem>>, vector<1x8x8x64xf32>
    %280 = vector.shape_cast %279 : vector<1x8x8x64xf32> to vector<8x8x64xf32>
    %281 = arith.addf %278, %280 : vector<8x8x64xf32>
    %c0_266 = arith.constant 0 : index
    %c0_267 = arith.constant 0 : index
    %c0_268 = arith.constant 0 : index
    %c0_269 = arith.constant 0 : index
    %282 = vector.load %arg10[%c0_266, %c0_267, %c0_268, %c0_269] : memref<1x8x8x64xf32, #tpu.memory_space<vmem>>, vector<1x8x8x64xf32>
    %283 = vector.shape_cast %282 : vector<1x8x8x64xf32> to vector<8x8x64xf32>
    %284 = vector.shape_cast %281 : vector<8x8x64xf32> to vector<1x8x8x64xf32>
    tpu.vector_store %arg10[%c0_266, %c0_267, %c0_268, %c0_269], %284 {strides = array<i32>} : memref<1x8x8x64xf32, #tpu.memory_space<vmem>>, vector<1x8x8x64xf32>,
    return
  }
  func.func @transform_0(%arg0: i32) -> (i32, i32, i32, i32) {
    %c0_i32 = arith.constant 0 : i32
    %c0_i32_0 = arith.constant 0 : i32
    %c0_i32_1 = arith.constant 0 : i32
    %c0_i32_2 = arith.constant 0 : i32
    return %arg0, %c0_i32, %c0_i32_0, %c0_i32_1 : i32, i32, i32, i32
  }
  func.func @transform_1(%arg0: i32) -> (i32, i32, i32, i32) {
    %c0_i32 = arith.constant 0 : i32
    %c0_i32_0 = arith.constant 0 : i32
    %c0_i32_1 = arith.constant 0 : i32
    %c0_i32_2 = arith.constant 0 : i32
    return %arg0, %c0_i32, %c0_i32_0, %c0_i32_1 : i32, i32, i32, i32
  }
  func.func @transform_2(%arg0: i32) -> i32 {
    %c0_i32 = arith.constant 0 : i32
    %c0_i32_0 = arith.constant 0 : i32
    return %c0_i32 : i32
  }
  func.func @transform_3(%arg0: i32) -> (i32, i32) {
    %c0_i32 = arith.constant 0 : i32
    %c0_i32_0 = arith.constant 0 : i32
    %c0_i32_1 = arith.constant 0 : i32
    return %c0_i32, %c0_i32_0 : i32, i32
  }
  func.func @transform_4(%arg0: i32) -> (i32, i32) {
    %c0_i32 = arith.constant 0 : i32
    %c0_i32_0 = arith.constant 0 : i32
    %c0_i32_1 = arith.constant 0 : i32
    return %c0_i32, %c0_i32_0 : i32, i32
  }
  func.func @transform_5(%arg0: i32) -> (i32, i32) {
    %c0_i32 = arith.constant 0 : i32
    %c0_i32_0 = arith.constant 0 : i32
    %c0_i32_1 = arith.constant 0 : i32
    return %c0_i32, %c0_i32_0 : i32, i32
  }
  func.func @transform_6(%arg0: i32) -> (i32, i32) {
    %c0_i32 = arith.constant 0 : i32
    %c0_i32_0 = arith.constant 0 : i32
    %c0_i32_1 = arith.constant 0 : i32
    return %c0_i32, %c0_i32_0 : i32, i32
  }
  func.func @transform_7(%arg0: i32) -> (i32, i32) {
    %c0_i32 = arith.constant 0 : i32
    %c0_i32_0 = arith.constant 0 : i32
    %c0_i32_1 = arith.constant 0 : i32
    return %c0_i32, %c0_i32_0 : i32, i32
  }
  func.func @transform_8(%arg0: i32) -> (i32, i32) {
    %c0_i32 = arith.constant 0 : i32
    %c0_i32_0 = arith.constant 0 : i32
    %c0_i32_1 = arith.constant 0 : i32
    return %c0_i32, %c0_i32_0 : i32, i32
  }
  func.func @transform_9(%arg0: i32) -> (i32, i32, i32, i32) {
    %c0_i32 = arith.constant 0 : i32
    %c0_i32_0 = arith.constant 0 : i32
    %c0_i32_1 = arith.constant 0 : i32
    %c0_i32_2 = arith.constant 0 : i32
    return %arg0, %c0_i32, %c0_i32_0, %c0_i32_1 : i32, i32, i32, i32
  }
}

</mosaic_0001>

<llo_original>
// kernel: tpu_custom_call.1
$region0: #{tpu_custom_call.1}
  #allocation0 [shape = 'u32[]', space=smem, size = 0x4, offset = 0x4, fixed_abs, tag = 'smem constant byte address 0x4 - core index']
  #allocation1 [shape = 'u32[72,128]{1,0:T(1,128)}', space=vmem, size = 0x9000, scoped, tag = 'internal scratch']
  #allocation2 [shape = 'f32[12,12,64]{2,1,0:T(8,128)}', space=vmem, size = 0x18000, scoped, tag = 'scratch operand']
  #allocation3 [shape = 'f32[12,12,64]{2,1,0:T(8,128)}', space=vmem, size = 0x18000, scoped, tag = 'scratch operand']
  #allocation4 [shape = 'f32[2,10,10]{2,1,0:T(8,128)}', space=vmem, size = 0x4000, scoped, tag = 'scratch operand']
  #allocation5 [shape = 'bf16[64,576]{1,0:T(8,128)(2,1)}', space=vmem, size = 0x14000, scoped, tag = 'scratch operand']
  %s0 = inlined_call_operand.vmem [shape: f32[2,8,8,64], index: 0, kind: input, shape index: {}]
  %s1 = inlined_call_operand.vmem [shape: f32[2,8,8,64], index: 1, kind: input, shape index: {}]
  %s2 = inlined_call_operand.vmem [shape: f32[18], index: 2, kind: input, shape index: {}]
  %s3 = inlined_call_operand.vmem [shape: bf16[576,64], index: 3, kind: input, shape index: {}]
  %s4 = inlined_call_operand.vmem [shape: f32[1,64], index: 4, kind: input, shape index: {}]
  %s5 = inlined_call_operand.vmem [shape: bf16[576,64], index: 5, kind: input, shape index: {}]
  %s6 = inlined_call_operand.vmem [shape: f32[1,64], index: 6, kind: input, shape index: {}]
  %s7 = inlined_call_operand.vmem [shape: bf16[576,64], index: 7, kind: input, shape index: {}]
  %s8 = inlined_call_operand.vmem [shape: f32[1,64], index: 8, kind: input, shape index: {}]
  %s9 = inlined_call_operand.hbm [shape: f32[2,8,8,64], index: 9, kind: output, shape index: {}]
  %s10 = sld [smem:[#allocation0]]
  $region73: #{tpu_custom_call.1} parent=0
    _
  %s12 = ssub.s32 1, %s10
  %s13 = scalar_select 0, %s12, %s10
  $region1: #{tpu_custom_call.1} parent=0
    #allocation6 [shape = 'u8[512]{0}', space=smem, size = 0x200, scoped, tag = 'input window, operand 2, single buffered']
    #allocation7 [shape = 's32[2]{0}', space=sflag, size = 0x8, scoped, tag = 'scoped memory for tpu_custom_call.1']
    #allocation8 [shape = 's32[2]{0}', space=sflag, size = 0x8, scoped, tag = 'scoped memory for tpu_custom_call.1']
    #allocation9 [shape = 'u8[65536]{0}', space=vmem, size = 0x10000, scoped, tag = 'output window, operand 0']
    %14 = vsyncpa [#allocation8], 0
    %15 = vsyncpa [#allocation7], 0
    %s16 = scalar_lea.sflag [#allocation7], 1
    %17 = vsyncpa %s16, 0
    loop: start=0, step=1, limit=4
    $region2: #{tpu_custom_call.1} parent=1 // loop_pre_header
      _
    $region3: #{tpu_custom_call.1} parent=1 // loop_header
      %s19 = sphi 0, %s23
      %p20 = scmp.ge.s32.totalorder %s19, 4
      %s29 = sphi 0, %s31
      %s32 = sphi 0, %s29
      %s33 = sphi 0, %s32
      %s49 = sphi 0, %s33
      %s55 = sphi 0, %s57
      %s58 = sphi 0, %s55
      %s59 = sphi 0, %s58
      %s75 = sphi 0, %s59
      %s79 = sphi 0, %s79
      %s81 = sphi 0, %s79
      %s82 = sphi 0, %s81
      %s96 = sphi 0, %s82
      %s100 = sphi 0, %s100
      %s102 = sphi 0, %s100
      %s103 = sphi 0, %s102
      %s117 = sphi 0, %s103
      %s121 = sphi 0, %s121
      %s123 = sphi 0, %s121
      %s124 = sphi 0, %s123
      %s138 = sphi 0, %s124
      %s142 = sphi 0, %s142
      %s144 = sphi 0, %s142
      %s145 = sphi 0, %s144
      %s159 = sphi 0, %s145
      %s163 = sphi 0, %s163
      %s165 = sphi 0, %s163
      %s166 = sphi 0, %s165
      %s180 = sphi 0, %s166
      %s184 = sphi 0, %s184
      %s186 = sphi 0, %s184
      %s187 = sphi 0, %s186
      %s201 = sphi 0, %s187
      %s205 = sphi 0, %s205
      %s207 = sphi 0, %s205
      %s208 = sphi 0, %s207
      %s222 = sphi 0, %s208
      %s228 = sphi 0, %s230
      %s231 = sphi 0, %s228
      %s232 = sphi 0, %s231
      %s248 = sphi 0, %s232
    $region4: #{tpu_custom_call.1} parent=1 // loop_header_branch
      %22 = sbr.rel (%p20) target = $region8
    $region5: #{tpu_custom_call.1} parent=1 // loop_body
      %s24 = ssub.s32 %s19, 1
      %s25 = ssub.s32 %s19, 2
      %s26 = sadd.s32 %s19, 1
      %s27 = ssub.s32 %s19, %s26
      %p28 = scmp.eq.s32.totalorder %s27, 0
      %s30 = sadd.s32 %s29, 1
      %s31 = scalar_select %p28, %s29, %s30
      %p34 = pneg %p28
      %p35 = scmp.eq.s32.totalorder %s19, 1
      %p36 = por %p34, %p35
      %p37 = scmp.ne.s32.totalorder %s29, %s32
      %p38 = scmp.eq.s32.totalorder %s19, 0
      %p39 = por %p37, %p38
      %p40 = scmp.ne.s32.totalorder %s29, %s32
      %p41 = scmp.eq.s32.totalorder %s24, 1
      %p42 = por %p40, %p41
      %p43 = scmp.ne.s32.totalorder %s32, %s33
      %p44 = scmp.eq.s32.totalorder %s24, 0
      %p45 = por %p43, %p44
      %p46 = scmp.ne.s32.totalorder %s32, %s33
      %p47 = scmp.eq.s32.totalorder %s25, 1
      %p48 = por %p46, %p47
      %p50 = scmp.ne.s32.totalorder %s33, %s49
      %p51 = scmp.eq.s32.totalorder %s25, 0
      %p52 = por %p50, %p51
      %s53 = ssub.s32 %s19, %s26
      %p54 = scmp.eq.s32.totalorder %s53, 0
      %s56 = sadd.s32 %s55, 1
      %s57 = scalar_select %p54, %s55, %s56
      %p60 = pneg %p54
      %p61 = scmp.eq.s32.totalorder %s19, 1
      %p62 = por %p60, %p61
      %p63 = scmp.ne.s32.totalorder %s55, %s58
      %p64 = scmp.eq.s32.totalorder %s19, 0
      %p65 = por %p63, %p64
      %p66 = scmp.ne.s32.totalorder %s55, %s58
      %p67 = scmp.eq.s32.totalorder %s24, 1
      %p68 = por %p66, %p67
      %p69 = scmp.ne.s32.totalorder %s58, %s59
      %p70 = scmp.eq.s32.totalorder %s24, 0
      %p71 = por %p69, %p70
      %p72 = scmp.ne.s32.totalorder %s58, %s59
      %p73 = scmp.eq.s32.totalorder %s25, 1
      %p74 = por %p72, %p73
      %p76 = scmp.ne.s32.totalorder %s59, %s75
      %p77 = scmp.eq.s32.totalorder %s25, 0
      %p78 = por %p76, %p77
      %s80 = sadd.s32 %s79, 1
      %p83 = scmp.eq.s32.totalorder %s19, 1
      %p84 = scmp.ne.s32.totalorder %s79, %s81
      %p85 = scmp.eq.s32.totalorder %s19, 0
      %p86 = por %p84, %p85
      %p87 = scmp.ne.s32.totalorder %s79, %s81
      %p88 = scmp.eq.s32.totalorder %s24, 1
      %p89 = por %p87, %p88
      %p90 = scmp.ne.s32.totalorder %s81, %s82
      %p91 = scmp.eq.s32.totalorder %s24, 0
      %p92 = por %p90, %p91
      %p93 = scmp.ne.s32.totalorder %s81, %s82
      %p94 = scmp.eq.s32.totalorder %s25, 1
      %p95 = por %p93, %p94
      %p97 = scmp.ne.s32.totalorder %s82, %s96
      %p98 = scmp.eq.s32.totalorder %s25, 0
      %p99 = por %p97, %p98
      %s101 = sadd.s32 %s100, 1
      %p104 = scmp.eq.s32.totalorder %s19, 1
      %p105 = scmp.ne.s32.totalorder %s100, %s102
      %p106 = scmp.eq.s32.totalorder %s19, 0
      %p107 = por %p105, %p106
      %p108 = scmp.ne.s32.totalorder %s100, %s102
      %p109 = scmp.eq.s32.totalorder %s24, 1
      %p110 = por %p108, %p109
      %p111 = scmp.ne.s32.totalorder %s102, %s103
      %p112 = scmp.eq.s32.totalorder %s24, 0
      %p113 = por %p111, %p112
      %p114 = scmp.ne.s32.totalorder %s102, %s103
      %p115 = scmp.eq.s32.totalorder %s25, 1
      %p116 = por %p114, %p115
      %p118 = scmp.ne.s32.totalorder %s103, %s117
      %p119 = scmp.eq.s32.totalorder %s25, 0
      %p120 = por %p118, %p119
      %s122 = sadd.s32 %s121, 1
      %p125 = scmp.eq.s32.totalorder %s19, 1
      %p126 = scmp.ne.s32.totalorder %s121, %s123
      %p127 = scmp.eq.s32.totalorder %s19, 0
      %p128 = por %p126, %p127
      %p129 = scmp.ne.s32.totalorder %s121, %s123
      %p130 = scmp.eq.s32.totalorder %s24, 1
      %p131 = por %p129, %p130
      %p132 = scmp.ne.s32.totalorder %s123, %s124
      %p133 = scmp.eq.s32.totalorder %s24, 0
      %p134 = por %p132, %p133
      %p135 = scmp.ne.s32.totalorder %s123, %s124
      %p136 = scmp.eq.s32.totalorder %s25, 1
      %p137 = por %p135, %p136
      %p139 = scmp.ne.s32.totalorder %s124, %s138
      %p140 = scmp.eq.s32.totalorder %s25, 0
      %p141 = por %p139, %p140
      %s143 = sadd.s32 %s142, 1
      %p146 = scmp.eq.s32.totalorder %s19, 1
      %p147 = scmp.ne.s32.totalorder %s142, %s144
      %p148 = scmp.eq.s32.totalorder %s19, 0
      %p149 = por %p147, %p148
      %p150 = scmp.ne.s32.totalorder %s142, %s144
      %p151 = scmp.eq.s32.totalorder %s24, 1
      %p152 = por %p150, %p151
      %p153 = scmp.ne.s32.totalorder %s144, %s145
      %p154 = scmp.eq.s32.totalorder %s24, 0
      %p155 = por %p153, %p154
      %p156 = scmp.ne.s32.totalorder %s144, %s145
      %p157 = scmp.eq.s32.totalorder %s25, 1
      %p158 = por %p156, %p157
      %p160 = scmp.ne.s32.totalorder %s145, %s159
      %p161 = scmp.eq.s32.totalorder %s25, 0
      %p162 = por %p160, %p161
      %s164 = sadd.s32 %s163, 1
      %p167 = scmp.eq.s32.totalorder %s19, 1
      %p168 = scmp.ne.s32.totalorder %s163, %s165
      %p169 = scmp.eq.s32.totalorder %s19, 0
      %p170 = por %p168, %p169
      %p171 = scmp.ne.s32.totalorder %s163, %s165
      %p172 = scmp.eq.s32.totalorder %s24, 1
      %p173 = por %p171, %p172
      %p174 = scmp.ne.s32.totalorder %s165, %s166
      %p175 = scmp.eq.s32.totalorder %s24, 0
      %p176 = por %p174, %p175
      %p177 = scmp.ne.s32.totalorder %s165, %s166
      %p178 = scmp.eq.s32.totalorder %s25, 1
      %p179 = por %p177, %p178
      %p181 = scmp.ne.s32.totalorder %s166, %s180
      %p182 = scmp.eq.s32.totalorder %s25, 0
      %p183 = por %p181, %p182
      %s185 = sadd.s32 %s184, 1
      %p188 = scmp.eq.s32.totalorder %s19, 1
      %p189 = scmp.ne.s32.totalorder %s184, %s186
      %p190 = scmp.eq.s32.totalorder %s19, 0
      %p191 = por %p189, %p190
      %p192 = scmp.ne.s32.totalorder %s184, %s186
      %p193 = scmp.eq.s32.totalorder %s24, 1
      %p194 = por %p192, %p193
      %p195 = scmp.ne.s32.totalorder %s186, %s187
      %p196 = scmp.eq.s32.totalorder %s24, 0
      %p197 = por %p195, %p196
      %p198 = scmp.ne.s32.totalorder %s186, %s187
      %p199 = scmp.eq.s32.totalorder %s25, 1
      %p200 = por %p198, %p199
      %p202 = scmp.ne.s32.totalorder %s187, %s201
      %p203 = scmp.eq.s32.totalorder %s25, 0
      %p204 = por %p202, %p203
      %s206 = sadd.s32 %s205, 1
      %p209 = scmp.eq.s32.totalorder %s19, 1
      %p210 = scmp.ne.s32.totalorder %s205, %s207
      %p211 = scmp.eq.s32.totalorder %s19, 0
      %p212 = por %p210, %p211
      %p213 = scmp.ne.s32.totalorder %s205, %s207
      %p214 = scmp.eq.s32.totalorder %s24, 1
      %p215 = por %p213, %p214
      %p216 = scmp.ne.s32.totalorder %s207, %s208
      %p217 = scmp.eq.s32.totalorder %s24, 0
      %p218 = por %p216, %p217
      %p219 = scmp.ne.s32.totalorder %s207, %s208
      %p220 = scmp.eq.s32.totalorder %s25, 1
      %p221 = por %p219, %p220
      %p223 = scmp.ne.s32.totalorder %s208, %s222
      %p224 = scmp.eq.s32.totalorder %s25, 0
      %p225 = por %p223, %p224
      %s226 = ssub.s32 %s19, %s26
      %p227 = scmp.eq.s32.totalorder %s226, 0
      %s229 = sadd.s32 %s228, 1
      %s230 = scalar_select %p227, %s228, %s229
      %p233 = pneg %p227
      %p234 = scmp.eq.s32.totalorder %s19, 1
      %p235 = por %p233, %p234
      %p236 = scmp.ne.s32.totalorder %s228, %s231
      %p237 = scmp.eq.s32.totalorder %s19, 0
      %p238 = por %p236, %p237
      %p239 = scmp.ne.s32.totalorder %s228, %s231
      %p240 = scmp.eq.s32.totalorder %s24, 1
      %p241 = por %p239, %p240
      %p242 = scmp.ne.s32.totalorder %s231, %s232
      %p243 = scmp.eq.s32.totalorder %s24, 0
      %p244 = por %p242, %p243
      %p245 = scmp.ne.s32.totalorder %s231, %s232
      %p246 = scmp.eq.s32.totalorder %s25, 1
      %p247 = por %p245, %p246
      %p249 = scmp.ne.s32.totalorder %s232, %s248
      %p250 = scmp.eq.s32.totalorder %s25, 0
      %p251 = por %p249, %p250
      %p252 = scmp.le.s32.totalorder 1, %s19
      %p253 = scmp.lt.s32.totalorder %s19, 3
      %p254 = pnand %p252, %p253
      %p255 = pneg %p254
      // Predicated region
      $region9: #{tpu_custom_call.1} parent=5 // pred_check
        _
      $region10: #{tpu_custom_call.1} parent=5 // pred_check_branch
        %257 = sbr.rel (%p254) target = $region12
      $region11: #{tpu_custom_call.1} parent=5 // pred_region
        %s258 = ssub.s32 %s19, 1
        // Predicated region
        $region13: #{tpu_custom_call.1} parent=11 // pred_check
          %p259 = pneg %p92
        $region14: #{tpu_custom_call.1} parent=11 // pred_check_branch
          %261 = sbr.rel (%p259) target = $region16
        $region15: #{tpu_custom_call.1} parent=11 // pred_region
          %263 = vsyncadd [#allocation8], 0
          %s265 = sshll.u32 %s2, 4
          %s266 = int_to_ptr.vmem [resolvable:$true] %s265
          %268 = dma.vmem_to_smem %s266, 16, [#allocation6], [#allocation8]
        $region16: #{tpu_custom_call.1} parent=11 // pred_fallthru
          _
        // Predicated region
        $region17: #{tpu_custom_call.1} parent=11 // pred_check
          %p269 = pneg %p113
        $region18: #{tpu_custom_call.1} parent=11 // pred_check_branch
          %271 = sbr.rel (%p269) target = $region20
        $region19: #{tpu_custom_call.1} parent=11 // pred_region
          _
        $region20: #{tpu_custom_call.1} parent=11 // pred_fallthru
          _
        // Predicated region
        $region21: #{tpu_custom_call.1} parent=11 // pred_check
          %p272 = pneg %p134
        $region22: #{tpu_custom_call.1} parent=11 // pred_check_branch
          %274 = sbr.rel (%p272) target = $region24
        $region23: #{tpu_custom_call.1} parent=11 // pred_region
          _
        $region24: #{tpu_custom_call.1} parent=11 // pred_fallthru
          _
        // Predicated region
        $region25: #{tpu_custom_call.1} parent=11 // pred_check
          %p275 = pneg %p155
        $region26: #{tpu_custom_call.1} parent=11 // pred_check_branch
          %277 = sbr.rel (%p275) target = $region28
        $region27: #{tpu_custom_call.1} parent=11 // pred_region
          _
        $region28: #{tpu_custom_call.1} parent=11 // pred_fallthru
          _
        // Predicated region
        $region29: #{tpu_custom_call.1} parent=11 // pred_check
          %p278 = pneg %p176
        $region30: #{tpu_custom_call.1} parent=11 // pred_check_branch
          %280 = sbr.rel (%p278) target = $region32
        $region31: #{tpu_custom_call.1} parent=11 // pred_region
          _
        $region32: #{tpu_custom_call.1} parent=11 // pred_fallthru
          _
        // Predicated region
        $region33: #{tpu_custom_call.1} parent=11 // pred_check
          %p281 = pneg %p197
        $region34: #{tpu_custom_call.1} parent=11 // pred_check_branch
          %283 = sbr.rel (%p281) target = $region36
        $region35: #{tpu_custom_call.1} parent=11 // pred_region
          _
        $region36: #{tpu_custom_call.1} parent=11 // pred_fallthru
          _
        // Predicated region
        $region37: #{tpu_custom_call.1} parent=11 // pred_check
          %p284 = pneg %p218
        $region38: #{tpu_custom_call.1} parent=11 // pred_check_branch
          %286 = sbr.rel (%p284) target = $region40
        $region39: #{tpu_custom_call.1} parent=11 // pred_region
          _
        $region40: #{tpu_custom_call.1} parent=11 // pred_fallthru
          _
      $region12: #{tpu_custom_call.1} parent=5 // pred_fallthru
        _
      %p287 = scmp.lt.s32.totalorder %s19, 2
      // Predicated region
      $region41: #{tpu_custom_call.1} parent=5 // pred_check
        %p288 = pneg %p287
      $region42: #{tpu_custom_call.1} parent=5 // pred_check_branch
        %290 = sbr.rel (%p288) target = $region44
      $region43: #{tpu_custom_call.1} parent=5 // pred_region
        // Predicated region
        $region45: #{tpu_custom_call.1} parent=43 // pred_check
          %p291 = pneg %p39
        $region46: #{tpu_custom_call.1} parent=43 // pred_check_branch
          %293 = sbr.rel (%p291) target = $region48
        $region47: #{tpu_custom_call.1} parent=43 // pred_region
          %p294 = scmp.lt.s32.totalorder %s19, 1
          %s295 = scalar_select %p294, %s19, 1
          %s296 = smul.addr %s295, 8
          %s297 = smul.addr %s296, 8
          %s298 = scalar_lea.vmem %s0, %s297
        $region48: #{tpu_custom_call.1} parent=43 // pred_fallthru
          _
        // Predicated region
        $region49: #{tpu_custom_call.1} parent=43 // pred_check
          %p299 = pneg %p65
        $region50: #{tpu_custom_call.1} parent=43 // pred_check_branch
          %301 = sbr.rel (%p299) target = $region52
        $region51: #{tpu_custom_call.1} parent=43 // pred_region
          %p302 = scmp.lt.s32.totalorder %s19, 1
          %s303 = scalar_select %p302, %s19, 1
          %s304 = smul.addr %s303, 8
          %s305 = smul.addr %s304, 8
          %s306 = scalar_lea.vmem %s1, %s305
        $region52: #{tpu_custom_call.1} parent=43 // pred_fallthru
          _
      $region44: #{tpu_custom_call.1} parent=5 // pred_fallthru
        _
      %p307 = scmp.le.s32.totalorder 1, %s19
      %p308 = scmp.lt.s32.totalorder %s19, 3
      %p309 = pnand %p307, %p308
      %p310 = pneg %p309
      // Predicated region
      $region53: #{tpu_custom_call.1} parent=5 // pred_check
        _
      $region54: #{tpu_custom_call.1} parent=5 // pred_check_branch
        %312 = sbr.rel (%p309) target = $region56
      $region55: #{tpu_custom_call.1} parent=5 // pred_region
        %s313 = ssub.s32 %s19, 1
        // Predicated region
        $region57: #{tpu_custom_call.1} parent=55 // pred_check
          %p314 = pneg %p92
        $region58: #{tpu_custom_call.1} parent=55 // pred_check_branch
          %316 = sbr.rel (%p314) target = $region60
        $region59: #{tpu_custom_call.1} parent=55 // pred_region
          %318 = dma.done [#allocation8], 16
        $region60: #{tpu_custom_call.1} parent=55 // pred_fallthru
          _
        %319 = sfence
        %p320 = scmp.lt.s32.totalorder %s24, 1
        %s321 = scalar_select %p320, %s24, 1
        %s322 = smul.addr %s321, 8
        %s323 = smul.addr %s322, 8
        %s324 = scalar_lea.vmem %s0, %s323
        %p325 = pneg %p45
        %p326 = pneg %p42
        %p327 = scmp.lt.s32.totalorder %s24, 1
        %s328 = scalar_select %p327, %s24, 1
        %s329 = smul.addr %s328, 8
        %s330 = smul.addr %s329, 8
        %s331 = scalar_lea.vmem %s1, %s330
        %p332 = pneg %p71
        %p333 = pneg %p68
        %p334 = pneg %p92
        %p335 = pneg %p89
        %p336 = pneg %p113
        %p337 = pneg %p110
        %p338 = pneg %p134
        %p339 = pneg %p131
        %p340 = pneg %p155
        %p341 = pneg %p152
        %p342 = pneg %p176
        %p343 = pneg %p173
        %p344 = pneg %p197
        %p345 = pneg %p194
        %p346 = pneg %p218
        %p347 = pneg %p215
        %p348 = pneg %p244
        %p349 = pneg %p241
        %s350 = sand.u32 %s231, 1
        %s351 = scalar_lea.sflag [#allocation7], %s350
        %s352 = sand.u32 %s231, 1
        %s353 = smul.addr %s352, 64
        %s354 = scalar_lea.vmem [#allocation9], %s353
        %p355 = scmp.lt.s32.totalorder %s24, 1
        %s356 = scalar_select %p355, %s24, 1
        %s357 = smul.addr %s356, 8
        %s358 = smul.addr %s357, 8
        %s359 = scalar_lea.vmem %s0, %s358
        %p360 = scmp.lt.s32.totalorder %s24, 1
        %s361 = scalar_select %p360, %s24, 1
        %s362 = smul.addr %s361, 8
        %s363 = smul.addr %s362, 8
        %s364 = scalar_lea.vmem %s1, %s363
        %vm366 = vcmask 523264
        %367 = vst.msk [vmem:[#allocation2] sm:$0xff] %vm366, 0.0
        %vm368 = vcmask 519168
        %369 = vst.msk [vmem:[#allocation2 + $0x8] sm:$0xf] %vm368, 0.0
        %370 = vst.msk [vmem:[#allocation2 + $0x10] sm:$0xff] %vm366, 0.0
        %371 = vst.msk [vmem:[#allocation2 + $0x18] sm:$0xf] %vm368, 0.0
        %s372 = scalar_lea.vmem [#allocation2], 160
        %373 = vst.msk [vmem:[%s372] sm:$0xff] %vm366, 0.0
        %374 = vst.msk [vmem:[%s372 + $0x8] sm:$0xf] %vm368, 0.0
        %375 = vst.msk [vmem:[%s372 + $0x10] sm:$0xff] %vm366, 0.0
        %376 = vst.msk [vmem:[%s372 + $0x18] sm:$0xf] %vm368, 0.0
        %s377 = scalar_lea.vmem [#allocation2], 32
        %vm378 = vcmask 517120
        %379 = vst.msk [vmem:[%s377] sm:$0x3] %vm378, 0.0
        %380 = vst.msk [vmem:[%s377 + $0x10] sm:$0x3] %vm378, 0.0
        %381 = vst.msk [vmem:[%s377 + $0x20] sm:$0x3] %vm378, 0.0
        %382 = vst.msk [vmem:[%s377 + $0x30] sm:$0x3] %vm378, 0.0
        %383 = vst.msk [vmem:[%s377 + $0x40] sm:$0x3] %vm378, 0.0
        %384 = vst.msk [vmem:[%s377 + $0x50] sm:$0x3] %vm378, 0.0
        %385 = vst.msk [vmem:[%s377 + $0x60] sm:$0x3] %vm378, 0.0
        %386 = vst.msk [vmem:[%s377 + $0x70] sm:$0x3] %vm378, 0.0
        %387 = vst.msk [vmem:[%s377 + $0xa] sm:$0x3] %vm378, 0.0
        %388 = vst.msk [vmem:[%s377 + $0x1a] sm:$0x3] %vm378, 0.0
        %389 = vst.msk [vmem:[%s377 + $0x2a] sm:$0x3] %vm378, 0.0
        %390 = vst.msk [vmem:[%s377 + $0x3a] sm:$0x3] %vm378, 0.0
        %391 = vst.msk [vmem:[%s377 + $0x4a] sm:$0x3] %vm378, 0.0
        %392 = vst.msk [vmem:[%s377 + $0x5a] sm:$0x3] %vm378, 0.0
        %393 = vst.msk [vmem:[%s377 + $0x6a] sm:$0x3] %vm378, 0.0
        %394 = vst.msk [vmem:[%s377 + $0x7a] sm:$0x3] %vm378, 0.0
        %395 = vst.msk [vmem:[#allocation3] sm:$0xff] %vm366, 0.0
        %396 = vst.msk [vmem:[#allocation3 + $0x8] sm:$0xf] %vm368, 0.0
        %397 = vst.msk [vmem:[#allocation3 + $0x10] sm:$0xff] %vm366, 0.0
        %398 = vst.msk [vmem:[#allocation3 + $0x18] sm:$0xf] %vm368, 0.0
        %s399 = scalar_lea.vmem [#allocation3], 160
        %400 = vst.msk [vmem:[%s399] sm:$0xff] %vm366, 0.0
        %401 = vst.msk [vmem:[%s399 + $0x8] sm:$0xf] %vm368, 0.0
        %402 = vst.msk [vmem:[%s399 + $0x10] sm:$0xff] %vm366, 0.0
        %403 = vst.msk [vmem:[%s399 + $0x18] sm:$0xf] %vm368, 0.0
        %s404 = scalar_lea.vmem [#allocation3], 32
        %405 = vst.msk [vmem:[%s404] sm:$0x3] %vm378, 0.0
        %406 = vst.msk [vmem:[%s404 + $0x10] sm:$0x3] %vm378, 0.0
        %407 = vst.msk [vmem:[%s404 + $0x20] sm:$0x3] %vm378, 0.0
        %408 = vst.msk [vmem:[%s404 + $0x30] sm:$0x3] %vm378, 0.0
        %409 = vst.msk [vmem:[%s404 + $0x40] sm:$0x3] %vm378, 0.0
        %410 = vst.msk [vmem:[%s404 + $0x50] sm:$0x3] %vm378, 0.0
        %411 = vst.msk [vmem:[%s404 + $0x60] sm:$0x3] %vm378, 0.0
        %412 = vst.msk [vmem:[%s404 + $0x70] sm:$0x3] %vm378, 0.0
        %413 = vst.msk [vmem:[%s404 + $0xa] sm:$0x3] %vm378, 0.0
        %414 = vst.msk [vmem:[%s404 + $0x1a] sm:$0x3] %vm378, 0.0
        %415 = vst.msk [vmem:[%s404 + $0x2a] sm:$0x3] %vm378, 0.0
        %416 = vst.msk [vmem:[%s404 + $0x3a] sm:$0x3] %vm378, 0.0
        %417 = vst.msk [vmem:[%s404 + $0x4a] sm:$0x3] %vm378, 0.0
        %418 = vst.msk [vmem:[%s404 + $0x5a] sm:$0x3] %vm378, 0.0
        %419 = vst.msk [vmem:[%s404 + $0x6a] sm:$0x3] %vm378, 0.0
        %420 = vst.msk [vmem:[%s404 + $0x7a] sm:$0x3] %vm378, 0.0
        %vm421 = vcmask 80896
        %422 = vst.msk [vmem:[#allocation4] sm:$0xff] %vm421, 0.0
        %vm423 = vcmask 74752
        %424 = vst.msk [vmem:[#allocation4 + $0x8] sm:$0x3] %vm423, 0.0
        %425 = vst.msk [vmem:[#allocation4 + $0x10] sm:$0xff] %vm421, 0.0
        %426 = vst.msk [vmem:[#allocation4 + $0x18] sm:$0x3] %vm423, 0.0
        %v427 = vld [vmem:[%s364] sm:$0xff]
        %v428 = vld [vmem:[%s364 + $0x8] sm:$0xff]
        %v429 = vld [vmem:[%s364 + $0x10] sm:$0xff]
        %v430 = vld [vmem:[%s364 + $0x18] sm:$0xff]
        %v431 = vld [vmem:[%s364 + $0x20] sm:$0xff]
        %v432 = vld [vmem:[%s364 + $0x28] sm:$0xff]
        %v433 = vld [vmem:[%s364 + $0x30] sm:$0xff]
        %v434 = vld [vmem:[%s364 + $0x38] sm:$0xff]
        %v435 = vsel %vm366, %v427, 0.0
        %436 = vadd.xlane.f32.xlu0 %v435
        %v437 = vpop.xlane.xlu0 %436
        %v438 = vsel %vm366, %v428, 0.0
        %439 = vadd.xlane.f32.xlu0 %v438
        %v440 = vpop.xlane.xlu0 %439
        %v441 = vsel %vm366, %v429, 0.0
        %442 = vadd.xlane.f32.xlu0 %v441
        %v443 = vpop.xlane.xlu0 %442
        %v444 = vsel %vm366, %v430, 0.0
        %445 = vadd.xlane.f32.xlu0 %v444
        %v446 = vpop.xlane.xlu0 %445
        %v447 = vsel %vm366, %v431, 0.0
        %448 = vadd.xlane.f32.xlu0 %v447
        %v449 = vpop.xlane.xlu0 %448
        %v450 = vsel %vm366, %v432, 0.0
        %451 = vadd.xlane.f32.xlu0 %v450
        %v452 = vpop.xlane.xlu0 %451
        %v453 = vsel %vm366, %v433, 0.0
        %454 = vadd.xlane.f32.xlu0 %v453
        %v455 = vpop.xlane.xlu0 %454
        %v456 = vsel %vm366, %v434, 0.0
        %457 = vadd.xlane.f32.xlu0 %v456
        %v458 = vpop.xlane.xlu0 %457
        %v459 = vrcp.pop 64.0
        %v460 = vmul.f32 64.0, %v459
        %v461 = vsub.f32 1.0, %v460
        %v462 = vmul.f32 %v459, %v461
        %v463 = vadd.f32 %v459, %v462
        %vm464 = vweird.f32 %v459
        %v465 = vsel %vm464, %v459, %v463
        %v466 = vmul.f32 %v437, %v465
        %v467 = vmul.f32 %v440, %v465
        %v468 = vmul.f32 %v443, %v465
        %v469 = vmul.f32 %v446, %v465
        %v470 = vmul.f32 %v449, %v465
        %v471 = vmul.f32 %v452, %v465
        %v472 = vmul.f32 %v455, %v465
        %v473 = vmul.f32 %v458, %v465
        %v482 = vlaneseq
        %v483 = vand.u32 %v482, 127
        %v484 = vadd.s32 %v483, 4294967295
        %v485 = vperm.slane %v466, %v484
        %v486 = vperm.slane %v467, %v484
        %v487 = vperm.slane %v468, %v484
        %v488 = vperm.slane %v469, %v484
        %v489 = vperm.slane %v470, %v484
        %v490 = vperm.slane %v471, %v484
        %v491 = vperm.slane %v472, %v484
        %v492 = vperm.slane %v473, %v484
        %vm493 = vcmask 1041409
        %v494 = vsel %vm493, %v486, %v485
        %vm495 = vcmask 1042434
        %v496 = vsel %vm495, %v487, %v494
        %vm497 = vcmask 1043459
        %v498 = vsel %vm497, %v488, %v496
        %vm499 = vcmask 1044484
        %v500 = vsel %vm499, %v489, %v498
        %vm501 = vcmask 1045509
        %v502 = vsel %vm501, %v490, %v500
        %vm503 = vcmask 1046534
        %v504 = vsel %vm503, %v491, %v502
        %vm505 = vcmask 1047559
        %v506 = vsel %vm505, %v492, %v504
        %vm508 = vcmask 72712
        %509 = vst.msk [vmem:[#allocation4 + $0x1] sm:$0xff] %vm508, %v506
        %v510 = vsel %vm366, %v427, -inf
        %511 = vmax.xlane.f32.xlu0 %v510
        %v512 = vpop.xlane.xlu0 %511
        %v513 = vsel %vm366, %v428, -inf
        %514 = vmax.xlane.f32.xlu0 %v513
        %v515 = vpop.xlane.xlu0 %514
        %v516 = vsel %vm366, %v429, -inf
        %517 = vmax.xlane.f32.xlu0 %v516
        %v518 = vpop.xlane.xlu0 %517
        %v519 = vsel %vm366, %v430, -inf
        %520 = vmax.xlane.f32.xlu0 %v519
        %v521 = vpop.xlane.xlu0 %520
        %v522 = vsel %vm366, %v431, -inf
        %523 = vmax.xlane.f32.xlu0 %v522
        %v524 = vpop.xlane.xlu0 %523
        %v525 = vsel %vm366, %v432, -inf
        %526 = vmax.xlane.f32.xlu0 %v525
        %v527 = vpop.xlane.xlu0 %526
        %v528 = vsel %vm366, %v433, -inf
        %529 = vmax.xlane.f32.xlu0 %v528
        %v530 = vpop.xlane.xlu0 %529
        %v531 = vsel %vm366, %v434, -inf
        %532 = vmax.xlane.f32.xlu0 %v531
        %v533 = vpop.xlane.xlu0 %532
        %v542 = vperm.slane %v512, %v484
        %v543 = vperm.slane %v515, %v484
        %v544 = vperm.slane %v518, %v484
        %v545 = vperm.slane %v521, %v484
        %v546 = vperm.slane %v524, %v484
        %v547 = vperm.slane %v527, %v484
        %v548 = vperm.slane %v530, %v484
        %v549 = vperm.slane %v533, %v484
        %v550 = vsel %vm493, %v543, %v542
        %v551 = vsel %vm495, %v544, %v550
        %v552 = vsel %vm497, %v545, %v551
        %v553 = vsel %vm499, %v546, %v552
        %v554 = vsel %vm501, %v547, %v553
        %v555 = vsel %vm503, %v548, %v554
        %v556 = vsel %vm505, %v549, %v555
        %s558 = scalar_lea.vmem [#allocation4], 16
        %559 = vst.msk [vmem:[%s558 + $0x1] sm:$0xff] %vm508, %v556
        %v560 = vld [vmem:[#allocation4] sm:$0xff]
        %s561 = sld [smem:[#allocation6]]
        %v562 = vstv %s561
        %v563 = vmul.f32 %v560, %v562
        %v564 = vadd.f32 %v563, 0.0
        %v565 = vld [vmem:[%s558] sm:$0xff]
        %s566 = sld [smem:[#allocation6 + $0x9]]
        %v567 = vstv %s566
        %v568 = vmul.f32 %v565, %v567
        %v569 = vadd.f32 %v564, %v568
        %s570 = sld [smem:[#allocation6 + $0x1]]
        %v571 = vstv %s570
        %v572 = vmul.f32 %v560, %v571
        %574 = vrot.lane.b32.xlu0 %v572, 127
        %v575 = vpop.permute.xlu0 %574
        %v577 = vadd.f32 %v569, %v575
        %s578 = sld [smem:[#allocation6 + $0xa]]
        %v579 = vstv %s578
        %v580 = vmul.f32 %v565, %v579
        %582 = vrot.lane.b32.xlu0 %v580, 127
        %v583 = vpop.permute.xlu0 %582
        %v585 = vadd.f32 %v577, %v583
        %s586 = sld [smem:[#allocation6 + $0x2]]
        %v587 = vstv %s586
        %v588 = vmul.f32 %v560, %v587
        %590 = vrot.lane.b32.xlu0 %v588, 126
        %v591 = vpop.permute.xlu0 %590
        %v593 = vadd.f32 %v585, %v591
        %s594 = sld [smem:[#allocation6 + $0xb]]
        %v595 = vstv %s594
        %v596 = vmul.f32 %v565, %v595
        %598 = vrot.lane.b32.xlu0 %v596, 126
        %v599 = vpop.permute.xlu0 %598
        %v601 = vadd.f32 %v593, %v599
        %v602 = vld [vmem:[#allocation4 + $0x1] sm:$0xff]
        %s603 = sld [smem:[#allocation6 + $0x3]]
        %v604 = vstv %s603
        %v605 = vmul.f32 %v602, %v604
        %v606 = vadd.f32 %v601, %v605
        %v607 = vld [vmem:[%s558 + $0x1] sm:$0xff]
        %s608 = sld [smem:[#allocation6 + $0xc]]
        %v609 = vstv %s608
        %v610 = vmul.f32 %v607, %v609
        %v611 = vadd.f32 %v606, %v610
        %s612 = sld [smem:[#allocation6 + $0x4]]
        %v613 = vstv %s612
        %v614 = vmul.f32 %v602, %v613
        %616 = vrot.lane.b32.xlu0 %v614, 127
        %v617 = vpop.permute.xlu0 %616
        %v619 = vadd.f32 %v611, %v617
        %s620 = sld [smem:[#allocation6 + $0xd]]
        %v621 = vstv %s620
        %v622 = vmul.f32 %v607, %v621
        %624 = vrot.lane.b32.xlu0 %v622, 127
        %v625 = vpop.permute.xlu0 %624
        %v627 = vadd.f32 %v619, %v625
        %s628 = sld [smem:[#allocation6 + $0x5]]
        %v629 = vstv %s628
        %v630 = vmul.f32 %v602, %v629
        %632 = vrot.lane.b32.xlu0 %v630, 126
        %v633 = vpop.permute.xlu0 %632
        %v635 = vadd.f32 %v627, %v633
        %s636 = sld [smem:[#allocation6 + $0xe]]
        %v637 = vstv %s636
        %v638 = vmul.f32 %v607, %v637
        %640 = vrot.lane.b32.xlu0 %v638, 126
        %v641 = vpop.permute.xlu0 %640
        %v643 = vadd.f32 %v635, %v641
        %v644 = vld [vmem:[#allocation4 + $0x2] sm:$0xff]
        %s645 = sld [smem:[#allocation6 + $0x6]]
        %v646 = vstv %s645
        %v647 = vmul.f32 %v644, %v646
        %v648 = vadd.f32 %v643, %v647
        %v649 = vld [vmem:[%s558 + $0x2] sm:$0xff]
        %s650 = sld [smem:[#allocation6 + $0xf]]
        %v651 = vstv %s650
        %v652 = vmul.f32 %v649, %v651
        %v653 = vadd.f32 %v648, %v652
        %s654 = sld [smem:[#allocation6 + $0x7]]
        %v655 = vstv %s654
        %v656 = vmul.f32 %v644, %v655
        %658 = vrot.lane.b32.xlu0 %v656, 127
        %v659 = vpop.permute.xlu0 %658
        %v661 = vadd.f32 %v653, %v659
        %s662 = sld [smem:[#allocation6 + $0x10]]
        %v663 = vstv %s662
        %v664 = vmul.f32 %v649, %v663
        %666 = vrot.lane.b32.xlu0 %v664, 127
        %v667 = vpop.permute.xlu0 %666
        %v669 = vadd.f32 %v661, %v667
        %s670 = sld [smem:[#allocation6 + $0x8]]
        %v671 = vstv %s670
        %v672 = vmul.f32 %v644, %v671
        %674 = vrot.lane.b32.xlu0 %v672, 126
        %v675 = vpop.permute.xlu0 %674
        %v677 = vadd.f32 %v669, %v675
        %s678 = sld [smem:[#allocation6 + $0x11]]
        %v679 = vstv %s678
        %v680 = vmul.f32 %v649, %v679
        %682 = vrot.lane.b32.xlu0 %v680, 126
        %v683 = vpop.permute.xlu0 %682
        %v685 = vadd.f32 %v677, %v683
        %v686 = vxor.u32 %v685, 2147483648
        %v687 = vmul.f32 %v686, 1.442695
        %v688 = vpow.pop %v687
        %v689 = vadd.f32 %v688, 1.0
        %v690 = vrcp.pop %v689
        %v691 = vmul.f32 %v689, %v690
        %v692 = vsub.f32 1.0, %v691
        %v693 = vmul.f32 %v690, %v692
        %v694 = vadd.f32 %v690, %v693
        %vm695 = vweird.f32 %v689
        %vm696 = vweird.f32 %v690
        %vm697 = vmor %vm695, %vm696
        %v698 = vsel %vm697, %v690, %v694
        %v699 = vand.u32 2147483647, %v689
        %vm700 = vcmp.eq.f32.partialorder %v699, 8.507059e+37
        %v701 = vand.u32 %v689, 2147483648
        %v702 = vor.u32 1.1754944e-38, %v701
        %v703 = vsel %vm700, %v702, %v698
        %v704 = vmul.f32 1.0, %v703
        %v705 = vld [vmem:[%s359] sm:$0xff]
        %v706 = vld [vmem:[%s359 + $0x8] sm:$0xff]
        %v707 = vld [vmem:[%s359 + $0x10] sm:$0xff]
        %v708 = vld [vmem:[%s359 + $0x18] sm:$0xff]
        %v709 = vld [vmem:[%s359 + $0x20] sm:$0xff]
        %v710 = vld [vmem:[%s359 + $0x28] sm:$0xff]
        %v711 = vld [vmem:[%s359 + $0x30] sm:$0xff]
        %v712 = vld [vmem:[%s359 + $0x38] sm:$0xff]
        %713 = vst.msk [vmem:[%s377 + $0x2] sm:$0xff] %vm366, %v705
        %714 = vst.msk [vmem:[%s377 + $0x12] sm:$0xff] %vm366, %v706
        %715 = vst.msk [vmem:[%s377 + $0x22] sm:$0xff] %vm366, %v707
        %716 = vst.msk [vmem:[%s377 + $0x32] sm:$0xff] %vm366, %v708
        %717 = vst.msk [vmem:[%s377 + $0x42] sm:$0xff] %vm366, %v709
        %718 = vst.msk [vmem:[%s377 + $0x52] sm:$0xff] %vm366, %v710
        %719 = vst.msk [vmem:[%s377 + $0x62] sm:$0xff] %vm366, %v711
        %720 = vst.msk [vmem:[%s377 + $0x72] sm:$0xff] %vm366, %v712
        %s721 = scalar_lea.vmem [#allocation2], 16
        %v722 = vld [vmem:[%s721 + $0x1] sm:$0xff]
        %v723 = vld [vmem:[%s721 + $0x11] sm:$0xff]
        %v724 = vld [vmem:[%s721 + $0x21] sm:$0xff]
        %v725 = vld [vmem:[%s721 + $0x31] sm:$0xff]
        %v726 = vld [vmem:[%s721 + $0x41] sm:$0xff]
        %v727 = vld [vmem:[%s721 + $0x51] sm:$0xff]
        %v728 = vld [vmem:[%s721 + $0x61] sm:$0xff]
        %v729 = vld [vmem:[%s721 + $0x71] sm:$0xff]
        %v730 = vpack.c.bf16 %v722, %v722
        %v731 = vpack.c.bf16 %v723, %v723
        %v732 = vpack.c.bf16 %v724, %v724
        %v733 = vpack.c.bf16 %v725, %v725
        %v734 = vpack.c.bf16 %v726, %v726
        %v735 = vpack.c.bf16 %v727, %v727
        %v736 = vpack.c.bf16 %v728, %v728
        %v737 = vpack.c.bf16 %v729, %v729
        %738 = vst.msk [vmem:[#allocation5] sm:$0xf] %vm368, %v730
        %739 = vst.msk [vmem:[#allocation5 + $0x14] sm:$0xf] %vm368, %v731
        %740 = vst.msk [vmem:[#allocation5 + $0x28] sm:$0xf] %vm368, %v732
        %741 = vst.msk [vmem:[#allocation5 + $0x3c] sm:$0xf] %vm368, %v733
        %742 = vst.msk [vmem:[#allocation5 + $0x50] sm:$0xf] %vm368, %v734
        %743 = vst.msk [vmem:[#allocation5 + $0x64] sm:$0xf] %vm368, %v735
        %744 = vst.msk [vmem:[#allocation5 + $0x78] sm:$0xf] %vm368, %v736
        %745 = vst.msk [vmem:[#allocation5 + $0x8c] sm:$0xf] %vm368, %v737
        %v746 = vld [vmem:[%s721 + $0x2] sm:$0xff]
        %v747 = vld [vmem:[%s721 + $0x12] sm:$0xff]
        %v748 = vld [vmem:[%s721 + $0x22] sm:$0xff]
        %v749 = vld [vmem:[%s721 + $0x32] sm:$0xff]
        %v750 = vld [vmem:[%s721 + $0x42] sm:$0xff]
        %v751 = vld [vmem:[%s721 + $0x52] sm:$0xff]
        %v752 = vld [vmem:[%s721 + $0x62] sm:$0xff]
        %v753 = vld [vmem:[%s721 + $0x72] sm:$0xff]
        %v754 = vpack.c.bf16 %v746, %v746
        %v755 = vpack.c.bf16 %v747, %v747
        %v756 = vpack.c.bf16 %v748, %v748
        %v757 = vpack.c.bf16 %v749, %v749
        %v758 = vpack.c.bf16 %v750, %v750
        %v759 = vpack.c.bf16 %v751, %v751
        %v760 = vpack.c.bf16 %v752, %v752
        %v761 = vpack.c.bf16 %v753, %v753
        %770 = vrot.lane.b32.xlu0 %v754, 64
        %v771 = vpop.permute.xlu0 %770
        %772 = vrot.lane.b32.xlu0 %v755, 64
        %v773 = vpop.permute.xlu0 %772
        %774 = vrot.lane.b32.xlu0 %v756, 64
        %v775 = vpop.permute.xlu0 %774
        %776 = vrot.lane.b32.xlu0 %v757, 64
        %v777 = vpop.permute.xlu0 %776
        %778 = vrot.lane.b32.xlu0 %v758, 64
        %v779 = vpop.permute.xlu0 %778
        %780 = vrot.lane.b32.xlu0 %v759, 64
        %v781 = vpop.permute.xlu0 %780
        %782 = vrot.lane.b32.xlu0 %v760, 64
        %v783 = vpop.permute.xlu0 %782
        %784 = vrot.lane.b32.xlu0 %v761, 64
        %v785 = vpop.permute.xlu0 %784
        %vm794 = vcmask 1043968
        %795 = vst.msk [vmem:[#allocation5] sm:$0xf] %vm794, %v771
        %796 = vst.msk [vmem:[#allocation5 + $0x14] sm:$0xf] %vm794, %v773
        %797 = vst.msk [vmem:[#allocation5 + $0x28] sm:$0xf] %vm794, %v775
        %798 = vst.msk [vmem:[#allocation5 + $0x3c] sm:$0xf] %vm794, %v777
        %799 = vst.msk [vmem:[#allocation5 + $0x50] sm:$0xf] %vm794, %v779
        %800 = vst.msk [vmem:[#allocation5 + $0x64] sm:$0xf] %vm794, %v781
        %801 = vst.msk [vmem:[#allocation5 + $0x78] sm:$0xf] %vm794, %v783
        %802 = vst.msk [vmem:[#allocation5 + $0x8c] sm:$0xf] %vm794, %v785
        %v803 = vld [vmem:[%s721 + $0x3] sm:$0xff]
        %v804 = vld [vmem:[%s721 + $0x13] sm:$0xff]
        %v805 = vld [vmem:[%s721 + $0x23] sm:$0xff]
        %v806 = vld [vmem:[%s721 + $0x33] sm:$0xff]
        %v807 = vld [vmem:[%s721 + $0x43] sm:$0xff]
        %v808 = vld [vmem:[%s721 + $0x53] sm:$0xff]
        %v809 = vld [vmem:[%s721 + $0x63] sm:$0xff]
        %v810 = vld [vmem:[%s721 + $0x73] sm:$0xff]
        %v811 = vpack.c.bf16 %v803, %v803
        %v812 = vpack.c.bf16 %v804, %v804
        %v813 = vpack.c.bf16 %v805, %v805
        %v814 = vpack.c.bf16 %v806, %v806
        %v815 = vpack.c.bf16 %v807, %v807
        %v816 = vpack.c.bf16 %v808, %v808
        %v817 = vpack.c.bf16 %v809, %v809
        %v818 = vpack.c.bf16 %v810, %v810
        %819 = vst.msk [vmem:[#allocation5 + $0x4] sm:$0xf] %vm368, %v811
        %820 = vst.msk [vmem:[#allocation5 + $0x18] sm:$0xf] %vm368, %v812
        %821 = vst.msk [vmem:[#allocation5 + $0x2c] sm:$0xf] %vm368, %v813
        %822 = vst.msk [vmem:[#allocation5 + $0x40] sm:$0xf] %vm368, %v814
        %823 = vst.msk [vmem:[#allocation5 + $0x54] sm:$0xf] %vm368, %v815
        %824 = vst.msk [vmem:[#allocation5 + $0x68] sm:$0xf] %vm368, %v816
        %825 = vst.msk [vmem:[#allocation5 + $0x7c] sm:$0xf] %vm368, %v817
        %826 = vst.msk [vmem:[#allocation5 + $0x90] sm:$0xf] %vm368, %v818
        %v827 = vld [vmem:[%s377 + $0x1] sm:$0xff]
        %v828 = vld [vmem:[%s377 + $0x11] sm:$0xff]
        %v829 = vld [vmem:[%s377 + $0x21] sm:$0xff]
        %v830 = vld [vmem:[%s377 + $0x31] sm:$0xff]
        %v831 = vld [vmem:[%s377 + $0x41] sm:$0xff]
        %v832 = vld [vmem:[%s377 + $0x51] sm:$0xff]
        %v833 = vld [vmem:[%s377 + $0x61] sm:$0xff]
        %v834 = vld [vmem:[%s377 + $0x71] sm:$0xff]
        %v835 = vpack.c.bf16 %v827, %v827
        %v836 = vpack.c.bf16 %v828, %v828
        %v837 = vpack.c.bf16 %v829, %v829
        %v838 = vpack.c.bf16 %v830, %v830
        %v839 = vpack.c.bf16 %v831, %v831
        %v840 = vpack.c.bf16 %v832, %v832
        %v841 = vpack.c.bf16 %v833, %v833
        %v842 = vpack.c.bf16 %v834, %v834
        %851 = vrot.lane.b32.xlu0 %v835, 64
        %v852 = vpop.permute.xlu0 %851
        %853 = vrot.lane.b32.xlu0 %v836, 64
        %v854 = vpop.permute.xlu0 %853
        %855 = vrot.lane.b32.xlu0 %v837, 64
        %v856 = vpop.permute.xlu0 %855
        %857 = vrot.lane.b32.xlu0 %v838, 64
        %v858 = vpop.permute.xlu0 %857
        %859 = vrot.lane.b32.xlu0 %v839, 64
        %v860 = vpop.permute.xlu0 %859
        %861 = vrot.lane.b32.xlu0 %v840, 64
        %v862 = vpop.permute.xlu0 %861
        %863 = vrot.lane.b32.xlu0 %v841, 64
        %v864 = vpop.permute.xlu0 %863
        %865 = vrot.lane.b32.xlu0 %v842, 64
        %v866 = vpop.permute.xlu0 %865
        %875 = vst.msk [vmem:[#allocation5 + $0x4] sm:$0xf] %vm794, %v852
        %876 = vst.msk [vmem:[#allocation5 + $0x18] sm:$0xf] %vm794, %v854
        %877 = vst.msk [vmem:[#allocation5 + $0x2c] sm:$0xf] %vm794, %v856
        %878 = vst.msk [vmem:[#allocation5 + $0x40] sm:$0xf] %vm794, %v858
        %879 = vst.msk [vmem:[#allocation5 + $0x54] sm:$0xf] %vm794, %v860
        %880 = vst.msk [vmem:[#allocation5 + $0x68] sm:$0xf] %vm794, %v862
        %881 = vst.msk [vmem:[#allocation5 + $0x7c] sm:$0xf] %vm794, %v864
        %882 = vst.msk [vmem:[#allocation5 + $0x90] sm:$0xf] %vm794, %v866
        %v883 = vld [vmem:[%s377 + $0x2] sm:$0xff]
        %v884 = vld [vmem:[%s377 + $0x12] sm:$0xff]
        %v885 = vld [vmem:[%s377 + $0x22] sm:$0xff]
        %v886 = vld [vmem:[%s377 + $0x32] sm:$0xff]
        %v887 = vld [vmem:[%s377 + $0x42] sm:$0xff]
        %v888 = vld [vmem:[%s377 + $0x52] sm:$0xff]
        %v889 = vld [vmem:[%s377 + $0x62] sm:$0xff]
        %v890 = vld [vmem:[%s377 + $0x72] sm:$0xff]
        %v891 = vpack.c.bf16 %v883, %v883
        %v892 = vpack.c.bf16 %v884, %v884
        %v893 = vpack.c.bf16 %v885, %v885
        %v894 = vpack.c.bf16 %v886, %v886
        %v895 = vpack.c.bf16 %v887, %v887
        %v896 = vpack.c.bf16 %v888, %v888
        %v897 = vpack.c.bf16 %v889, %v889
        %v898 = vpack.c.bf16 %v890, %v890
        %899 = vst.msk [vmem:[#allocation5 + $0x8] sm:$0xf] %vm368, %v891
        %900 = vst.msk [vmem:[#allocation5 + $0x1c] sm:$0xf] %vm368, %v892
        %901 = vst.msk [vmem:[#allocation5 + $0x30] sm:$0xf] %vm368, %v893
        %902 = vst.msk [vmem:[#allocation5 + $0x44] sm:$0xf] %vm368, %v894
        %903 = vst.msk [vmem:[#allocation5 + $0x58] sm:$0xf] %vm368, %v895
        %904 = vst.msk [vmem:[#allocation5 + $0x6c] sm:$0xf] %vm368, %v896
        %905 = vst.msk [vmem:[#allocation5 + $0x80] sm:$0xf] %vm368, %v897
        %906 = vst.msk [vmem:[#allocation5 + $0x94] sm:$0xf] %vm368, %v898
        %v907 = vld [vmem:[%s377 + $0x3] sm:$0xff]
        %v908 = vld [vmem:[%s377 + $0x13] sm:$0xff]
        %v909 = vld [vmem:[%s377 + $0x23] sm:$0xff]
        %v910 = vld [vmem:[%s377 + $0x33] sm:$0xff]
        %v911 = vld [vmem:[%s377 + $0x43] sm:$0xff]
        %v912 = vld [vmem:[%s377 + $0x53] sm:$0xff]
        %v913 = vld [vmem:[%s377 + $0x63] sm:$0xff]
        %v914 = vld [vmem:[%s377 + $0x73] sm:$0xff]
        %v915 = vpack.c.bf16 %v907, %v907
        %v916 = vpack.c.bf16 %v908, %v908
        %v917 = vpack.c.bf16 %v909, %v909
        %v918 = vpack.c.bf16 %v910, %v910
        %v919 = vpack.c.bf16 %v911, %v911
        %v920 = vpack.c.bf16 %v912, %v912
        %v921 = vpack.c.bf16 %v913, %v913
        %v922 = vpack.c.bf16 %v914, %v914
        %931 = vrot.lane.b32.xlu0 %v915, 64
        %v932 = vpop.permute.xlu0 %931
        %933 = vrot.lane.b32.xlu0 %v916, 64
        %v934 = vpop.permute.xlu0 %933
        %935 = vrot.lane.b32.xlu0 %v917, 64
        %v936 = vpop.permute.xlu0 %935
        %937 = vrot.lane.b32.xlu0 %v918, 64
        %v938 = vpop.permute.xlu0 %937
        %939 = vrot.lane.b32.xlu0 %v919, 64
        %v940 = vpop.permute.xlu0 %939
        %941 = vrot.lane.b32.xlu0 %v920, 64
        %v942 = vpop.permute.xlu0 %941
        %943 = vrot.lane.b32.xlu0 %v921, 64
        %v944 = vpop.permute.xlu0 %943
        %945 = vrot.lane.b32.xlu0 %v922, 64
        %v946 = vpop.permute.xlu0 %945
        %955 = vst.msk [vmem:[#allocation5 + $0x8] sm:$0xf] %vm794, %v932
        %956 = vst.msk [vmem:[#allocation5 + $0x1c] sm:$0xf] %vm794, %v934
        %957 = vst.msk [vmem:[#allocation5 + $0x30] sm:$0xf] %vm794, %v936
        %958 = vst.msk [vmem:[#allocation5 + $0x44] sm:$0xf] %vm794, %v938
        %959 = vst.msk [vmem:[#allocation5 + $0x58] sm:$0xf] %vm794, %v940
        %960 = vst.msk [vmem:[#allocation5 + $0x6c] sm:$0xf] %vm794, %v942
        %961 = vst.msk [vmem:[#allocation5 + $0x80] sm:$0xf] %vm794, %v944
        %962 = vst.msk [vmem:[#allocation5 + $0x94] sm:$0xf] %vm794, %v946
        %s963 = scalar_lea.vmem [#allocation2], 48
        %v964 = vld [vmem:[%s963 + $0x1] sm:$0xff]
        %v965 = vld [vmem:[%s963 + $0x11] sm:$0xff]
        %v966 = vld [vmem:[%s963 + $0x21] sm:$0xff]
        %v967 = vld [vmem:[%s963 + $0x31] sm:$0xff]
        %v968 = vld [vmem:[%s963 + $0x41] sm:$0xff]
        %v969 = vld [vmem:[%s963 + $0x51] sm:$0xff]
        %v970 = vld [vmem:[%s963 + $0x61] sm:$0xff]
        %v971 = vld [vmem:[%s963 + $0x71] sm:$0xff]
        %v972 = vpack.c.bf16 %v964, %v964
        %v973 = vpack.c.bf16 %v965, %v965
        %v974 = vpack.c.bf16 %v966, %v966
        %v975 = vpack.c.bf16 %v967, %v967
        %v976 = vpack.c.bf16 %v968, %v968
        %v977 = vpack.c.bf16 %v969, %v969
        %v978 = vpack.c.bf16 %v970, %v970
        %v979 = vpack.c.bf16 %v971, %v971
        %980 = vst.msk [vmem:[#allocation5 + $0xc] sm:$0xf] %vm368, %v972
        %981 = vst.msk [vmem:[#allocation5 + $0x20] sm:$0xf] %vm368, %v973
        %982 = vst.msk [vmem:[#allocation5 + $0x34] sm:$0xf] %vm368, %v974
        %983 = vst.msk [vmem:[#allocation5 + $0x48] sm:$0xf] %vm368, %v975
        %984 = vst.msk [vmem:[#allocation5 + $0x5c] sm:$0xf] %vm368, %v976
        %985 = vst.msk [vmem:[#allocation5 + $0x70] sm:$0xf] %vm368, %v977
        %986 = vst.msk [vmem:[#allocation5 + $0x84] sm:$0xf] %vm368, %v978
        %987 = vst.msk [vmem:[#allocation5 + $0x98] sm:$0xf] %vm368, %v979
        %v988 = vld [vmem:[%s963 + $0x2] sm:$0xff]
        %v989 = vld [vmem:[%s963 + $0x12] sm:$0xff]
        %v990 = vld [vmem:[%s963 + $0x22] sm:$0xff]
        %v991 = vld [vmem:[%s963 + $0x32] sm:$0xff]
        %v992 = vld [vmem:[%s963 + $0x42] sm:$0xff]
        %v993 = vld [vmem:[%s963 + $0x52] sm:$0xff]
        %v994 = vld [vmem:[%s963 + $0x62] sm:$0xff]
        %v995 = vld [vmem:[%s963 + $0x72] sm:$0xff]
        %v996 = vpack.c.bf16 %v988, %v988
        %v997 = vpack.c.bf16 %v989, %v989
        %v998 = vpack.c.bf16 %v990, %v990
        %v999 = vpack.c.bf16 %v991, %v991
        %v1000 = vpack.c.bf16 %v992, %v992
        %v1001 = vpack.c.bf16 %v993, %v993
        %v1002 = vpack.c.bf16 %v994, %v994
        %v1003 = vpack.c.bf16 %v995, %v995
        %1012 = vrot.lane.b32.xlu0 %v996, 64
        %v1013 = vpop.permute.xlu0 %1012
        %1014 = vrot.lane.b32.xlu0 %v997, 64
        %v1015 = vpop.permute.xlu0 %1014
        %1016 = vrot.lane.b32.xlu0 %v998, 64
        %v1017 = vpop.permute.xlu0 %1016
        %1018 = vrot.lane.b32.xlu0 %v999, 64
        %v1019 = vpop.permute.xlu0 %1018
        %1020 = vrot.lane.b32.xlu0 %v1000, 64
        %v1021 = vpop.permute.xlu0 %1020
        %1022 = vrot.lane.b32.xlu0 %v1001, 64
        %v1023 = vpop.permute.xlu0 %1022
        %1024 = vrot.lane.b32.xlu0 %v1002, 64
        %v1025 = vpop.permute.xlu0 %1024
        %1026 = vrot.lane.b32.xlu0 %v1003, 64
        %v1027 = vpop.permute.xlu0 %1026
        %1036 = vst.msk [vmem:[#allocation5 + $0xc] sm:$0xf] %vm794, %v1013
        %1037 = vst.msk [vmem:[#allocation5 + $0x20] sm:$0xf] %vm794, %v1015
        %1038 = vst.msk [vmem:[#allocation5 + $0x34] sm:$0xf] %vm794, %v1017
        %1039 = vst.msk [vmem:[#allocation5 + $0x48] sm:$0xf] %vm794, %v1019
        %1040 = vst.msk [vmem:[#allocation5 + $0x5c] sm:$0xf] %vm794, %v1021
        %1041 = vst.msk [vmem:[#allocation5 + $0x70] sm:$0xf] %vm794, %v1023
        %1042 = vst.msk [vmem:[#allocation5 + $0x84] sm:$0xf] %vm794, %v1025
        %1043 = vst.msk [vmem:[#allocation5 + $0x98] sm:$0xf] %vm794, %v1027
        %v1044 = vld [vmem:[%s963 + $0x3] sm:$0xff]
        %v1045 = vld [vmem:[%s963 + $0x13] sm:$0xff]
        %v1046 = vld [vmem:[%s963 + $0x23] sm:$0xff]
        %v1047 = vld [vmem:[%s963 + $0x33] sm:$0xff]
        %v1048 = vld [vmem:[%s963 + $0x43] sm:$0xff]
        %v1049 = vld [vmem:[%s963 + $0x53] sm:$0xff]
        %v1050 = vld [vmem:[%s963 + $0x63] sm:$0xff]
        %v1051 = vld [vmem:[%s963 + $0x73] sm:$0xff]
        %v1052 = vpack.c.bf16 %v1044, %v1044
        %v1053 = vpack.c.bf16 %v1045, %v1045
        %v1054 = vpack.c.bf16 %v1046, %v1046
        %v1055 = vpack.c.bf16 %v1047, %v1047
        %v1056 = vpack.c.bf16 %v1048, %v1048
        %v1057 = vpack.c.bf16 %v1049, %v1049
        %v1058 = vpack.c.bf16 %v1050, %v1050
        %v1059 = vpack.c.bf16 %v1051, %v1051
        %1060 = vst.msk [vmem:[#allocation5 + $0x10] sm:$0xf] %vm368, %v1052
        %1061 = vst.msk [vmem:[#allocation5 + $0x24] sm:$0xf] %vm368, %v1053
        %1062 = vst.msk [vmem:[#allocation5 + $0x38] sm:$0xf] %vm368, %v1054
        %1063 = vst.msk [vmem:[#allocation5 + $0x4c] sm:$0xf] %vm368, %v1055
        %1064 = vst.msk [vmem:[#allocation5 + $0x60] sm:$0xf] %vm368, %v1056
        %1065 = vst.msk [vmem:[#allocation5 + $0x74] sm:$0xf] %vm368, %v1057
        %1066 = vst.msk [vmem:[#allocation5 + $0x88] sm:$0xf] %vm368, %v1058
        %1067 = vst.msk [vmem:[#allocation5 + $0x9c] sm:$0xf] %vm368, %v1059
        %v1068 = vld [vmem:[#allocation5] sm:$0xff]
        %v1069 = vld [vmem:[#allocation5 + $0x8] sm:$0xff]
        %v1070 = vld [vmem:[#allocation5 + $0x10] sm:$0xf]
        %v1071 = vld [vmem:[#allocation5 + $0x14] sm:$0xff]
        %v1072 = vld [vmem:[#allocation5 + $0x1c] sm:$0xff]
        %v1073 = vld [vmem:[#allocation5 + $0x24] sm:$0xf]
        %v1074 = vld [vmem:[#allocation5 + $0x28] sm:$0xff]
        %v1075 = vld [vmem:[#allocation5 + $0x30] sm:$0xff]
        %v1076 = vld [vmem:[#allocation5 + $0x38] sm:$0xf]
        %v1077 = vld [vmem:[#allocation5 + $0x3c] sm:$0xff]
        %v1078 = vld [vmem:[#allocation5 + $0x44] sm:$0xff]
        %v1079 = vld [vmem:[#allocation5 + $0x4c] sm:$0xf]
        %v1080 = vld [vmem:[#allocation5 + $0x50] sm:$0xff]
        %v1081 = vld [vmem:[#allocation5 + $0x58] sm:$0xff]
        %v1082 = vld [vmem:[#allocation5 + $0x60] sm:$0xf]
        %v1083 = vld [vmem:[#allocation5 + $0x64] sm:$0xff]
        %v1084 = vld [vmem:[#allocation5 + $0x6c] sm:$0xff]
        %v1085 = vld [vmem:[#allocation5 + $0x74] sm:$0xf]
        %v1086 = vld [vmem:[#allocation5 + $0x78] sm:$0xff]
        %v1087 = vld [vmem:[#allocation5 + $0x80] sm:$0xff]
        %v1088 = vld [vmem:[#allocation5 + $0x88] sm:$0xf]
        %v1089 = vld [vmem:[#allocation5 + $0x8c] sm:$0xff]
        %v1090 = vld [vmem:[#allocation5 + $0x94] sm:$0xff]
        %v1091 = vld [vmem:[#allocation5 + $0x9c] sm:$0xf]
        %v1092 = vld [vmem:[%s3] sm:$0xf]
        %v1093 = vld [vmem:[%s3 + $0x4] sm:$0xf]
        %v1094 = vld [vmem:[%s3 + $0x8] sm:$0xf]
        %v1095 = vld [vmem:[%s3 + $0xc] sm:$0xf]
        %v1096 = vld [vmem:[%s3 + $0x10] sm:$0xf]
        %v1097 = vld [vmem:[%s3 + $0x14] sm:$0xf]
        %v1098 = vld [vmem:[%s3 + $0x18] sm:$0xf]
        %v1099 = vld [vmem:[%s3 + $0x1c] sm:$0xf]
        %v1100 = vld [vmem:[%s3 + $0x20] sm:$0xf]
        %v1101 = vld [vmem:[%s3 + $0x24] sm:$0xf]
        %v1102 = vld [vmem:[%s3 + $0x28] sm:$0xf]
        %v1103 = vld [vmem:[%s3 + $0x2c] sm:$0xf]
        %v1104 = vld [vmem:[%s3 + $0x30] sm:$0xf]
        %v1105 = vld [vmem:[%s3 + $0x34] sm:$0xf]
        %v1106 = vld [vmem:[%s3 + $0x38] sm:$0xf]
        %v1107 = vld [vmem:[%s3 + $0x3c] sm:$0xf]
        %v1108 = vld [vmem:[%s3 + $0x40] sm:$0xf]
        %v1109 = vld [vmem:[%s3 + $0x44] sm:$0xf]
        %v1110 = vld [vmem:[%s3 + $0x48] sm:$0xf]
        %v1111 = vld [vmem:[%s3 + $0x4c] sm:$0xf]
        %v1112 = vld [vmem:[%s3 + $0x50] sm:$0xf]
        %v1113 = vld [vmem:[%s3 + $0x54] sm:$0xf]
        %v1114 = vld [vmem:[%s3 + $0x58] sm:$0xf]
        %v1115 = vld [vmem:[%s3 + $0x5c] sm:$0xf]
        %v1116 = vld [vmem:[%s3 + $0x60] sm:$0xf]
        %v1117 = vld [vmem:[%s3 + $0x64] sm:$0xf]
        %v1118 = vld [vmem:[%s3 + $0x68] sm:$0xf]
        %v1119 = vld [vmem:[%s3 + $0x6c] sm:$0xf]
        %v1120 = vld [vmem:[%s3 + $0x70] sm:$0xf]
        %v1121 = vld [vmem:[%s3 + $0x74] sm:$0xf]
        %v1122 = vld [vmem:[%s3 + $0x78] sm:$0xf]
        %v1123 = vld [vmem:[%s3 + $0x7c] sm:$0xf]
        %v1124 = vld [vmem:[%s3 + $0x80] sm:$0xf]
        %v1125 = vld [vmem:[%s3 + $0x84] sm:$0xf]
        %v1126 = vld [vmem:[%s3 + $0x88] sm:$0xf]
        %v1127 = vld [vmem:[%s3 + $0x8c] sm:$0xf]
        %v1128 = vld [vmem:[%s3 + $0x90] sm:$0xf]
        %v1129 = vld [vmem:[%s3 + $0x94] sm:$0xf]
        %v1130 = vld [vmem:[%s3 + $0x98] sm:$0xf]
        %v1131 = vld [vmem:[%s3 + $0x9c] sm:$0xf]
        %v1132 = vld [vmem:[%s3 + $0xa0] sm:$0xf]
        %v1133 = vld [vmem:[%s3 + $0xa4] sm:$0xf]
        %v1134 = vld [vmem:[%s3 + $0xa8] sm:$0xf]
        %v1135 = vld [vmem:[%s3 + $0xac] sm:$0xf]
        %v1136 = vld [vmem:[%s3 + $0xb0] sm:$0xf]
        %v1137 = vld [vmem:[%s3 + $0xb4] sm:$0xf]
        %v1138 = vld [vmem:[%s3 + $0xb8] sm:$0xf]
        %v1139 = vld [vmem:[%s3 + $0xbc] sm:$0xf]
        %v1140 = vld [vmem:[%s3 + $0xc0] sm:$0xf]
        %v1141 = vld [vmem:[%s3 + $0xc4] sm:$0xf]
        %v1142 = vld [vmem:[%s3 + $0xc8] sm:$0xf]
        %v1143 = vld [vmem:[%s3 + $0xcc] sm:$0xf]
        %v1144 = vld [vmem:[%s3 + $0xd0] sm:$0xf]
        %v1145 = vld [vmem:[%s3 + $0xd4] sm:$0xf]
        %v1146 = vld [vmem:[%s3 + $0xd8] sm:$0xf]
        %v1147 = vld [vmem:[%s3 + $0xdc] sm:$0xf]
        %v1148 = vld [vmem:[%s3 + $0xe0] sm:$0xf]
        %v1149 = vld [vmem:[%s3 + $0xe4] sm:$0xf]
        %v1150 = vld [vmem:[%s3 + $0xe8] sm:$0xf]
        %v1151 = vld [vmem:[%s3 + $0xec] sm:$0xf]
        %v1152 = vld [vmem:[%s3 + $0xf0] sm:$0xf]
        %v1153 = vld [vmem:[%s3 + $0xf4] sm:$0xf]
        %v1154 = vld [vmem:[%s3 + $0xf8] sm:$0xf]
        %v1155 = vld [vmem:[%s3 + $0xfc] sm:$0xf]
        %v1156 = vld [vmem:[%s3 + $0x100] sm:$0xf]
        %v1157 = vld [vmem:[%s3 + $0x104] sm:$0xf]
        %v1158 = vld [vmem:[%s3 + $0x108] sm:$0xf]
        %v1159 = vld [vmem:[%s3 + $0x10c] sm:$0xf]
        %v1160 = vld [vmem:[%s3 + $0x110] sm:$0xf]
        %v1161 = vld [vmem:[%s3 + $0x114] sm:$0xf]
        %v1162 = vld [vmem:[%s3 + $0x118] sm:$0xf]
        %v1163 = vld [vmem:[%s3 + $0x11c] sm:$0xf]
        %v1164 = vld [vmem:[%s4] sm:$0x1]
        %v1166 = vperm.slane %v1164, 0
        %v1192 = vunpack.c.l.b16 %v1068
        %v1193 = vunpack.c.h.b16 %v1068
        %v1194 = vunpack.c.l.b16 %v1069
        %v1195 = vunpack.c.h.b16 %v1069
        %v1196 = vunpack.c.l.b16 %v1070
        %v1197 = vunpack.c.l.b16 %v1071
        %v1198 = vunpack.c.h.b16 %v1071
        %v1199 = vunpack.c.l.b16 %v1072
        %v1200 = vunpack.c.h.b16 %v1072
        %v1201 = vunpack.c.l.b16 %v1073
        %v1202 = vunpack.c.l.b16 %v1074
        %v1203 = vunpack.c.h.b16 %v1074
        %v1204 = vunpack.c.l.b16 %v1075
        %v1205 = vunpack.c.h.b16 %v1075
        %v1206 = vunpack.c.l.b16 %v1076
        %v1207 = vunpack.c.l.b16 %v1077
        %v1208 = vunpack.c.h.b16 %v1077
        %v1209 = vunpack.c.l.b16 %v1078
        %v1210 = vunpack.c.h.b16 %v1078
        %v1211 = vunpack.c.l.b16 %v1079
        %v1212 = vunpack.c.l.b16 %v1080
        %v1213 = vunpack.c.h.b16 %v1080
        %v1214 = vunpack.c.l.b16 %v1081
        %v1215 = vunpack.c.h.b16 %v1081
        %v1216 = vunpack.c.l.b16 %v1082
        %v1217 = vunpack.c.l.b16 %v1083
        %v1218 = vunpack.c.h.b16 %v1083
        %v1219 = vunpack.c.l.b16 %v1084
        %v1220 = vunpack.c.h.b16 %v1084
        %v1221 = vunpack.c.l.b16 %v1085
        %v1222 = vunpack.c.l.b16 %v1086
        %v1223 = vunpack.c.h.b16 %v1086
        %v1224 = vunpack.c.l.b16 %v1087
        %v1225 = vunpack.c.h.b16 %v1087
        %v1226 = vunpack.c.l.b16 %v1088
        %v1227 = vunpack.c.l.b16 %v1089
        %v1228 = vunpack.c.h.b16 %v1089
        %v1229 = vunpack.c.l.b16 %v1090
        %v1230 = vunpack.c.h.b16 %v1090
        %v1231 = vunpack.c.l.b16 %v1091
        %v1232 = vpack.c.b16 %v1197, %v1192
        %v1233 = vpack.c.b16 %v1198, %v1193
        %v1234 = vpack.c.b16 %v1199, %v1194
        %v1235 = vpack.c.b16 %v1200, %v1195
        %v1236 = vpack.c.b16 %v1201, %v1196
        %v1237 = vpack.c.b16 %v1207, %v1202
        %v1238 = vpack.c.b16 %v1208, %v1203
        %v1239 = vpack.c.b16 %v1209, %v1204
        %v1240 = vpack.c.b16 %v1210, %v1205
        %v1241 = vpack.c.b16 %v1211, %v1206
        %v1242 = vpack.c.b16 %v1217, %v1212
        %v1243 = vpack.c.b16 %v1218, %v1213
        %v1244 = vpack.c.b16 %v1219, %v1214
        %v1245 = vpack.c.b16 %v1220, %v1215
        %v1246 = vpack.c.b16 %v1221, %v1216
        %v1247 = vpack.c.b16 %v1227, %v1222
        %v1248 = vpack.c.b16 %v1228, %v1223
        %v1249 = vpack.c.b16 %v1229, %v1224
        %v1250 = vpack.c.b16 %v1230, %v1225
        %v1251 = vpack.c.b16 %v1231, %v1226
        %v1340 = vunpack.c.l.b16 %v1092
        %v1341 = vunpack.c.l.b16 %v1093
        %v1342 = vunpack.c.l.b16 %v1094
        %v1343 = vunpack.c.l.b16 %v1095
        %v1344 = vunpack.c.l.b16 %v1096
        %v1345 = vunpack.c.l.b16 %v1097
        %v1346 = vunpack.c.l.b16 %v1098
        %v1347 = vunpack.c.l.b16 %v1099
        %v1348 = vunpack.c.l.b16 %v1100
        %v1349 = vunpack.c.l.b16 %v1101
        %v1350 = vunpack.c.l.b16 %v1102
        %v1351 = vunpack.c.l.b16 %v1103
        %v1352 = vunpack.c.l.b16 %v1104
        %v1353 = vunpack.c.l.b16 %v1105
        %v1354 = vunpack.c.l.b16 %v1106
        %v1355 = vunpack.c.l.b16 %v1107
        %v1356 = vunpack.c.l.b16 %v1108
        %v1357 = vunpack.c.l.b16 %v1109
        %v1358 = vunpack.c.l.b16 %v1110
        %v1359 = vunpack.c.l.b16 %v1111
        %v1360 = vunpack.c.l.b16 %v1112
        %v1361 = vunpack.c.l.b16 %v1113
        %v1362 = vunpack.c.l.b16 %v1114
        %v1363 = vunpack.c.l.b16 %v1115
        %v1364 = vunpack.c.l.b16 %v1116
        %v1365 = vunpack.c.l.b16 %v1117
        %v1366 = vunpack.c.l.b16 %v1118
        %v1367 = vunpack.c.l.b16 %v1119
        %v1368 = vunpack.c.l.b16 %v1120
        %v1369 = vunpack.c.l.b16 %v1121
        %v1370 = vunpack.c.l.b16 %v1122
        %v1371 = vunpack.c.l.b16 %v1123
        %v1372 = vunpack.c.l.b16 %v1124
        %v1373 = vunpack.c.l.b16 %v1125
        %v1374 = vunpack.c.l.b16 %v1126
        %v1375 = vunpack.c.l.b16 %v1127
        %v1376 = vunpack.c.l.b16 %v1128
        %v1377 = vunpack.c.l.b16 %v1129
        %v1378 = vunpack.c.l.b16 %v1130
        %v1379 = vunpack.c.l.b16 %v1131
        %v1380 = vunpack.c.l.b16 %v1132
        %v1381 = vunpack.c.l.b16 %v1133
        %v1382 = vunpack.c.l.b16 %v1134
        %v1383 = vunpack.c.l.b16 %v1135
        %v1384 = vunpack.c.l.b16 %v1136
        %v1385 = vunpack.c.l.b16 %v1137
        %v1386 = vunpack.c.l.b16 %v1138
        %v1387 = vunpack.c.l.b16 %v1139
        %v1388 = vunpack.c.l.b16 %v1140
        %v1389 = vunpack.c.l.b16 %v1141
        %v1390 = vunpack.c.l.b16 %v1142
        %v1391 = vunpack.c.l.b16 %v1143
        %v1392 = vunpack.c.l.b16 %v1144
        %v1393 = vunpack.c.l.b16 %v1145
        %v1394 = vunpack.c.l.b16 %v1146
        %v1395 = vunpack.c.l.b16 %v1147
        %v1396 = vunpack.c.l.b16 %v1148
        %v1397 = vunpack.c.l.b16 %v1149
        %v1398 = vunpack.c.l.b16 %v1150
        %v1399 = vunpack.c.l.b16 %v1151
        %v1400 = vunpack.c.l.b16 %v1152
        %v1401 = vunpack.c.l.b16 %v1153
        %v1402 = vunpack.c.l.b16 %v1154
        %v1403 = vunpack.c.l.b16 %v1155
        %v1404 = vunpack.c.l.b16 %v1156
        %v1405 = vunpack.c.l.b16 %v1157
        %v1406 = vunpack.c.l.b16 %v1158
        %v1407 = vunpack.c.l.b16 %v1159
        %v1408 = vunpack.c.l.b16 %v1160
        %v1409 = vunpack.c.l.b16 %v1161
        %v1410 = vunpack.c.l.b16 %v1162
        %v1411 = vunpack.c.l.b16 %v1163
        %v1412 = vpack.c.b16 %v1341, %v1340
        %v1413 = vpack.c.b16 %v1343, %v1342
        %v1414 = vpack.c.b16 %v1345, %v1344
        %v1415 = vpack.c.b16 %v1347, %v1346
        %v1416 = vpack.c.b16 %v1349, %v1348
        %v1417 = vpack.c.b16 %v1351, %v1350
        %v1418 = vpack.c.b16 %v1353, %v1352
        %v1419 = vpack.c.b16 %v1355, %v1354
        %v1420 = vpack.c.b16 %v1357, %v1356
        %v1421 = vpack.c.b16 %v1359, %v1358
        %v1422 = vpack.c.b16 %v1361, %v1360
        %v1423 = vpack.c.b16 %v1363, %v1362
        %v1424 = vpack.c.b16 %v1365, %v1364
        %v1425 = vpack.c.b16 %v1367, %v1366
        %v1426 = vpack.c.b16 %v1369, %v1368
        %v1427 = vpack.c.b16 %v1371, %v1370
        %v1428 = vpack.c.b16 %v1373, %v1372
        %v1429 = vpack.c.b16 %v1375, %v1374
        %v1430 = vpack.c.b16 %v1377, %v1376
        %v1431 = vpack.c.b16 %v1379, %v1378
        %v1432 = vpack.c.b16 %v1381, %v1380
        %v1433 = vpack.c.b16 %v1383, %v1382
        %v1434 = vpack.c.b16 %v1385, %v1384
        %v1435 = vpack.c.b16 %v1387, %v1386
        %v1436 = vpack.c.b16 %v1389, %v1388
        %v1437 = vpack.c.b16 %v1391, %v1390
        %v1438 = vpack.c.b16 %v1393, %v1392
        %v1439 = vpack.c.b16 %v1395, %v1394
        %v1440 = vpack.c.b16 %v1397, %v1396
        %v1441 = vpack.c.b16 %v1399, %v1398
        %v1442 = vpack.c.b16 %v1401, %v1400
        %v1443 = vpack.c.b16 %v1403, %v1402
        %v1444 = vpack.c.b16 %v1405, %v1404
        %v1445 = vpack.c.b16 %v1407, %v1406
        %v1446 = vpack.c.b16 %v1409, %v1408
        %v1447 = vpack.c.b16 %v1411, %v1410
        %v1485 = vsel %vm366, %v1236, 0
        %v1488 = vsel %vm366, %v1241, 0
        %v1491 = vsel %vm366, %v1246, 0
        %v1494 = vsel %vm366, %v1251, 0
        %1496 = vmatpush.bf16.msra.mxu0 %v1419
        %1497 = vmatpush.bf16.msra.mxu0 %v1418
        %1498 = vmatpush.bf16.msra.mxu0 %v1417
        %1499 = vmatpush.bf16.msra.mxu0 %v1416
        %1500 = vmatpush.bf16.msra.mxu0 %v1415
        %1501 = vmatpush.bf16.msra.mxu0 %v1414
        %1502 = vmatpush.bf16.msra.mxu0 %v1413
        %1503 = vmatpush.bf16.msra.mxu0 %v1412
        %1504 = vmatmul.bf16.gmra.mxu0 %v1232
        %v1505 = vpop.f32.mrf.mxu0
        %v1506 = vadd.f32 %v1166, %v1505
        %v1507 = vpop.f32.mrf.mxu0
        %v1508 = vadd.f32 %v1166, %v1507
        %1509 = vmatmul.bf16.gmra.mxu0 %v1237
        %v1510 = vpop.f32.mrf.mxu0
        %v1511 = vadd.f32 %v1166, %v1510
        %v1512 = vpop.f32.mrf.mxu0
        %v1513 = vadd.f32 %v1166, %v1512
        %1514 = vmatmul.bf16.gmra.mxu0 %v1242
        %v1515 = vpop.f32.mrf.mxu0
        %v1516 = vadd.f32 %v1166, %v1515
        %v1517 = vpop.f32.mrf.mxu0
        %v1518 = vadd.f32 %v1166, %v1517
        %1519 = vmatmul.bf16.gmra.mxu0 %v1247
        %v1520 = vpop.f32.mrf.mxu0
        %v1521 = vadd.f32 %v1166, %v1520
        %v1522 = vpop.f32.mrf.mxu0
        %v1523 = vadd.f32 %v1166, %v1522
        %1524 = vdwg.mxu0
        %1525 = vmatpush.bf16.msra.mxu0 %v1427
        %1526 = vmatpush.bf16.msra.mxu0 %v1426
        %1527 = vmatpush.bf16.msra.mxu0 %v1425
        %1528 = vmatpush.bf16.msra.mxu0 %v1424
        %1529 = vmatpush.bf16.msra.mxu0 %v1423
        %1530 = vmatpush.bf16.msra.mxu0 %v1422
        %1531 = vmatpush.bf16.msra.mxu0 %v1421
        %1532 = vmatpush.bf16.msra.mxu0 %v1420
        %1533 = vmatmul.bf16.gmra.mxu0 %v1233
        %v1534 = vpop.f32.mrf.mxu0
        %v1535 = vadd.f32 %v1506, %v1534
        %v1536 = vpop.f32.mrf.mxu0
        %v1537 = vadd.f32 %v1508, %v1536
        %1538 = vmatmul.bf16.gmra.mxu0 %v1238
        %v1539 = vpop.f32.mrf.mxu0
        %v1540 = vadd.f32 %v1511, %v1539
        %v1541 = vpop.f32.mrf.mxu0
        %v1542 = vadd.f32 %v1513, %v1541
        %1543 = vmatmul.bf16.gmra.mxu0 %v1243
        %v1544 = vpop.f32.mrf.mxu0
        %v1545 = vadd.f32 %v1516, %v1544
        %v1546 = vpop.f32.mrf.mxu0
        %v1547 = vadd.f32 %v1518, %v1546
        %1548 = vmatmul.bf16.gmra.mxu0 %v1248
        %v1549 = vpop.f32.mrf.mxu0
        %v1550 = vadd.f32 %v1521, %v1549
        %v1551 = vpop.f32.mrf.mxu0
        %v1552 = vadd.f32 %v1523, %v1551
        %1553 = vdwg.mxu0
        %1554 = vmatpush.bf16.msra.mxu0 %v1435
        %1555 = vmatpush.bf16.msra.mxu0 %v1434
        %1556 = vmatpush.bf16.msra.mxu0 %v1433
        %1557 = vmatpush.bf16.msra.mxu0 %v1432
        %1558 = vmatpush.bf16.msra.mxu0 %v1431
        %1559 = vmatpush.bf16.msra.mxu0 %v1430
        %1560 = vmatpush.bf16.msra.mxu0 %v1429
        %1561 = vmatpush.bf16.msra.mxu0 %v1428
        %1562 = vmatmul.bf16.gmra.mxu0 %v1234
        %v1563 = vpop.f32.mrf.mxu0
        %v1564 = vadd.f32 %v1535, %v1563
        %v1565 = vpop.f32.mrf.mxu0
        %v1566 = vadd.f32 %v1537, %v1565
        %1567 = vmatmul.bf16.gmra.mxu0 %v1239
        %v1568 = vpop.f32.mrf.mxu0
        %v1569 = vadd.f32 %v1540, %v1568
        %v1570 = vpop.f32.mrf.mxu0
        %v1571 = vadd.f32 %v1542, %v1570
        %1572 = vmatmul.bf16.gmra.mxu0 %v1244
        %v1573 = vpop.f32.mrf.mxu0
        %v1574 = vadd.f32 %v1545, %v1573
        %v1575 = vpop.f32.mrf.mxu0
        %v1576 = vadd.f32 %v1547, %v1575
        %1577 = vmatmul.bf16.gmra.mxu0 %v1249
        %v1578 = vpop.f32.mrf.mxu0
        %v1579 = vadd.f32 %v1550, %v1578
        %v1580 = vpop.f32.mrf.mxu0
        %v1581 = vadd.f32 %v1552, %v1580
        %1582 = vdwg.mxu0
        %1583 = vmatpush.bf16.msra.mxu0 %v1443
        %1584 = vmatpush.bf16.msra.mxu0 %v1442
        %1585 = vmatpush.bf16.msra.mxu0 %v1441
        %1586 = vmatpush.bf16.msra.mxu0 %v1440
        %1587 = vmatpush.bf16.msra.mxu0 %v1439
        %1588 = vmatpush.bf16.msra.mxu0 %v1438
        %1589 = vmatpush.bf16.msra.mxu0 %v1437
        %1590 = vmatpush.bf16.msra.mxu0 %v1436
        %1591 = vmatmul.bf16.gmra.mxu0 %v1235
        %v1592 = vpop.f32.mrf.mxu0
        %v1593 = vadd.f32 %v1564, %v1592
        %v1594 = vpop.f32.mrf.mxu0
        %v1595 = vadd.f32 %v1566, %v1594
        %1596 = vmatmul.bf16.gmra.mxu0 %v1240
        %v1597 = vpop.f32.mrf.mxu0
        %v1598 = vadd.f32 %v1569, %v1597
        %v1599 = vpop.f32.mrf.mxu0
        %v1600 = vadd.f32 %v1571, %v1599
        %1601 = vmatmul.bf16.gmra.mxu0 %v1245
        %v1602 = vpop.f32.mrf.mxu0
        %v1603 = vadd.f32 %v1574, %v1602
        %v1604 = vpop.f32.mrf.mxu0
        %v1605 = vadd.f32 %v1576, %v1604
        %1606 = vmatmul.bf16.gmra.mxu0 %v1250
        %v1607 = vpop.f32.mrf.mxu0
        %v1608 = vadd.f32 %v1579, %v1607
        %v1609 = vpop.f32.mrf.mxu0
        %v1610 = vadd.f32 %v1581, %v1609
        %1611 = vdwg.mxu0
        %1612 = vmatpush.bf16.msra.mxu0 0
        %1613 = vmatpush.bf16.msra.mxu0 0
        %1614 = vmatpush.bf16.msra.mxu0 0
        %1615 = vmatpush.bf16.msra.mxu0 0
        %1616 = vmatpush.bf16.msra.mxu0 %v1447
        %1617 = vmatpush.bf16.msra.mxu0 %v1446
        %1618 = vmatpush.bf16.msra.mxu0 %v1445
        %1619 = vmatpush.bf16.msra.mxu0 %v1444
        %1620 = vmatmul.bf16.gmra.mxu0 %v1485
        %v1621 = vpop.f32.mrf.mxu0
        %v1622 = vadd.f32 %v1593, %v1621
        %v1623 = vpop.f32.mrf.mxu0
        %v1624 = vadd.f32 %v1595, %v1623
        %1625 = vmatmul.bf16.gmra.mxu0 %v1488
        %v1626 = vpop.f32.mrf.mxu0
        %v1627 = vadd.f32 %v1598, %v1626
        %v1628 = vpop.f32.mrf.mxu0
        %v1629 = vadd.f32 %v1600, %v1628
        %1630 = vmatmul.bf16.gmra.mxu0 %v1491
        %v1631 = vpop.f32.mrf.mxu0
        %v1632 = vadd.f32 %v1603, %v1631
        %v1633 = vpop.f32.mrf.mxu0
        %v1634 = vadd.f32 %v1605, %v1633
        %1635 = vmatmul.bf16.gmra.mxu0 %v1494
        %v1636 = vpop.f32.mrf.mxu0
        %v1637 = vadd.f32 %v1608, %v1636
        %v1638 = vpop.f32.mrf.mxu0
        %v1639 = vadd.f32 %v1610, %v1638
        %1640 = vdwg.mxu0
        %1641 = vst.msk [vmem:[%s404 + $0x2] sm:$0xff] %vm366, %v1622
        %1642 = vst.msk [vmem:[%s404 + $0x12] sm:$0xff] %vm366, %v1624
        %1643 = vst.msk [vmem:[%s404 + $0x22] sm:$0xff] %vm366, %v1627
        %1644 = vst.msk [vmem:[%s404 + $0x32] sm:$0xff] %vm366, %v1629
        %1645 = vst.msk [vmem:[%s404 + $0x42] sm:$0xff] %vm366, %v1632
        %1646 = vst.msk [vmem:[%s404 + $0x52] sm:$0xff] %vm366, %v1634
        %1647 = vst.msk [vmem:[%s404 + $0x62] sm:$0xff] %vm366, %v1637
        %1648 = vst.msk [vmem:[%s404 + $0x72] sm:$0xff] %vm366, %v1639
        %v1649 = vld [vmem:[#allocation3] sm:$0xff]
        %v1650 = vld [vmem:[#allocation3 + $0x10] sm:$0xff]
        %v1651 = vld [vmem:[#allocation3 + $0x20] sm:$0xff]
        %v1652 = vld [vmem:[#allocation3 + $0x30] sm:$0xff]
        %v1653 = vld [vmem:[#allocation3 + $0x40] sm:$0xff]
        %v1654 = vld [vmem:[#allocation3 + $0x50] sm:$0xff]
        %v1655 = vld [vmem:[#allocation3 + $0x60] sm:$0xff]
        %v1656 = vld [vmem:[#allocation3 + $0x70] sm:$0xff]
        %v1657 = vpack.c.bf16 %v1649, %v1649
        %v1658 = vpack.c.bf16 %v1650, %v1650
        %v1659 = vpack.c.bf16 %v1651, %v1651
        %v1660 = vpack.c.bf16 %v1652, %v1652
        %v1661 = vpack.c.bf16 %v1653, %v1653
        %v1662 = vpack.c.bf16 %v1654, %v1654
        %v1663 = vpack.c.bf16 %v1655, %v1655
        %v1664 = vpack.c.bf16 %v1656, %v1656
        %1665 = vst.msk [vmem:[#allocation5] sm:$0xf] %vm368, %v1657
        %1666 = vst.msk [vmem:[#allocation5 + $0x14] sm:$0xf] %vm368, %v1658
        %1667 = vst.msk [vmem:[#allocation5 + $0x28] sm:$0xf] %vm368, %v1659
        %1668 = vst.msk [vmem:[#allocation5 + $0x3c] sm:$0xf] %vm368, %v1660
        %1669 = vst.msk [vmem:[#allocation5 + $0x50] sm:$0xf] %vm368, %v1661
        %1670 = vst.msk [vmem:[#allocation5 + $0x64] sm:$0xf] %vm368, %v1662
        %1671 = vst.msk [vmem:[#allocation5 + $0x78] sm:$0xf] %vm368, %v1663
        %1672 = vst.msk [vmem:[#allocation5 + $0x8c] sm:$0xf] %vm368, %v1664
        %v1673 = vld [vmem:[#allocation3 + $0x2] sm:$0xff]
        %v1674 = vld [vmem:[#allocation3 + $0x12] sm:$0xff]
        %v1675 = vld [vmem:[#allocation3 + $0x22] sm:$0xff]
        %v1676 = vld [vmem:[#allocation3 + $0x32] sm:$0xff]
        %v1677 = vld [vmem:[#allocation3 + $0x42] sm:$0xff]
        %v1678 = vld [vmem:[#allocation3 + $0x52] sm:$0xff]
        %v1679 = vld [vmem:[#allocation3 + $0x62] sm:$0xff]
        %v1680 = vld [vmem:[#allocation3 + $0x72] sm:$0xff]
        %v1681 = vpack.c.bf16 %v1673, %v1673
        %v1682 = vpack.c.bf16 %v1674, %v1674
        %v1683 = vpack.c.bf16 %v1675, %v1675
        %v1684 = vpack.c.bf16 %v1676, %v1676
        %v1685 = vpack.c.bf16 %v1677, %v1677
        %v1686 = vpack.c.bf16 %v1678, %v1678
        %v1687 = vpack.c.bf16 %v1679, %v1679
        %v1688 = vpack.c.bf16 %v1680, %v1680
        %1697 = vrot.lane.b32.xlu0 %v1681, 64
        %v1698 = vpop.permute.xlu0 %1697
        %1699 = vrot.lane.b32.xlu0 %v1682, 64
        %v1700 = vpop.permute.xlu0 %1699
        %1701 = vrot.lane.b32.xlu0 %v1683, 64
        %v1702 = vpop.permute.xlu0 %1701
        %1703 = vrot.lane.b32.xlu0 %v1684, 64
        %v1704 = vpop.permute.xlu0 %1703
        %1705 = vrot.lane.b32.xlu0 %v1685, 64
        %v1706 = vpop.permute.xlu0 %1705
        %1707 = vrot.lane.b32.xlu0 %v1686, 64
        %v1708 = vpop.permute.xlu0 %1707
        %1709 = vrot.lane.b32.xlu0 %v1687, 64
        %v1710 = vpop.permute.xlu0 %1709
        %1711 = vrot.lane.b32.xlu0 %v1688, 64
        %v1712 = vpop.permute.xlu0 %1711
        %1721 = vst.msk [vmem:[#allocation5] sm:$0xf] %vm794, %v1698
        %1722 = vst.msk [vmem:[#allocation5 + $0x14] sm:$0xf] %vm794, %v1700
        %1723 = vst.msk [vmem:[#allocation5 + $0x28] sm:$0xf] %vm794, %v1702
        %1724 = vst.msk [vmem:[#allocation5 + $0x3c] sm:$0xf] %vm794, %v1704
        %1725 = vst.msk [vmem:[#allocation5 + $0x50] sm:$0xf] %vm794, %v1706
        %1726 = vst.msk [vmem:[#allocation5 + $0x64] sm:$0xf] %vm794, %v1708
        %1727 = vst.msk [vmem:[#allocation5 + $0x78] sm:$0xf] %vm794, %v1710
        %1728 = vst.msk [vmem:[#allocation5 + $0x8c] sm:$0xf] %vm794, %v1712
        %v1729 = vld [vmem:[#allocation3 + $0x4] sm:$0xff]
        %v1730 = vld [vmem:[#allocation3 + $0x14] sm:$0xff]
        %v1731 = vld [vmem:[#allocation3 + $0x24] sm:$0xff]
        %v1732 = vld [vmem:[#allocation3 + $0x34] sm:$0xff]
        %v1733 = vld [vmem:[#allocation3 + $0x44] sm:$0xff]
        %v1734 = vld [vmem:[#allocation3 + $0x54] sm:$0xff]
        %v1735 = vld [vmem:[#allocation3 + $0x64] sm:$0xff]
        %v1736 = vld [vmem:[#allocation3 + $0x74] sm:$0xff]
        %v1737 = vpack.c.bf16 %v1729, %v1729
        %v1738 = vpack.c.bf16 %v1730, %v1730
        %v1739 = vpack.c.bf16 %v1731, %v1731
        %v1740 = vpack.c.bf16 %v1732, %v1732
        %v1741 = vpack.c.bf16 %v1733, %v1733
        %v1742 = vpack.c.bf16 %v1734, %v1734
        %v1743 = vpack.c.bf16 %v1735, %v1735
        %v1744 = vpack.c.bf16 %v1736, %v1736
        %1745 = vst.msk [vmem:[#allocation5 + $0x4] sm:$0xf] %vm368, %v1737
        %1746 = vst.msk [vmem:[#allocation5 + $0x18] sm:$0xf] %vm368, %v1738
        %1747 = vst.msk [vmem:[#allocation5 + $0x2c] sm:$0xf] %vm368, %v1739
        %1748 = vst.msk [vmem:[#allocation5 + $0x40] sm:$0xf] %vm368, %v1740
        %1749 = vst.msk [vmem:[#allocation5 + $0x54] sm:$0xf] %vm368, %v1741
        %1750 = vst.msk [vmem:[#allocation5 + $0x68] sm:$0xf] %vm368, %v1742
        %1751 = vst.msk [vmem:[#allocation5 + $0x7c] sm:$0xf] %vm368, %v1743
        %1752 = vst.msk [vmem:[#allocation5 + $0x90] sm:$0xf] %vm368, %v1744
        %v1753 = vld [vmem:[%s404] sm:$0xff]
        %v1754 = vld [vmem:[%s404 + $0x10] sm:$0xff]
        %v1755 = vld [vmem:[%s404 + $0x20] sm:$0xff]
        %v1756 = vld [vmem:[%s404 + $0x30] sm:$0xff]
        %v1757 = vld [vmem:[%s404 + $0x40] sm:$0xff]
        %v1758 = vld [vmem:[%s404 + $0x50] sm:$0xff]
        %v1759 = vld [vmem:[%s404 + $0x60] sm:$0xff]
        %v1760 = vld [vmem:[%s404 + $0x70] sm:$0xff]
        %v1761 = vpack.c.bf16 %v1753, %v1753
        %v1762 = vpack.c.bf16 %v1754, %v1754
        %v1763 = vpack.c.bf16 %v1755, %v1755
        %v1764 = vpack.c.bf16 %v1756, %v1756
        %v1765 = vpack.c.bf16 %v1757, %v1757
        %v1766 = vpack.c.bf16 %v1758, %v1758
        %v1767 = vpack.c.bf16 %v1759, %v1759
        %v1768 = vpack.c.bf16 %v1760, %v1760
        %1777 = vrot.lane.b32.xlu0 %v1761, 64
        %v1778 = vpop.permute.xlu0 %1777
        %1779 = vrot.lane.b32.xlu0 %v1762, 64
        %v1780 = vpop.permute.xlu0 %1779
        %1781 = vrot.lane.b32.xlu0 %v1763, 64
        %v1782 = vpop.permute.xlu0 %1781
        %1783 = vrot.lane.b32.xlu0 %v1764, 64
        %v1784 = vpop.permute.xlu0 %1783
        %1785 = vrot.lane.b32.xlu0 %v1765, 64
        %v1786 = vpop.permute.xlu0 %1785
        %1787 = vrot.lane.b32.xlu0 %v1766, 64
        %v1788 = vpop.permute.xlu0 %1787
        %1789 = vrot.lane.b32.xlu0 %v1767, 64
        %v1790 = vpop.permute.xlu0 %1789
        %1791 = vrot.lane.b32.xlu0 %v1768, 64
        %v1792 = vpop.permute.xlu0 %1791
        %1801 = vst.msk [vmem:[#allocation5 + $0x4] sm:$0xf] %vm794, %v1778
        %1802 = vst.msk [vmem:[#allocation5 + $0x18] sm:$0xf] %vm794, %v1780
        %1803 = vst.msk [vmem:[#allocation5 + $0x2c] sm:$0xf] %vm794, %v1782
        %1804 = vst.msk [vmem:[#allocation5 + $0x40] sm:$0xf] %vm794, %v1784
        %1805 = vst.msk [vmem:[#allocation5 + $0x54] sm:$0xf] %vm794, %v1786
        %1806 = vst.msk [vmem:[#allocation5 + $0x68] sm:$0xf] %vm794, %v1788
        %1807 = vst.msk [vmem:[#allocation5 + $0x7c] sm:$0xf] %vm794, %v1790
        %1808 = vst.msk [vmem:[#allocation5 + $0x90] sm:$0xf] %vm794, %v1792
        %v1809 = vld [vmem:[%s404 + $0x2] sm:$0xff]
        %v1810 = vld [vmem:[%s404 + $0x12] sm:$0xff]
        %v1811 = vld [vmem:[%s404 + $0x22] sm:$0xff]
        %v1812 = vld [vmem:[%s404 + $0x32] sm:$0xff]
        %v1813 = vld [vmem:[%s404 + $0x42] sm:$0xff]
        %v1814 = vld [vmem:[%s404 + $0x52] sm:$0xff]
        %v1815 = vld [vmem:[%s404 + $0x62] sm:$0xff]
        %v1816 = vld [vmem:[%s404 + $0x72] sm:$0xff]
        %v1817 = vpack.c.bf16 %v1809, %v1809
        %v1818 = vpack.c.bf16 %v1810, %v1810
        %v1819 = vpack.c.bf16 %v1811, %v1811
        %v1820 = vpack.c.bf16 %v1812, %v1812
        %v1821 = vpack.c.bf16 %v1813, %v1813
        %v1822 = vpack.c.bf16 %v1814, %v1814
        %v1823 = vpack.c.bf16 %v1815, %v1815
        %v1824 = vpack.c.bf16 %v1816, %v1816
        %1825 = vst.msk [vmem:[#allocation5 + $0x8] sm:$0xf] %vm368, %v1817
        %1826 = vst.msk [vmem:[#allocation5 + $0x1c] sm:$0xf] %vm368, %v1818
        %1827 = vst.msk [vmem:[#allocation5 + $0x30] sm:$0xf] %vm368, %v1819
        %1828 = vst.msk [vmem:[#allocation5 + $0x44] sm:$0xf] %vm368, %v1820
        %1829 = vst.msk [vmem:[#allocation5 + $0x58] sm:$0xf] %vm368, %v1821
        %1830 = vst.msk [vmem:[#allocation5 + $0x6c] sm:$0xf] %vm368, %v1822
        %1831 = vst.msk [vmem:[#allocation5 + $0x80] sm:$0xf] %vm368, %v1823
        %1832 = vst.msk [vmem:[#allocation5 + $0x94] sm:$0xf] %vm368, %v1824
        %v1833 = vld [vmem:[%s404 + $0x4] sm:$0xff]
        %v1834 = vld [vmem:[%s404 + $0x14] sm:$0xff]
        %v1835 = vld [vmem:[%s404 + $0x24] sm:$0xff]
        %v1836 = vld [vmem:[%s404 + $0x34] sm:$0xff]
        %v1837 = vld [vmem:[%s404 + $0x44] sm:$0xff]
        %v1838 = vld [vmem:[%s404 + $0x54] sm:$0xff]
        %v1839 = vld [vmem:[%s404 + $0x64] sm:$0xff]
        %v1840 = vld [vmem:[%s404 + $0x74] sm:$0xff]
        %v1841 = vpack.c.bf16 %v1833, %v1833
        %v1842 = vpack.c.bf16 %v1834, %v1834
        %v1843 = vpack.c.bf16 %v1835, %v1835
        %v1844 = vpack.c.bf16 %v1836, %v1836
        %v1845 = vpack.c.bf16 %v1837, %v1837
        %v1846 = vpack.c.bf16 %v1838, %v1838
        %v1847 = vpack.c.bf16 %v1839, %v1839
        %v1848 = vpack.c.bf16 %v1840, %v1840
        %1857 = vrot.lane.b32.xlu0 %v1841, 64
        %v1858 = vpop.permute.xlu0 %1857
        %1859 = vrot.lane.b32.xlu0 %v1842, 64
        %v1860 = vpop.permute.xlu0 %1859
        %1861 = vrot.lane.b32.xlu0 %v1843, 64
        %v1862 = vpop.permute.xlu0 %1861
        %1863 = vrot.lane.b32.xlu0 %v1844, 64
        %v1864 = vpop.permute.xlu0 %1863
        %1865 = vrot.lane.b32.xlu0 %v1845, 64
        %v1866 = vpop.permute.xlu0 %1865
        %1867 = vrot.lane.b32.xlu0 %v1846, 64
        %v1868 = vpop.permute.xlu0 %1867
        %1869 = vrot.lane.b32.xlu0 %v1847, 64
        %v1870 = vpop.permute.xlu0 %1869
        %1871 = vrot.lane.b32.xlu0 %v1848, 64
        %v1872 = vpop.permute.xlu0 %1871
        %1881 = vst.msk [vmem:[#allocation5 + $0x8] sm:$0xf] %vm794, %v1858
        %1882 = vst.msk [vmem:[#allocation5 + $0x1c] sm:$0xf] %vm794, %v1860
        %1883 = vst.msk [vmem:[#allocation5 + $0x30] sm:$0xf] %vm794, %v1862
        %1884 = vst.msk [vmem:[#allocation5 + $0x44] sm:$0xf] %vm794, %v1864
        %1885 = vst.msk [vmem:[#allocation5 + $0x58] sm:$0xf] %vm794, %v1866
        %1886 = vst.msk [vmem:[#allocation5 + $0x6c] sm:$0xf] %vm794, %v1868
        %1887 = vst.msk [vmem:[#allocation5 + $0x80] sm:$0xf] %vm794, %v1870
        %1888 = vst.msk [vmem:[#allocation5 + $0x94] sm:$0xf] %vm794, %v1872
        %s1889 = scalar_lea.vmem [#allocation3], 64
        %v1890 = vld [vmem:[%s1889] sm:$0xff]
        %v1891 = vld [vmem:[%s1889 + $0x10] sm:$0xff]
        %v1892 = vld [vmem:[%s1889 + $0x20] sm:$0xff]
        %v1893 = vld [vmem:[%s1889 + $0x30] sm:$0xff]
        %v1894 = vld [vmem:[%s1889 + $0x40] sm:$0xff]
        %v1895 = vld [vmem:[%s1889 + $0x50] sm:$0xff]
        %v1896 = vld [vmem:[%s1889 + $0x60] sm:$0xff]
        %v1897 = vld [vmem:[%s1889 + $0x70] sm:$0xff]
        %v1898 = vpack.c.bf16 %v1890, %v1890
        %v1899 = vpack.c.bf16 %v1891, %v1891
        %v1900 = vpack.c.bf16 %v1892, %v1892
        %v1901 = vpack.c.bf16 %v1893, %v1893
        %v1902 = vpack.c.bf16 %v1894, %v1894
        %v1903 = vpack.c.bf16 %v1895, %v1895
        %v1904 = vpack.c.bf16 %v1896, %v1896
        %v1905 = vpack.c.bf16 %v1897, %v1897
        %1906 = vst.msk [vmem:[#allocation5 + $0xc] sm:$0xf] %vm368, %v1898
        %1907 = vst.msk [vmem:[#allocation5 + $0x20] sm:$0xf] %vm368, %v1899
        %1908 = vst.msk [vmem:[#allocation5 + $0x34] sm:$0xf] %vm368, %v1900
        %1909 = vst.msk [vmem:[#allocation5 + $0x48] sm:$0xf] %vm368, %v1901
        %1910 = vst.msk [vmem:[#allocation5 + $0x5c] sm:$0xf] %vm368, %v1902
        %1911 = vst.msk [vmem:[#allocation5 + $0x70] sm:$0xf] %vm368, %v1903
        %1912 = vst.msk [vmem:[#allocation5 + $0x84] sm:$0xf] %vm368, %v1904
        %1913 = vst.msk [vmem:[#allocation5 + $0x98] sm:$0xf] %vm368, %v1905
        %v1914 = vld [vmem:[%s1889 + $0x2] sm:$0xff]
        %v1915 = vld [vmem:[%s1889 + $0x12] sm:$0xff]
        %v1916 = vld [vmem:[%s1889 + $0x22] sm:$0xff]
        %v1917 = vld [vmem:[%s1889 + $0x32] sm:$0xff]
        %v1918 = vld [vmem:[%s1889 + $0x42] sm:$0xff]
        %v1919 = vld [vmem:[%s1889 + $0x52] sm:$0xff]
        %v1920 = vld [vmem:[%s1889 + $0x62] sm:$0xff]
        %v1921 = vld [vmem:[%s1889 + $0x72] sm:$0xff]
        %v1922 = vpack.c.bf16 %v1914, %v1914
        %v1923 = vpack.c.bf16 %v1915, %v1915
        %v1924 = vpack.c.bf16 %v1916, %v1916
        %v1925 = vpack.c.bf16 %v1917, %v1917
        %v1926 = vpack.c.bf16 %v1918, %v1918
        %v1927 = vpack.c.bf16 %v1919, %v1919
        %v1928 = vpack.c.bf16 %v1920, %v1920
        %v1929 = vpack.c.bf16 %v1921, %v1921
        %1938 = vrot.lane.b32.xlu0 %v1922, 64
        %v1939 = vpop.permute.xlu0 %1938
        %1940 = vrot.lane.b32.xlu0 %v1923, 64
        %v1941 = vpop.permute.xlu0 %1940
        %1942 = vrot.lane.b32.xlu0 %v1924, 64
        %v1943 = vpop.permute.xlu0 %1942
        %1944 = vrot.lane.b32.xlu0 %v1925, 64
        %v1945 = vpop.permute.xlu0 %1944
        %1946 = vrot.lane.b32.xlu0 %v1926, 64
        %v1947 = vpop.permute.xlu0 %1946
        %1948 = vrot.lane.b32.xlu0 %v1927, 64
        %v1949 = vpop.permute.xlu0 %1948
        %1950 = vrot.lane.b32.xlu0 %v1928, 64
        %v1951 = vpop.permute.xlu0 %1950
        %1952 = vrot.lane.b32.xlu0 %v1929, 64
        %v1953 = vpop.permute.xlu0 %1952
        %1962 = vst.msk [vmem:[#allocation5 + $0xc] sm:$0xf] %vm794, %v1939
        %1963 = vst.msk [vmem:[#allocation5 + $0x20] sm:$0xf] %vm794, %v1941
        %1964 = vst.msk [vmem:[#allocation5 + $0x34] sm:$0xf] %vm794, %v1943
        %1965 = vst.msk [vmem:[#allocation5 + $0x48] sm:$0xf] %vm794, %v1945
        %1966 = vst.msk [vmem:[#allocation5 + $0x5c] sm:$0xf] %vm794, %v1947
        %1967 = vst.msk [vmem:[#allocation5 + $0x70] sm:$0xf] %vm794, %v1949
        %1968 = vst.msk [vmem:[#allocation5 + $0x84] sm:$0xf] %vm794, %v1951
        %1969 = vst.msk [vmem:[#allocation5 + $0x98] sm:$0xf] %vm794, %v1953
        %v1970 = vld [vmem:[%s1889 + $0x4] sm:$0xff]
        %v1971 = vld [vmem:[%s1889 + $0x14] sm:$0xff]
        %v1972 = vld [vmem:[%s1889 + $0x24] sm:$0xff]
        %v1973 = vld [vmem:[%s1889 + $0x34] sm:$0xff]
        %v1974 = vld [vmem:[%s1889 + $0x44] sm:$0xff]
        %v1975 = vld [vmem:[%s1889 + $0x54] sm:$0xff]
        %v1976 = vld [vmem:[%s1889 + $0x64] sm:$0xff]
        %v1977 = vld [vmem:[%s1889 + $0x74] sm:$0xff]
        %v1978 = vpack.c.bf16 %v1970, %v1970
        %v1979 = vpack.c.bf16 %v1971, %v1971
        %v1980 = vpack.c.bf16 %v1972, %v1972
        %v1981 = vpack.c.bf16 %v1973, %v1973
        %v1982 = vpack.c.bf16 %v1974, %v1974
        %v1983 = vpack.c.bf16 %v1975, %v1975
        %v1984 = vpack.c.bf16 %v1976, %v1976
        %v1985 = vpack.c.bf16 %v1977, %v1977
        %1986 = vst.msk [vmem:[#allocation5 + $0x10] sm:$0xf] %vm368, %v1978
        %1987 = vst.msk [vmem:[#allocation5 + $0x24] sm:$0xf] %vm368, %v1979
        %1988 = vst.msk [vmem:[#allocation5 + $0x38] sm:$0xf] %vm368, %v1980
        %1989 = vst.msk [vmem:[#allocation5 + $0x4c] sm:$0xf] %vm368, %v1981
        %1990 = vst.msk [vmem:[#allocation5 + $0x60] sm:$0xf] %vm368, %v1982
        %1991 = vst.msk [vmem:[#allocation5 + $0x74] sm:$0xf] %vm368, %v1983
        %1992 = vst.msk [vmem:[#allocation5 + $0x88] sm:$0xf] %vm368, %v1984
        %1993 = vst.msk [vmem:[#allocation5 + $0x9c] sm:$0xf] %vm368, %v1985
        %v1994 = vld [vmem:[#allocation5] sm:$0xff]
        %v1995 = vld [vmem:[#allocation5 + $0x8] sm:$0xff]
        %v1996 = vld [vmem:[#allocation5 + $0x10] sm:$0xf]
        %v1997 = vld [vmem:[#allocation5 + $0x14] sm:$0xff]
        %v1998 = vld [vmem:[#allocation5 + $0x1c] sm:$0xff]
        %v1999 = vld [vmem:[#allocation5 + $0x24] sm:$0xf]
        %v2000 = vld [vmem:[#allocation5 + $0x28] sm:$0xff]
        %v2001 = vld [vmem:[#allocation5 + $0x30] sm:$0xff]
        %v2002 = vld [vmem:[#allocation5 + $0x38] sm:$0xf]
        %v2003 = vld [vmem:[#allocation5 + $0x3c] sm:$0xff]
        %v2004 = vld [vmem:[#allocation5 + $0x44] sm:$0xff]
        %v2005 = vld [vmem:[#allocation5 + $0x4c] sm:$0xf]
        %v2006 = vld [vmem:[#allocation5 + $0x50] sm:$0xff]
        %v2007 = vld [vmem:[#allocation5 + $0x58] sm:$0xff]
        %v2008 = vld [vmem:[#allocation5 + $0x60] sm:$0xf]
        %v2009 = vld [vmem:[#allocation5 + $0x64] sm:$0xff]
        %v2010 = vld [vmem:[#allocation5 + $0x6c] sm:$0xff]
        %v2011 = vld [vmem:[#allocation5 + $0x74] sm:$0xf]
        %v2012 = vld [vmem:[#allocation5 + $0x78] sm:$0xff]
        %v2013 = vld [vmem:[#allocation5 + $0x80] sm:$0xff]
        %v2014 = vld [vmem:[#allocation5 + $0x88] sm:$0xf]
        %v2015 = vld [vmem:[#allocation5 + $0x8c] sm:$0xff]
        %v2016 = vld [vmem:[#allocation5 + $0x94] sm:$0xff]
        %v2017 = vld [vmem:[#allocation5 + $0x9c] sm:$0xf]
        %v2018 = vld [vmem:[%s5] sm:$0xf]
        %v2019 = vld [vmem:[%s5 + $0x4] sm:$0xf]
        %v2020 = vld [vmem:[%s5 + $0x8] sm:$0xf]
        %v2021 = vld [vmem:[%s5 + $0xc] sm:$0xf]
        %v2022 = vld [vmem:[%s5 + $0x10] sm:$0xf]
        %v2023 = vld [vmem:[%s5 + $0x14] sm:$0xf]
        %v2024 = vld [vmem:[%s5 + $0x18] sm:$0xf]
        %v2025 = vld [vmem:[%s5 + $0x1c] sm:$0xf]
        %v2026 = vld [vmem:[%s5 + $0x20] sm:$0xf]
        %v2027 = vld [vmem:[%s5 + $0x24] sm:$0xf]
        %v2028 = vld [vmem:[%s5 + $0x28] sm:$0xf]
        %v2029 = vld [vmem:[%s5 + $0x2c] sm:$0xf]
        %v2030 = vld [vmem:[%s5 + $0x30] sm:$0xf]
        %v2031 = vld [vmem:[%s5 + $0x34] sm:$0xf]
        %v2032 = vld [vmem:[%s5 + $0x38] sm:$0xf]
        %v2033 = vld [vmem:[%s5 + $0x3c] sm:$0xf]
        %v2034 = vld [vmem:[%s5 + $0x40] sm:$0xf]
        %v2035 = vld [vmem:[%s5 + $0x44] sm:$0xf]
        %v2036 = vld [vmem:[%s5 + $0x48] sm:$0xf]
        %v2037 = vld [vmem:[%s5 + $0x4c] sm:$0xf]
        %v2038 = vld [vmem:[%s5 + $0x50] sm:$0xf]
        %v2039 = vld [vmem:[%s5 + $0x54] sm:$0xf]
        %v2040 = vld [vmem:[%s5 + $0x58] sm:$0xf]
        %v2041 = vld [vmem:[%s5 + $0x5c] sm:$0xf]
        %v2042 = vld [vmem:[%s5 + $0x60] sm:$0xf]
        %v2043 = vld [vmem:[%s5 + $0x64] sm:$0xf]
        %v2044 = vld [vmem:[%s5 + $0x68] sm:$0xf]
        %v2045 = vld [vmem:[%s5 + $0x6c] sm:$0xf]
        %v2046 = vld [vmem:[%s5 + $0x70] sm:$0xf]
        %v2047 = vld [vmem:[%s5 + $0x74] sm:$0xf]
        %v2048 = vld [vmem:[%s5 + $0x78] sm:$0xf]
        %v2049 = vld [vmem:[%s5 + $0x7c] sm:$0xf]
        %v2050 = vld [vmem:[%s5 + $0x80] sm:$0xf]
        %v2051 = vld [vmem:[%s5 + $0x84] sm:$0xf]
        %v2052 = vld [vmem:[%s5 + $0x88] sm:$0xf]
        %v2053 = vld [vmem:[%s5 + $0x8c] sm:$0xf]
        %v2054 = vld [vmem:[%s5 + $0x90] sm:$0xf]
        %v2055 = vld [vmem:[%s5 + $0x94] sm:$0xf]
        %v2056 = vld [vmem:[%s5 + $0x98] sm:$0xf]
        %v2057 = vld [vmem:[%s5 + $0x9c] sm:$0xf]
        %v2058 = vld [vmem:[%s5 + $0xa0] sm:$0xf]
        %v2059 = vld [vmem:[%s5 + $0xa4] sm:$0xf]
        %v2060 = vld [vmem:[%s5 + $0xa8] sm:$0xf]
        %v2061 = vld [vmem:[%s5 + $0xac] sm:$0xf]
        %v2062 = vld [vmem:[%s5 + $0xb0] sm:$0xf]
        %v2063 = vld [vmem:[%s5 + $0xb4] sm:$0xf]
        %v2064 = vld [vmem:[%s5 + $0xb8] sm:$0xf]
        %v2065 = vld [vmem:[%s5 + $0xbc] sm:$0xf]
        %v2066 = vld [vmem:[%s5 + $0xc0] sm:$0xf]
        %v2067 = vld [vmem:[%s5 + $0xc4] sm:$0xf]
        %v2068 = vld [vmem:[%s5 + $0xc8] sm:$0xf]
        %v2069 = vld [vmem:[%s5 + $0xcc] sm:$0xf]
        %v2070 = vld [vmem:[%s5 + $0xd0] sm:$0xf]
        %v2071 = vld [vmem:[%s5 + $0xd4] sm:$0xf]
        %v2072 = vld [vmem:[%s5 + $0xd8] sm:$0xf]
        %v2073 = vld [vmem:[%s5 + $0xdc] sm:$0xf]
        %v2074 = vld [vmem:[%s5 + $0xe0] sm:$0xf]
        %v2075 = vld [vmem:[%s5 + $0xe4] sm:$0xf]
        %v2076 = vld [vmem:[%s5 + $0xe8] sm:$0xf]
        %v2077 = vld [vmem:[%s5 + $0xec] sm:$0xf]
        %v2078 = vld [vmem:[%s5 + $0xf0] sm:$0xf]
        %v2079 = vld [vmem:[%s5 + $0xf4] sm:$0xf]
        %v2080 = vld [vmem:[%s5 + $0xf8] sm:$0xf]
        %v2081 = vld [vmem:[%s5 + $0xfc] sm:$0xf]
        %v2082 = vld [vmem:[%s5 + $0x100] sm:$0xf]
        %v2083 = vld [vmem:[%s5 + $0x104] sm:$0xf]
        %v2084 = vld [vmem:[%s5 + $0x108] sm:$0xf]
        %v2085 = vld [vmem:[%s5 + $0x10c] sm:$0xf]
        %v2086 = vld [vmem:[%s5 + $0x110] sm:$0xf]
        %v2087 = vld [vmem:[%s5 + $0x114] sm:$0xf]
        %v2088 = vld [vmem:[%s5 + $0x118] sm:$0xf]
        %v2089 = vld [vmem:[%s5 + $0x11c] sm:$0xf]
        %v2090 = vld [vmem:[%s6] sm:$0x1]
        %v2092 = vperm.slane %v2090, 0
        %v2118 = vunpack.c.l.b16 %v1994
        %v2119 = vunpack.c.h.b16 %v1994
        %v2120 = vunpack.c.l.b16 %v1995
        %v2121 = vunpack.c.h.b16 %v1995
        %v2122 = vunpack.c.l.b16 %v1996
        %v2123 = vunpack.c.l.b16 %v1997
        %v2124 = vunpack.c.h.b16 %v1997
        %v2125 = vunpack.c.l.b16 %v1998
        %v2126 = vunpack.c.h.b16 %v1998
        %v2127 = vunpack.c.l.b16 %v1999
        %v2128 = vunpack.c.l.b16 %v2000
        %v2129 = vunpack.c.h.b16 %v2000
        %v2130 = vunpack.c.l.b16 %v2001
        %v2131 = vunpack.c.h.b16 %v2001
        %v2132 = vunpack.c.l.b16 %v2002
        %v2133 = vunpack.c.l.b16 %v2003
        %v2134 = vunpack.c.h.b16 %v2003
        %v2135 = vunpack.c.l.b16 %v2004
        %v2136 = vunpack.c.h.b16 %v2004
        %v2137 = vunpack.c.l.b16 %v2005
        %v2138 = vunpack.c.l.b16 %v2006
        %v2139 = vunpack.c.h.b16 %v2006
        %v2140 = vunpack.c.l.b16 %v2007
        %v2141 = vunpack.c.h.b16 %v2007
        %v2142 = vunpack.c.l.b16 %v2008
        %v2143 = vunpack.c.l.b16 %v2009
        %v2144 = vunpack.c.h.b16 %v2009
        %v2145 = vunpack.c.l.b16 %v2010
        %v2146 = vunpack.c.h.b16 %v2010
        %v2147 = vunpack.c.l.b16 %v2011
        %v2148 = vunpack.c.l.b16 %v2012
        %v2149 = vunpack.c.h.b16 %v2012
        %v2150 = vunpack.c.l.b16 %v2013
        %v2151 = vunpack.c.h.b16 %v2013
        %v2152 = vunpack.c.l.b16 %v2014
        %v2153 = vunpack.c.l.b16 %v2015
        %v2154 = vunpack.c.h.b16 %v2015
        %v2155 = vunpack.c.l.b16 %v2016
        %v2156 = vunpack.c.h.b16 %v2016
        %v2157 = vunpack.c.l.b16 %v2017
        %v2158 = vpack.c.b16 %v2123, %v2118
        %v2159 = vpack.c.b16 %v2124, %v2119
        %v2160 = vpack.c.b16 %v2125, %v2120
        %v2161 = vpack.c.b16 %v2126, %v2121
        %v2162 = vpack.c.b16 %v2127, %v2122
        %v2163 = vpack.c.b16 %v2133, %v2128
        %v2164 = vpack.c.b16 %v2134, %v2129
        %v2165 = vpack.c.b16 %v2135, %v2130
        %v2166 = vpack.c.b16 %v2136, %v2131
        %v2167 = vpack.c.b16 %v2137, %v2132
        %v2168 = vpack.c.b16 %v2143, %v2138
        %v2169 = vpack.c.b16 %v2144, %v2139
        %v2170 = vpack.c.b16 %v2145, %v2140
        %v2171 = vpack.c.b16 %v2146, %v2141
        %v2172 = vpack.c.b16 %v2147, %v2142
        %v2173 = vpack.c.b16 %v2153, %v2148
        %v2174 = vpack.c.b16 %v2154, %v2149
        %v2175 = vpack.c.b16 %v2155, %v2150
        %v2176 = vpack.c.b16 %v2156, %v2151
        %v2177 = vpack.c.b16 %v2157, %v2152
        %v2266 = vunpack.c.l.b16 %v2018
        %v2267 = vunpack.c.l.b16 %v2019
        %v2268 = vunpack.c.l.b16 %v2020
        %v2269 = vunpack.c.l.b16 %v2021
        %v2270 = vunpack.c.l.b16 %v2022
        %v2271 = vunpack.c.l.b16 %v2023
        %v2272 = vunpack.c.l.b16 %v2024
        %v2273 = vunpack.c.l.b16 %v2025
        %v2274 = vunpack.c.l.b16 %v2026
        %v2275 = vunpack.c.l.b16 %v2027
        %v2276 = vunpack.c.l.b16 %v2028
        %v2277 = vunpack.c.l.b16 %v2029
        %v2278 = vunpack.c.l.b16 %v2030
        %v2279 = vunpack.c.l.b16 %v2031
        %v2280 = vunpack.c.l.b16 %v2032
        %v2281 = vunpack.c.l.b16 %v2033
        %v2282 = vunpack.c.l.b16 %v2034
        %v2283 = vunpack.c.l.b16 %v2035
        %v2284 = vunpack.c.l.b16 %v2036
        %v2285 = vunpack.c.l.b16 %v2037
        %v2286 = vunpack.c.l.b16 %v2038
        %v2287 = vunpack.c.l.b16 %v2039
        %v2288 = vunpack.c.l.b16 %v2040
        %v2289 = vunpack.c.l.b16 %v2041
        %v2290 = vunpack.c.l.b16 %v2042
        %v2291 = vunpack.c.l.b16 %v2043
        %v2292 = vunpack.c.l.b16 %v2044
        %v2293 = vunpack.c.l.b16 %v2045
        %v2294 = vunpack.c.l.b16 %v2046
        %v2295 = vunpack.c.l.b16 %v2047
        %v2296 = vunpack.c.l.b16 %v2048
        %v2297 = vunpack.c.l.b16 %v2049
        %v2298 = vunpack.c.l.b16 %v2050
        %v2299 = vunpack.c.l.b16 %v2051
        %v2300 = vunpack.c.l.b16 %v2052
        %v2301 = vunpack.c.l.b16 %v2053
        %v2302 = vunpack.c.l.b16 %v2054
        %v2303 = vunpack.c.l.b16 %v2055
        %v2304 = vunpack.c.l.b16 %v2056
        %v2305 = vunpack.c.l.b16 %v2057
        %v2306 = vunpack.c.l.b16 %v2058
        %v2307 = vunpack.c.l.b16 %v2059
        %v2308 = vunpack.c.l.b16 %v2060
        %v2309 = vunpack.c.l.b16 %v2061
        %v2310 = vunpack.c.l.b16 %v2062
        %v2311 = vunpack.c.l.b16 %v2063
        %v2312 = vunpack.c.l.b16 %v2064
        %v2313 = vunpack.c.l.b16 %v2065
        %v2314 = vunpack.c.l.b16 %v2066
        %v2315 = vunpack.c.l.b16 %v2067
        %v2316 = vunpack.c.l.b16 %v2068
        %v2317 = vunpack.c.l.b16 %v2069
        %v2318 = vunpack.c.l.b16 %v2070
        %v2319 = vunpack.c.l.b16 %v2071
        %v2320 = vunpack.c.l.b16 %v2072
        %v2321 = vunpack.c.l.b16 %v2073
        %v2322 = vunpack.c.l.b16 %v2074
        %v2323 = vunpack.c.l.b16 %v2075
        %v2324 = vunpack.c.l.b16 %v2076
        %v2325 = vunpack.c.l.b16 %v2077
        %v2326 = vunpack.c.l.b16 %v2078
        %v2327 = vunpack.c.l.b16 %v2079
        %v2328 = vunpack.c.l.b16 %v2080
        %v2329 = vunpack.c.l.b16 %v2081
        %v2330 = vunpack.c.l.b16 %v2082
        %v2331 = vunpack.c.l.b16 %v2083
        %v2332 = vunpack.c.l.b16 %v2084
        %v2333 = vunpack.c.l.b16 %v2085
        %v2334 = vunpack.c.l.b16 %v2086
        %v2335 = vunpack.c.l.b16 %v2087
        %v2336 = vunpack.c.l.b16 %v2088
        %v2337 = vunpack.c.l.b16 %v2089
        %v2338 = vpack.c.b16 %v2267, %v2266
        %v2339 = vpack.c.b16 %v2269, %v2268
        %v2340 = vpack.c.b16 %v2271, %v2270
        %v2341 = vpack.c.b16 %v2273, %v2272
        %v2342 = vpack.c.b16 %v2275, %v2274
        %v2343 = vpack.c.b16 %v2277, %v2276
        %v2344 = vpack.c.b16 %v2279, %v2278
        %v2345 = vpack.c.b16 %v2281, %v2280
        %v2346 = vpack.c.b16 %v2283, %v2282
        %v2347 = vpack.c.b16 %v2285, %v2284
        %v2348 = vpack.c.b16 %v2287, %v2286
        %v2349 = vpack.c.b16 %v2289, %v2288
        %v2350 = vpack.c.b16 %v2291, %v2290
        %v2351 = vpack.c.b16 %v2293, %v2292
        %v2352 = vpack.c.b16 %v2295, %v2294
        %v2353 = vpack.c.b16 %v2297, %v2296
        %v2354 = vpack.c.b16 %v2299, %v2298
        %v2355 = vpack.c.b16 %v2301, %v2300
        %v2356 = vpack.c.b16 %v2303, %v2302
        %v2357 = vpack.c.b16 %v2305, %v2304
        %v2358 = vpack.c.b16 %v2307, %v2306
        %v2359 = vpack.c.b16 %v2309, %v2308
        %v2360 = vpack.c.b16 %v2311, %v2310
        %v2361 = vpack.c.b16 %v2313, %v2312
        %v2362 = vpack.c.b16 %v2315, %v2314
        %v2363 = vpack.c.b16 %v2317, %v2316
        %v2364 = vpack.c.b16 %v2319, %v2318
        %v2365 = vpack.c.b16 %v2321, %v2320
        %v2366 = vpack.c.b16 %v2323, %v2322
        %v2367 = vpack.c.b16 %v2325, %v2324
        %v2368 = vpack.c.b16 %v2327, %v2326
        %v2369 = vpack.c.b16 %v2329, %v2328
        %v2370 = vpack.c.b16 %v2331, %v2330
        %v2371 = vpack.c.b16 %v2333, %v2332
        %v2372 = vpack.c.b16 %v2335, %v2334
        %v2373 = vpack.c.b16 %v2337, %v2336
        %v2411 = vsel %vm366, %v2162, 0
        %v2414 = vsel %vm366, %v2167, 0
        %v2417 = vsel %vm366, %v2172, 0
        %v2420 = vsel %vm366, %v2177, 0
        %2422 = vmatpush.bf16.msra.mxu0 %v2345
        %2423 = vmatpush.bf16.msra.mxu0 %v2344
        %2424 = vmatpush.bf16.msra.mxu0 %v2343
        %2425 = vmatpush.bf16.msra.mxu0 %v2342
        %2426 = vmatpush.bf16.msra.mxu0 %v2341
        %2427 = vmatpush.bf16.msra.mxu0 %v2340
        %2428 = vmatpush.bf16.msra.mxu0 %v2339
        %2429 = vmatpush.bf16.msra.mxu0 %v2338
        %2430 = vmatmul.bf16.gmra.mxu0 %v2158
        %v2431 = vpop.f32.mrf.mxu0
        %v2432 = vadd.f32 %v2092, %v2431
        %v2433 = vpop.f32.mrf.mxu0
        %v2434 = vadd.f32 %v2092, %v2433
        %2435 = vmatmul.bf16.gmra.mxu0 %v2163
        %v2436 = vpop.f32.mrf.mxu0
        %v2437 = vadd.f32 %v2092, %v2436
        %v2438 = vpop.f32.mrf.mxu0
        %v2439 = vadd.f32 %v2092, %v2438
        %2440 = vmatmul.bf16.gmra.mxu0 %v2168
        %v2441 = vpop.f32.mrf.mxu0
        %v2442 = vadd.f32 %v2092, %v2441
        %v2443 = vpop.f32.mrf.mxu0
        %v2444 = vadd.f32 %v2092, %v2443
        %2445 = vmatmul.bf16.gmra.mxu0 %v2173
        %v2446 = vpop.f32.mrf.mxu0
        %v2447 = vadd.f32 %v2092, %v2446
        %v2448 = vpop.f32.mrf.mxu0
        %v2449 = vadd.f32 %v2092, %v2448
        %2450 = vdwg.mxu0
        %2451 = vmatpush.bf16.msra.mxu0 %v2353
        %2452 = vmatpush.bf16.msra.mxu0 %v2352
        %2453 = vmatpush.bf16.msra.mxu0 %v2351
        %2454 = vmatpush.bf16.msra.mxu0 %v2350
        %2455 = vmatpush.bf16.msra.mxu0 %v2349
        %2456 = vmatpush.bf16.msra.mxu0 %v2348
        %2457 = vmatpush.bf16.msra.mxu0 %v2347
        %2458 = vmatpush.bf16.msra.mxu0 %v2346
        %2459 = vmatmul.bf16.gmra.mxu0 %v2159
        %v2460 = vpop.f32.mrf.mxu0
        %v2461 = vadd.f32 %v2432, %v2460
        %v2462 = vpop.f32.mrf.mxu0
        %v2463 = vadd.f32 %v2434, %v2462
        %2464 = vmatmul.bf16.gmra.mxu0 %v2164
        %v2465 = vpop.f32.mrf.mxu0
        %v2466 = vadd.f32 %v2437, %v2465
        %v2467 = vpop.f32.mrf.mxu0
        %v2468 = vadd.f32 %v2439, %v2467
        %2469 = vmatmul.bf16.gmra.mxu0 %v2169
        %v2470 = vpop.f32.mrf.mxu0
        %v2471 = vadd.f32 %v2442, %v2470
        %v2472 = vpop.f32.mrf.mxu0
        %v2473 = vadd.f32 %v2444, %v2472
        %2474 = vmatmul.bf16.gmra.mxu0 %v2174
        %v2475 = vpop.f32.mrf.mxu0
        %v2476 = vadd.f32 %v2447, %v2475
        %v2477 = vpop.f32.mrf.mxu0
        %v2478 = vadd.f32 %v2449, %v2477
        %2479 = vdwg.mxu0
        %2480 = vmatpush.bf16.msra.mxu0 %v2361
        %2481 = vmatpush.bf16.msra.mxu0 %v2360
        %2482 = vmatpush.bf16.msra.mxu0 %v2359
        %2483 = vmatpush.bf16.msra.mxu0 %v2358
        %2484 = vmatpush.bf16.msra.mxu0 %v2357
        %2485 = vmatpush.bf16.msra.mxu0 %v2356
        %2486 = vmatpush.bf16.msra.mxu0 %v2355
        %2487 = vmatpush.bf16.msra.mxu0 %v2354
        %2488 = vmatmul.bf16.gmra.mxu0 %v2160
        %v2489 = vpop.f32.mrf.mxu0
        %v2490 = vadd.f32 %v2461, %v2489
        %v2491 = vpop.f32.mrf.mxu0
        %v2492 = vadd.f32 %v2463, %v2491
        %2493 = vmatmul.bf16.gmra.mxu0 %v2165
        %v2494 = vpop.f32.mrf.mxu0
        %v2495 = vadd.f32 %v2466, %v2494
        %v2496 = vpop.f32.mrf.mxu0
        %v2497 = vadd.f32 %v2468, %v2496
        %2498 = vmatmul.bf16.gmra.mxu0 %v2170
        %v2499 = vpop.f32.mrf.mxu0
        %v2500 = vadd.f32 %v2471, %v2499
        %v2501 = vpop.f32.mrf.mxu0
        %v2502 = vadd.f32 %v2473, %v2501
        %2503 = vmatmul.bf16.gmra.mxu0 %v2175
        %v2504 = vpop.f32.mrf.mxu0
        %v2505 = vadd.f32 %v2476, %v2504
        %v2506 = vpop.f32.mrf.mxu0
        %v2507 = vadd.f32 %v2478, %v2506
        %2508 = vdwg.mxu0
        %2509 = vmatpush.bf16.msra.mxu0 %v2369
        %2510 = vmatpush.bf16.msra.mxu0 %v2368
        %2511 = vmatpush.bf16.msra.mxu0 %v2367
        %2512 = vmatpush.bf16.msra.mxu0 %v2366
        %2513 = vmatpush.bf16.msra.mxu0 %v2365
        %2514 = vmatpush.bf16.msra.mxu0 %v2364
        %2515 = vmatpush.bf16.msra.mxu0 %v2363
        %2516 = vmatpush.bf16.msra.mxu0 %v2362
        %2517 = vmatmul.bf16.gmra.mxu0 %v2161
        %v2518 = vpop.f32.mrf.mxu0
        %v2519 = vadd.f32 %v2490, %v2518
        %v2520 = vpop.f32.mrf.mxu0
        %v2521 = vadd.f32 %v2492, %v2520
        %2522 = vmatmul.bf16.gmra.mxu0 %v2166
        %v2523 = vpop.f32.mrf.mxu0
        %v2524 = vadd.f32 %v2495, %v2523
        %v2525 = vpop.f32.mrf.mxu0
        %v2526 = vadd.f32 %v2497, %v2525
        %2527 = vmatmul.bf16.gmra.mxu0 %v2171
        %v2528 = vpop.f32.mrf.mxu0
        %v2529 = vadd.f32 %v2500, %v2528
        %v2530 = vpop.f32.mrf.mxu0
        %v2531 = vadd.f32 %v2502, %v2530
        %2532 = vmatmul.bf16.gmra.mxu0 %v2176
        %v2533 = vpop.f32.mrf.mxu0
        %v2534 = vadd.f32 %v2505, %v2533
        %v2535 = vpop.f32.mrf.mxu0
        %v2536 = vadd.f32 %v2507, %v2535
        %2537 = vdwg.mxu0
        %2538 = vmatpush.bf16.msra.mxu0 0
        %2539 = vmatpush.bf16.msra.mxu0 0
        %2540 = vmatpush.bf16.msra.mxu0 0
        %2541 = vmatpush.bf16.msra.mxu0 0
        %2542 = vmatpush.bf16.msra.mxu0 %v2373
        %2543 = vmatpush.bf16.msra.mxu0 %v2372
        %2544 = vmatpush.bf16.msra.mxu0 %v2371
        %2545 = vmatpush.bf16.msra.mxu0 %v2370
        %2546 = vmatmul.bf16.gmra.mxu0 %v2411
        %v2547 = vpop.f32.mrf.mxu0
        %v2548 = vadd.f32 %v2519, %v2547
        %v2549 = vpop.f32.mrf.mxu0
        %v2550 = vadd.f32 %v2521, %v2549
        %2551 = vmatmul.bf16.gmra.mxu0 %v2414
        %v2552 = vpop.f32.mrf.mxu0
        %v2553 = vadd.f32 %v2524, %v2552
        %v2554 = vpop.f32.mrf.mxu0
        %v2555 = vadd.f32 %v2526, %v2554
        %2556 = vmatmul.bf16.gmra.mxu0 %v2417
        %v2557 = vpop.f32.mrf.mxu0
        %v2558 = vadd.f32 %v2529, %v2557
        %v2559 = vpop.f32.mrf.mxu0
        %v2560 = vadd.f32 %v2531, %v2559
        %2561 = vmatmul.bf16.gmra.mxu0 %v2420
        %v2562 = vpop.f32.mrf.mxu0
        %v2563 = vadd.f32 %v2534, %v2562
        %v2564 = vpop.f32.mrf.mxu0
        %v2565 = vadd.f32 %v2536, %v2564
        %2566 = vdwg.mxu0
        %v2567 = vperm.slane %v704, 0
        %v2568 = vlaneseq
        %v2569 = vshrl.u32 %v2568, 7
        %2571 = vset.pattern.permute.xlu0 %v2569
        %2572 = vperm.xlu0 %2571, %v2567
        %v2573 = vpop.permute.xlu0 %2572
        %v2574 = vperm.slane %v704, 1
        %v2575 = vlaneseq
        %v2576 = vshrl.u32 %v2575, 7
        %2578 = vset.pattern.permute.xlu0 %v2576
        %2579 = vperm.xlu0 %2578, %v2574
        %v2580 = vpop.permute.xlu0 %2579
        %v2581 = vperm.slane %v704, 2
        %v2582 = vlaneseq
        %v2583 = vshrl.u32 %v2582, 7
        %2585 = vset.pattern.permute.xlu0 %v2583
        %2586 = vperm.xlu0 %2585, %v2581
        %v2587 = vpop.permute.xlu0 %2586
        %v2588 = vperm.slane %v704, 3
        %v2589 = vlaneseq
        %v2590 = vshrl.u32 %v2589, 7
        %2592 = vset.pattern.permute.xlu0 %v2590
        %2593 = vperm.xlu0 %2592, %v2588
        %v2594 = vpop.permute.xlu0 %2593
        %v2595 = vperm.slane %v704, 4
        %v2596 = vlaneseq
        %v2597 = vshrl.u32 %v2596, 7
        %2599 = vset.pattern.permute.xlu0 %v2597
        %2600 = vperm.xlu0 %2599, %v2595
        %v2601 = vpop.permute.xlu0 %2600
        %v2602 = vperm.slane %v704, 5
        %v2603 = vlaneseq
        %v2604 = vshrl.u32 %v2603, 7
        %2606 = vset.pattern.permute.xlu0 %v2604
        %2607 = vperm.xlu0 %2606, %v2602
        %v2608 = vpop.permute.xlu0 %2607
        %v2609 = vperm.slane %v704, 6
        %v2610 = vlaneseq
        %v2611 = vshrl.u32 %v2610, 7
        %2613 = vset.pattern.permute.xlu0 %v2611
        %2614 = vperm.xlu0 %2613, %v2609
        %v2615 = vpop.permute.xlu0 %2614
        %v2616 = vperm.slane %v704, 7
        %v2617 = vlaneseq
        %v2618 = vshrl.u32 %v2617, 7
        %2620 = vset.pattern.permute.xlu0 %v2618
        %2621 = vperm.xlu0 %2620, %v2616
        %v2622 = vpop.permute.xlu0 %2621
        %v2623 = vmul.f32 %v2548, %v2573
        %v2624 = vmul.f32 %v2550, %v2580
        %v2625 = vmul.f32 %v2553, %v2587
        %v2626 = vmul.f32 %v2555, %v2594
        %v2627 = vmul.f32 %v2558, %v2601
        %v2628 = vmul.f32 %v2560, %v2608
        %v2629 = vmul.f32 %v2563, %v2615
        %v2630 = vmul.f32 %v2565, %v2622
        %2631 = vst.msk [vmem:[%s377 + $0x2] sm:$0xff] %vm366, %v2623
        %2632 = vst.msk [vmem:[%s377 + $0x12] sm:$0xff] %vm366, %v2624
        %2633 = vst.msk [vmem:[%s377 + $0x22] sm:$0xff] %vm366, %v2625
        %2634 = vst.msk [vmem:[%s377 + $0x32] sm:$0xff] %vm366, %v2626
        %2635 = vst.msk [vmem:[%s377 + $0x42] sm:$0xff] %vm366, %v2627
        %2636 = vst.msk [vmem:[%s377 + $0x52] sm:$0xff] %vm366, %v2628
        %2637 = vst.msk [vmem:[%s377 + $0x62] sm:$0xff] %vm366, %v2629
        %2638 = vst.msk [vmem:[%s377 + $0x72] sm:$0xff] %vm366, %v2630
        %v2639 = vld [vmem:[%s721 + $0x1] sm:$0xff]
        %v2640 = vld [vmem:[%s721 + $0x11] sm:$0xff]
        %v2641 = vld [vmem:[%s721 + $0x21] sm:$0xff]
        %v2642 = vld [vmem:[%s721 + $0x31] sm:$0xff]
        %v2643 = vld [vmem:[%s721 + $0x41] sm:$0xff]
        %v2644 = vld [vmem:[%s721 + $0x51] sm:$0xff]
        %v2645 = vld [vmem:[%s721 + $0x61] sm:$0xff]
        %v2646 = vld [vmem:[%s721 + $0x71] sm:$0xff]
        %v2647 = vpack.c.bf16 %v2639, %v2639
        %v2648 = vpack.c.bf16 %v2640, %v2640
        %v2649 = vpack.c.bf16 %v2641, %v2641
        %v2650 = vpack.c.bf16 %v2642, %v2642
        %v2651 = vpack.c.bf16 %v2643, %v2643
        %v2652 = vpack.c.bf16 %v2644, %v2644
        %v2653 = vpack.c.bf16 %v2645, %v2645
        %v2654 = vpack.c.bf16 %v2646, %v2646
        %2655 = vst.msk [vmem:[#allocation5] sm:$0xf] %vm368, %v2647
        %2656 = vst.msk [vmem:[#allocation5 + $0x14] sm:$0xf] %vm368, %v2648
        %2657 = vst.msk [vmem:[#allocation5 + $0x28] sm:$0xf] %vm368, %v2649
        %2658 = vst.msk [vmem:[#allocation5 + $0x3c] sm:$0xf] %vm368, %v2650
        %2659 = vst.msk [vmem:[#allocation5 + $0x50] sm:$0xf] %vm368, %v2651
        %2660 = vst.msk [vmem:[#allocation5 + $0x64] sm:$0xf] %vm368, %v2652
        %2661 = vst.msk [vmem:[#allocation5 + $0x78] sm:$0xf] %vm368, %v2653
        %2662 = vst.msk [vmem:[#allocation5 + $0x8c] sm:$0xf] %vm368, %v2654
        %v2663 = vld [vmem:[%s721 + $0x2] sm:$0xff]
        %v2664 = vld [vmem:[%s721 + $0x12] sm:$0xff]
        %v2665 = vld [vmem:[%s721 + $0x22] sm:$0xff]
        %v2666 = vld [vmem:[%s721 + $0x32] sm:$0xff]
        %v2667 = vld [vmem:[%s721 + $0x42] sm:$0xff]
        %v2668 = vld [vmem:[%s721 + $0x52] sm:$0xff]
        %v2669 = vld [vmem:[%s721 + $0x62] sm:$0xff]
        %v2670 = vld [vmem:[%s721 + $0x72] sm:$0xff]
        %v2671 = vpack.c.bf16 %v2663, %v2663
        %v2672 = vpack.c.bf16 %v2664, %v2664
        %v2673 = vpack.c.bf16 %v2665, %v2665
        %v2674 = vpack.c.bf16 %v2666, %v2666
        %v2675 = vpack.c.bf16 %v2667, %v2667
        %v2676 = vpack.c.bf16 %v2668, %v2668
        %v2677 = vpack.c.bf16 %v2669, %v2669
        %v2678 = vpack.c.bf16 %v2670, %v2670
        %2687 = vrot.lane.b32.xlu0 %v2671, 64
        %v2688 = vpop.permute.xlu0 %2687
        %2689 = vrot.lane.b32.xlu0 %v2672, 64
        %v2690 = vpop.permute.xlu0 %2689
        %2691 = vrot.lane.b32.xlu0 %v2673, 64
        %v2692 = vpop.permute.xlu0 %2691
        %2693 = vrot.lane.b32.xlu0 %v2674, 64
        %v2694 = vpop.permute.xlu0 %2693
        %2695 = vrot.lane.b32.xlu0 %v2675, 64
        %v2696 = vpop.permute.xlu0 %2695
        %2697 = vrot.lane.b32.xlu0 %v2676, 64
        %v2698 = vpop.permute.xlu0 %2697
        %2699 = vrot.lane.b32.xlu0 %v2677, 64
        %v2700 = vpop.permute.xlu0 %2699
        %2701 = vrot.lane.b32.xlu0 %v2678, 64
        %v2702 = vpop.permute.xlu0 %2701
        %2711 = vst.msk [vmem:[#allocation5] sm:$0xf] %vm794, %v2688
        %2712 = vst.msk [vmem:[#allocation5 + $0x14] sm:$0xf] %vm794, %v2690
        %2713 = vst.msk [vmem:[#allocation5 + $0x28] sm:$0xf] %vm794, %v2692
        %2714 = vst.msk [vmem:[#allocation5 + $0x3c] sm:$0xf] %vm794, %v2694
        %2715 = vst.msk [vmem:[#allocation5 + $0x50] sm:$0xf] %vm794, %v2696
        %2716 = vst.msk [vmem:[#allocation5 + $0x64] sm:$0xf] %vm794, %v2698
        %2717 = vst.msk [vmem:[#allocation5 + $0x78] sm:$0xf] %vm794, %v2700
        %2718 = vst.msk [vmem:[#allocation5 + $0x8c] sm:$0xf] %vm794, %v2702
        %v2719 = vld [vmem:[%s721 + $0x3] sm:$0xff]
        %v2720 = vld [vmem:[%s721 + $0x13] sm:$0xff]
        %v2721 = vld [vmem:[%s721 + $0x23] sm:$0xff]
        %v2722 = vld [vmem:[%s721 + $0x33] sm:$0xff]
        %v2723 = vld [vmem:[%s721 + $0x43] sm:$0xff]
        %v2724 = vld [vmem:[%s721 + $0x53] sm:$0xff]
        %v2725 = vld [vmem:[%s721 + $0x63] sm:$0xff]
        %v2726 = vld [vmem:[%s721 + $0x73] sm:$0xff]
        %v2727 = vpack.c.bf16 %v2719, %v2719
        %v2728 = vpack.c.bf16 %v2720, %v2720
        %v2729 = vpack.c.bf16 %v2721, %v2721
        %v2730 = vpack.c.bf16 %v2722, %v2722
        %v2731 = vpack.c.bf16 %v2723, %v2723
        %v2732 = vpack.c.bf16 %v2724, %v2724
        %v2733 = vpack.c.bf16 %v2725, %v2725
        %v2734 = vpack.c.bf16 %v2726, %v2726
        %2735 = vst.msk [vmem:[#allocation5 + $0x4] sm:$0xf] %vm368, %v2727
        %2736 = vst.msk [vmem:[#allocation5 + $0x18] sm:$0xf] %vm368, %v2728
        %2737 = vst.msk [vmem:[#allocation5 + $0x2c] sm:$0xf] %vm368, %v2729
        %2738 = vst.msk [vmem:[#allocation5 + $0x40] sm:$0xf] %vm368, %v2730
        %2739 = vst.msk [vmem:[#allocation5 + $0x54] sm:$0xf] %vm368, %v2731
        %2740 = vst.msk [vmem:[#allocation5 + $0x68] sm:$0xf] %vm368, %v2732
        %2741 = vst.msk [vmem:[#allocation5 + $0x7c] sm:$0xf] %vm368, %v2733
        %2742 = vst.msk [vmem:[#allocation5 + $0x90] sm:$0xf] %vm368, %v2734
        %v2743 = vld [vmem:[%s377 + $0x1] sm:$0xff]
        %v2744 = vld [vmem:[%s377 + $0x11] sm:$0xff]
        %v2745 = vld [vmem:[%s377 + $0x21] sm:$0xff]
        %v2746 = vld [vmem:[%s377 + $0x31] sm:$0xff]
        %v2747 = vld [vmem:[%s377 + $0x41] sm:$0xff]
        %v2748 = vld [vmem:[%s377 + $0x51] sm:$0xff]
        %v2749 = vld [vmem:[%s377 + $0x61] sm:$0xff]
        %v2750 = vld [vmem:[%s377 + $0x71] sm:$0xff]
        %v2751 = vpack.c.bf16 %v2743, %v2743
        %v2752 = vpack.c.bf16 %v2744, %v2744
        %v2753 = vpack.c.bf16 %v2745, %v2745
        %v2754 = vpack.c.bf16 %v2746, %v2746
        %v2755 = vpack.c.bf16 %v2747, %v2747
        %v2756 = vpack.c.bf16 %v2748, %v2748
        %v2757 = vpack.c.bf16 %v2749, %v2749
        %v2758 = vpack.c.bf16 %v2750, %v2750
        %2767 = vrot.lane.b32.xlu0 %v2751, 64
        %v2768 = vpop.permute.xlu0 %2767
        %2769 = vrot.lane.b32.xlu0 %v2752, 64
        %v2770 = vpop.permute.xlu0 %2769
        %2771 = vrot.lane.b32.xlu0 %v2753, 64
        %v2772 = vpop.permute.xlu0 %2771
        %2773 = vrot.lane.b32.xlu0 %v2754, 64
        %v2774 = vpop.permute.xlu0 %2773
        %2775 = vrot.lane.b32.xlu0 %v2755, 64
        %v2776 = vpop.permute.xlu0 %2775
        %2777 = vrot.lane.b32.xlu0 %v2756, 64
        %v2778 = vpop.permute.xlu0 %2777
        %2779 = vrot.lane.b32.xlu0 %v2757, 64
        %v2780 = vpop.permute.xlu0 %2779
        %2781 = vrot.lane.b32.xlu0 %v2758, 64
        %v2782 = vpop.permute.xlu0 %2781
        %2791 = vst.msk [vmem:[#allocation5 + $0x4] sm:$0xf] %vm794, %v2768
        %2792 = vst.msk [vmem:[#allocation5 + $0x18] sm:$0xf] %vm794, %v2770
        %2793 = vst.msk [vmem:[#allocation5 + $0x2c] sm:$0xf] %vm794, %v2772
        %2794 = vst.msk [vmem:[#allocation5 + $0x40] sm:$0xf] %vm794, %v2774
        %2795 = vst.msk [vmem:[#allocation5 + $0x54] sm:$0xf] %vm794, %v2776
        %2796 = vst.msk [vmem:[#allocation5 + $0x68] sm:$0xf] %vm794, %v2778
        %2797 = vst.msk [vmem:[#allocation5 + $0x7c] sm:$0xf] %vm794, %v2780
        %2798 = vst.msk [vmem:[#allocation5 + $0x90] sm:$0xf] %vm794, %v2782
        %v2799 = vld [vmem:[%s377 + $0x2] sm:$0xff]
        %v2800 = vld [vmem:[%s377 + $0x12] sm:$0xff]
        %v2801 = vld [vmem:[%s377 + $0x22] sm:$0xff]
        %v2802 = vld [vmem:[%s377 + $0x32] sm:$0xff]
        %v2803 = vld [vmem:[%s377 + $0x42] sm:$0xff]
        %v2804 = vld [vmem:[%s377 + $0x52] sm:$0xff]
        %v2805 = vld [vmem:[%s377 + $0x62] sm:$0xff]
        %v2806 = vld [vmem:[%s377 + $0x72] sm:$0xff]
        %v2807 = vpack.c.bf16 %v2799, %v2799
        %v2808 = vpack.c.bf16 %v2800, %v2800
        %v2809 = vpack.c.bf16 %v2801, %v2801
        %v2810 = vpack.c.bf16 %v2802, %v2802
        %v2811 = vpack.c.bf16 %v2803, %v2803
        %v2812 = vpack.c.bf16 %v2804, %v2804
        %v2813 = vpack.c.bf16 %v2805, %v2805
        %v2814 = vpack.c.bf16 %v2806, %v2806
        %2815 = vst.msk [vmem:[#allocation5 + $0x8] sm:$0xf] %vm368, %v2807
        %2816 = vst.msk [vmem:[#allocation5 + $0x1c] sm:$0xf] %vm368, %v2808
        %2817 = vst.msk [vmem:[#allocation5 + $0x30] sm:$0xf] %vm368, %v2809
        %2818 = vst.msk [vmem:[#allocation5 + $0x44] sm:$0xf] %vm368, %v2810
        %2819 = vst.msk [vmem:[#allocation5 + $0x58] sm:$0xf] %vm368, %v2811
        %2820 = vst.msk [vmem:[#allocation5 + $0x6c] sm:$0xf] %vm368, %v2812
        %2821 = vst.msk [vmem:[#allocation5 + $0x80] sm:$0xf] %vm368, %v2813
        %2822 = vst.msk [vmem:[#allocation5 + $0x94] sm:$0xf] %vm368, %v2814
        %v2823 = vld [vmem:[%s377 + $0x3] sm:$0xff]
        %v2824 = vld [vmem:[%s377 + $0x13] sm:$0xff]
        %v2825 = vld [vmem:[%s377 + $0x23] sm:$0xff]
        %v2826 = vld [vmem:[%s377 + $0x33] sm:$0xff]
        %v2827 = vld [vmem:[%s377 + $0x43] sm:$0xff]
        %v2828 = vld [vmem:[%s377 + $0x53] sm:$0xff]
        %v2829 = vld [vmem:[%s377 + $0x63] sm:$0xff]
        %v2830 = vld [vmem:[%s377 + $0x73] sm:$0xff]
        %v2831 = vpack.c.bf16 %v2823, %v2823
        %v2832 = vpack.c.bf16 %v2824, %v2824
        %v2833 = vpack.c.bf16 %v2825, %v2825
        %v2834 = vpack.c.bf16 %v2826, %v2826
        %v2835 = vpack.c.bf16 %v2827, %v2827
        %v2836 = vpack.c.bf16 %v2828, %v2828
        %v2837 = vpack.c.bf16 %v2829, %v2829
        %v2838 = vpack.c.bf16 %v2830, %v2830
        %2847 = vrot.lane.b32.xlu0 %v2831, 64
        %v2848 = vpop.permute.xlu0 %2847
        %2849 = vrot.lane.b32.xlu0 %v2832, 64
        %v2850 = vpop.permute.xlu0 %2849
        %2851 = vrot.lane.b32.xlu0 %v2833, 64
        %v2852 = vpop.permute.xlu0 %2851
        %2853 = vrot.lane.b32.xlu0 %v2834, 64
        %v2854 = vpop.permute.xlu0 %2853
        %2855 = vrot.lane.b32.xlu0 %v2835, 64
        %v2856 = vpop.permute.xlu0 %2855
        %2857 = vrot.lane.b32.xlu0 %v2836, 64
        %v2858 = vpop.permute.xlu0 %2857
        %2859 = vrot.lane.b32.xlu0 %v2837, 64
        %v2860 = vpop.permute.xlu0 %2859
        %2861 = vrot.lane.b32.xlu0 %v2838, 64
        %v2862 = vpop.permute.xlu0 %2861
        %2871 = vst.msk [vmem:[#allocation5 + $0x8] sm:$0xf] %vm794, %v2848
        %2872 = vst.msk [vmem:[#allocation5 + $0x1c] sm:$0xf] %vm794, %v2850
        %2873 = vst.msk [vmem:[#allocation5 + $0x30] sm:$0xf] %vm794, %v2852
        %2874 = vst.msk [vmem:[#allocation5 + $0x44] sm:$0xf] %vm794, %v2854
        %2875 = vst.msk [vmem:[#allocation5 + $0x58] sm:$0xf] %vm794, %v2856
        %2876 = vst.msk [vmem:[#allocation5 + $0x6c] sm:$0xf] %vm794, %v2858
        %2877 = vst.msk [vmem:[#allocation5 + $0x80] sm:$0xf] %vm794, %v2860
        %2878 = vst.msk [vmem:[#allocation5 + $0x94] sm:$0xf] %vm794, %v2862
        %v2879 = vld [vmem:[%s963 + $0x1] sm:$0xff]
        %v2880 = vld [vmem:[%s963 + $0x11] sm:$0xff]
        %v2881 = vld [vmem:[%s963 + $0x21] sm:$0xff]
        %v2882 = vld [vmem:[%s963 + $0x31] sm:$0xff]
        %v2883 = vld [vmem:[%s963 + $0x41] sm:$0xff]
        %v2884 = vld [vmem:[%s963 + $0x51] sm:$0xff]
        %v2885 = vld [vmem:[%s963 + $0x61] sm:$0xff]
        %v2886 = vld [vmem:[%s963 + $0x71] sm:$0xff]
        %v2887 = vpack.c.bf16 %v2879, %v2879
        %v2888 = vpack.c.bf16 %v2880, %v2880
        %v2889 = vpack.c.bf16 %v2881, %v2881
        %v2890 = vpack.c.bf16 %v2882, %v2882
        %v2891 = vpack.c.bf16 %v2883, %v2883
        %v2892 = vpack.c.bf16 %v2884, %v2884
        %v2893 = vpack.c.bf16 %v2885, %v2885
        %v2894 = vpack.c.bf16 %v2886, %v2886
        %2895 = vst.msk [vmem:[#allocation5 + $0xc] sm:$0xf] %vm368, %v2887
        %2896 = vst.msk [vmem:[#allocation5 + $0x20] sm:$0xf] %vm368, %v2888
        %2897 = vst.msk [vmem:[#allocation5 + $0x34] sm:$0xf] %vm368, %v2889
        %2898 = vst.msk [vmem:[#allocation5 + $0x48] sm:$0xf] %vm368, %v2890
        %2899 = vst.msk [vmem:[#allocation5 + $0x5c] sm:$0xf] %vm368, %v2891
        %2900 = vst.msk [vmem:[#allocation5 + $0x70] sm:$0xf] %vm368, %v2892
        %2901 = vst.msk [vmem:[#allocation5 + $0x84] sm:$0xf] %vm368, %v2893
        %2902 = vst.msk [vmem:[#allocation5 + $0x98] sm:$0xf] %vm368, %v2894
        %v2903 = vld [vmem:[%s963 + $0x2] sm:$0xff]
        %v2904 = vld [vmem:[%s963 + $0x12] sm:$0xff]
        %v2905 = vld [vmem:[%s963 + $0x22] sm:$0xff]
        %v2906 = vld [vmem:[%s963 + $0x32] sm:$0xff]
        %v2907 = vld [vmem:[%s963 + $0x42] sm:$0xff]
        %v2908 = vld [vmem:[%s963 + $0x52] sm:$0xff]
        %v2909 = vld [vmem:[%s963 + $0x62] sm:$0xff]
        %v2910 = vld [vmem:[%s963 + $0x72] sm:$0xff]
        %v2911 = vpack.c.bf16 %v2903, %v2903
        %v2912 = vpack.c.bf16 %v2904, %v2904
        %v2913 = vpack.c.bf16 %v2905, %v2905
        %v2914 = vpack.c.bf16 %v2906, %v2906
        %v2915 = vpack.c.bf16 %v2907, %v2907
        %v2916 = vpack.c.bf16 %v2908, %v2908
        %v2917 = vpack.c.bf16 %v2909, %v2909
        %v2918 = vpack.c.bf16 %v2910, %v2910
        %2927 = vrot.lane.b32.xlu0 %v2911, 64
        %v2928 = vpop.permute.xlu0 %2927
        %2929 = vrot.lane.b32.xlu0 %v2912, 64
        %v2930 = vpop.permute.xlu0 %2929
        %2931 = vrot.lane.b32.xlu0 %v2913, 64
        %v2932 = vpop.permute.xlu0 %2931
        %2933 = vrot.lane.b32.xlu0 %v2914, 64
        %v2934 = vpop.permute.xlu0 %2933
        %2935 = vrot.lane.b32.xlu0 %v2915, 64
        %v2936 = vpop.permute.xlu0 %2935
        %2937 = vrot.lane.b32.xlu0 %v2916, 64
        %v2938 = vpop.permute.xlu0 %2937
        %2939 = vrot.lane.b32.xlu0 %v2917, 64
        %v2940 = vpop.permute.xlu0 %2939
        %2941 = vrot.lane.b32.xlu0 %v2918, 64
        %v2942 = vpop.permute.xlu0 %2941
        %2951 = vst.msk [vmem:[#allocation5 + $0xc] sm:$0xf] %vm794, %v2928
        %2952 = vst.msk [vmem:[#allocation5 + $0x20] sm:$0xf] %vm794, %v2930
        %2953 = vst.msk [vmem:[#allocation5 + $0x34] sm:$0xf] %vm794, %v2932
        %2954 = vst.msk [vmem:[#allocation5 + $0x48] sm:$0xf] %vm794, %v2934
        %2955 = vst.msk [vmem:[#allocation5 + $0x5c] sm:$0xf] %vm794, %v2936
        %2956 = vst.msk [vmem:[#allocation5 + $0x70] sm:$0xf] %vm794, %v2938
        %2957 = vst.msk [vmem:[#allocation5 + $0x84] sm:$0xf] %vm794, %v2940
        %2958 = vst.msk [vmem:[#allocation5 + $0x98] sm:$0xf] %vm794, %v2942
        %v2959 = vld [vmem:[%s963 + $0x3] sm:$0xff]
        %v2960 = vld [vmem:[%s963 + $0x13] sm:$0xff]
        %v2961 = vld [vmem:[%s963 + $0x23] sm:$0xff]
        %v2962 = vld [vmem:[%s963 + $0x33] sm:$0xff]
        %v2963 = vld [vmem:[%s963 + $0x43] sm:$0xff]
        %v2964 = vld [vmem:[%s963 + $0x53] sm:$0xff]
        %v2965 = vld [vmem:[%s963 + $0x63] sm:$0xff]
        %v2966 = vld [vmem:[%s963 + $0x73] sm:$0xff]
        %v2967 = vpack.c.bf16 %v2959, %v2959
        %v2968 = vpack.c.bf16 %v2960, %v2960
        %v2969 = vpack.c.bf16 %v2961, %v2961
        %v2970 = vpack.c.bf16 %v2962, %v2962
        %v2971 = vpack.c.bf16 %v2963, %v2963
        %v2972 = vpack.c.bf16 %v2964, %v2964
        %v2973 = vpack.c.bf16 %v2965, %v2965
        %v2974 = vpack.c.bf16 %v2966, %v2966
        %2975 = vst.msk [vmem:[#allocation5 + $0x10] sm:$0xf] %vm368, %v2967
        %2976 = vst.msk [vmem:[#allocation5 + $0x24] sm:$0xf] %vm368, %v2968
        %2977 = vst.msk [vmem:[#allocation5 + $0x38] sm:$0xf] %vm368, %v2969
        %2978 = vst.msk [vmem:[#allocation5 + $0x4c] sm:$0xf] %vm368, %v2970
        %2979 = vst.msk [vmem:[#allocation5 + $0x60] sm:$0xf] %vm368, %v2971
        %2980 = vst.msk [vmem:[#allocation5 + $0x74] sm:$0xf] %vm368, %v2972
        %2981 = vst.msk [vmem:[#allocation5 + $0x88] sm:$0xf] %vm368, %v2973
        %2982 = vst.msk [vmem:[#allocation5 + $0x9c] sm:$0xf] %vm368, %v2974
        %v2983 = vld [vmem:[#allocation5] sm:$0xff]
        %v2984 = vld [vmem:[#allocation5 + $0x8] sm:$0xff]
        %v2985 = vld [vmem:[#allocation5 + $0x10] sm:$0xf]
        %v2986 = vld [vmem:[#allocation5 + $0x14] sm:$0xff]
        %v2987 = vld [vmem:[#allocation5 + $0x1c] sm:$0xff]
        %v2988 = vld [vmem:[#allocation5 + $0x24] sm:$0xf]
        %v2989 = vld [vmem:[#allocation5 + $0x28] sm:$0xff]
        %v2990 = vld [vmem:[#allocation5 + $0x30] sm:$0xff]
        %v2991 = vld [vmem:[#allocation5 + $0x38] sm:$0xf]
        %v2992 = vld [vmem:[#allocation5 + $0x3c] sm:$0xff]
        %v2993 = vld [vmem:[#allocation5 + $0x44] sm:$0xff]
        %v2994 = vld [vmem:[#allocation5 + $0x4c] sm:$0xf]
        %v2995 = vld [vmem:[#allocation5 + $0x50] sm:$0xff]
        %v2996 = vld [vmem:[#allocation5 + $0x58] sm:$0xff]
        %v2997 = vld [vmem:[#allocation5 + $0x60] sm:$0xf]
        %v2998 = vld [vmem:[#allocation5 + $0x64] sm:$0xff]
        %v2999 = vld [vmem:[#allocation5 + $0x6c] sm:$0xff]
        %v3000 = vld [vmem:[#allocation5 + $0x74] sm:$0xf]
        %v3001 = vld [vmem:[#allocation5 + $0x78] sm:$0xff]
        %v3002 = vld [vmem:[#allocation5 + $0x80] sm:$0xff]
        %v3003 = vld [vmem:[#allocation5 + $0x88] sm:$0xf]
        %v3004 = vld [vmem:[#allocation5 + $0x8c] sm:$0xff]
        %v3005 = vld [vmem:[#allocation5 + $0x94] sm:$0xff]
        %v3006 = vld [vmem:[#allocation5 + $0x9c] sm:$0xf]
        %v3007 = vld [vmem:[%s7] sm:$0xf]
        %v3008 = vld [vmem:[%s7 + $0x4] sm:$0xf]
        %v3009 = vld [vmem:[%s7 + $0x8] sm:$0xf]
        %v3010 = vld [vmem:[%s7 + $0xc] sm:$0xf]
        %v3011 = vld [vmem:[%s7 + $0x10] sm:$0xf]
        %v3012 = vld [vmem:[%s7 + $0x14] sm:$0xf]
        %v3013 = vld [vmem:[%s7 + $0x18] sm:$0xf]
        %v3014 = vld [vmem:[%s7 + $0x1c] sm:$0xf]
        %v3015 = vld [vmem:[%s7 + $0x20] sm:$0xf]
        %v3016 = vld [vmem:[%s7 + $0x24] sm:$0xf]
        %v3017 = vld [vmem:[%s7 + $0x28] sm:$0xf]
        %v3018 = vld [vmem:[%s7 + $0x2c] sm:$0xf]
        %v3019 = vld [vmem:[%s7 + $0x30] sm:$0xf]
        %v3020 = vld [vmem:[%s7 + $0x34] sm:$0xf]
        %v3021 = vld [vmem:[%s7 + $0x38] sm:$0xf]
        %v3022 = vld [vmem:[%s7 + $0x3c] sm:$0xf]
        %v3023 = vld [vmem:[%s7 + $0x40] sm:$0xf]
        %v3024 = vld [vmem:[%s7 + $0x44] sm:$0xf]
        %v3025 = vld [vmem:[%s7 + $0x48] sm:$0xf]
        %v3026 = vld [vmem:[%s7 + $0x4c] sm:$0xf]
        %v3027 = vld [vmem:[%s7 + $0x50] sm:$0xf]
        %v3028 = vld [vmem:[%s7 + $0x54] sm:$0xf]
        %v3029 = vld [vmem:[%s7 + $0x58] sm:$0xf]
        %v3030 = vld [vmem:[%s7 + $0x5c] sm:$0xf]
        %v3031 = vld [vmem:[%s7 + $0x60] sm:$0xf]
        %v3032 = vld [vmem:[%s7 + $0x64] sm:$0xf]
        %v3033 = vld [vmem:[%s7 + $0x68] sm:$0xf]
        %v3034 = vld [vmem:[%s7 + $0x6c] sm:$0xf]
        %v3035 = vld [vmem:[%s7 + $0x70] sm:$0xf]
        %v3036 = vld [vmem:[%s7 + $0x74] sm:$0xf]
        %v3037 = vld [vmem:[%s7 + $0x78] sm:$0xf]
        %v3038 = vld [vmem:[%s7 + $0x7c] sm:$0xf]
        %v3039 = vld [vmem:[%s7 + $0x80] sm:$0xf]
        %v3040 = vld [vmem:[%s7 + $0x84] sm:$0xf]
        %v3041 = vld [vmem:[%s7 + $0x88] sm:$0xf]
        %v3042 = vld [vmem:[%s7 + $0x8c] sm:$0xf]
        %v3043 = vld [vmem:[%s7 + $0x90] sm:$0xf]
        %v3044 = vld [vmem:[%s7 + $0x94] sm:$0xf]
        %v3045 = vld [vmem:[%s7 + $0x98] sm:$0xf]
        %v3046 = vld [vmem:[%s7 + $0x9c] sm:$0xf]
        %v3047 = vld [vmem:[%s7 + $0xa0] sm:$0xf]
        %v3048 = vld [vmem:[%s7 + $0xa4] sm:$0xf]
        %v3049 = vld [vmem:[%s7 + $0xa8] sm:$0xf]
        %v3050 = vld [vmem:[%s7 + $0xac] sm:$0xf]
        %v3051 = vld [vmem:[%s7 + $0xb0] sm:$0xf]
        %v3052 = vld [vmem:[%s7 + $0xb4] sm:$0xf]
        %v3053 = vld [vmem:[%s7 + $0xb8] sm:$0xf]
        %v3054 = vld [vmem:[%s7 + $0xbc] sm:$0xf]
        %v3055 = vld [vmem:[%s7 + $0xc0] sm:$0xf]
        %v3056 = vld [vmem:[%s7 + $0xc4] sm:$0xf]
        %v3057 = vld [vmem:[%s7 + $0xc8] sm:$0xf]
        %v3058 = vld [vmem:[%s7 + $0xcc] sm:$0xf]
        %v3059 = vld [vmem:[%s7 + $0xd0] sm:$0xf]
        %v3060 = vld [vmem:[%s7 + $0xd4] sm:$0xf]
        %v3061 = vld [vmem:[%s7 + $0xd8] sm:$0xf]
        %v3062 = vld [vmem:[%s7 + $0xdc] sm:$0xf]
        %v3063 = vld [vmem:[%s7 + $0xe0] sm:$0xf]
        %v3064 = vld [vmem:[%s7 + $0xe4] sm:$0xf]
        %v3065 = vld [vmem:[%s7 + $0xe8] sm:$0xf]
        %v3066 = vld [vmem:[%s7 + $0xec] sm:$0xf]
        %v3067 = vld [vmem:[%s7 + $0xf0] sm:$0xf]
        %v3068 = vld [vmem:[%s7 + $0xf4] sm:$0xf]
        %v3069 = vld [vmem:[%s7 + $0xf8] sm:$0xf]
        %v3070 = vld [vmem:[%s7 + $0xfc] sm:$0xf]
        %v3071 = vld [vmem:[%s7 + $0x100] sm:$0xf]
        %v3072 = vld [vmem:[%s7 + $0x104] sm:$0xf]
        %v3073 = vld [vmem:[%s7 + $0x108] sm:$0xf]
        %v3074 = vld [vmem:[%s7 + $0x10c] sm:$0xf]
        %v3075 = vld [vmem:[%s7 + $0x110] sm:$0xf]
        %v3076 = vld [vmem:[%s7 + $0x114] sm:$0xf]
        %v3077 = vld [vmem:[%s7 + $0x118] sm:$0xf]
        %v3078 = vld [vmem:[%s7 + $0x11c] sm:$0xf]
        %v3079 = vld [vmem:[%s8] sm:$0x1]
        %v3081 = vperm.slane %v3079, 0
        %v3107 = vunpack.c.l.b16 %v2983
        %v3108 = vunpack.c.h.b16 %v2983
        %v3109 = vunpack.c.l.b16 %v2984
        %v3110 = vunpack.c.h.b16 %v2984
        %v3111 = vunpack.c.l.b16 %v2985
        %v3112 = vunpack.c.l.b16 %v2986
        %v3113 = vunpack.c.h.b16 %v2986
        %v3114 = vunpack.c.l.b16 %v2987
        %v3115 = vunpack.c.h.b16 %v2987
        %v3116 = vunpack.c.l.b16 %v2988
        %v3117 = vunpack.c.l.b16 %v2989
        %v3118 = vunpack.c.h.b16 %v2989
        %v3119 = vunpack.c.l.b16 %v2990
        %v3120 = vunpack.c.h.b16 %v2990
        %v3121 = vunpack.c.l.b16 %v2991
        %v3122 = vunpack.c.l.b16 %v2992
        %v3123 = vunpack.c.h.b16 %v2992
        %v3124 = vunpack.c.l.b16 %v2993
        %v3125 = vunpack.c.h.b16 %v2993
        %v3126 = vunpack.c.l.b16 %v2994
        %v3127 = vunpack.c.l.b16 %v2995
        %v3128 = vunpack.c.h.b16 %v2995
        %v3129 = vunpack.c.l.b16 %v2996
        %v3130 = vunpack.c.h.b16 %v2996
        %v3131 = vunpack.c.l.b16 %v2997
        %v3132 = vunpack.c.l.b16 %v2998
        %v3133 = vunpack.c.h.b16 %v2998
        %v3134 = vunpack.c.l.b16 %v2999
        %v3135 = vunpack.c.h.b16 %v2999
        %v3136 = vunpack.c.l.b16 %v3000
        %v3137 = vunpack.c.l.b16 %v3001
        %v3138 = vunpack.c.h.b16 %v3001
        %v3139 = vunpack.c.l.b16 %v3002
        %v3140 = vunpack.c.h.b16 %v3002
        %v3141 = vunpack.c.l.b16 %v3003
        %v3142 = vunpack.c.l.b16 %v3004
        %v3143 = vunpack.c.h.b16 %v3004
        %v3144 = vunpack.c.l.b16 %v3005
        %v3145 = vunpack.c.h.b16 %v3005
        %v3146 = vunpack.c.l.b16 %v3006
        %v3147 = vpack.c.b16 %v3112, %v3107
        %v3148 = vpack.c.b16 %v3113, %v3108
        %v3149 = vpack.c.b16 %v3114, %v3109
        %v3150 = vpack.c.b16 %v3115, %v3110
        %v3151 = vpack.c.b16 %v3116, %v3111
        %v3152 = vpack.c.b16 %v3122, %v3117
        %v3153 = vpack.c.b16 %v3123, %v3118
        %v3154 = vpack.c.b16 %v3124, %v3119
        %v3155 = vpack.c.b16 %v3125, %v3120
        %v3156 = vpack.c.b16 %v3126, %v3121
        %v3157 = vpack.c.b16 %v3132, %v3127
        %v3158 = vpack.c.b16 %v3133, %v3128
        %v3159 = vpack.c.b16 %v3134, %v3129
        %v3160 = vpack.c.b16 %v3135, %v3130
        %v3161 = vpack.c.b16 %v3136, %v3131
        %v3162 = vpack.c.b16 %v3142, %v3137
        %v3163 = vpack.c.b16 %v3143, %v3138
        %v3164 = vpack.c.b16 %v3144, %v3139
        %v3165 = vpack.c.b16 %v3145, %v3140
        %v3166 = vpack.c.b16 %v3146, %v3141
        %v3255 = vunpack.c.l.b16 %v3007
        %v3256 = vunpack.c.l.b16 %v3008
        %v3257 = vunpack.c.l.b16 %v3009
        %v3258 = vunpack.c.l.b16 %v3010
        %v3259 = vunpack.c.l.b16 %v3011
        %v3260 = vunpack.c.l.b16 %v3012
        %v3261 = vunpack.c.l.b16 %v3013
        %v3262 = vunpack.c.l.b16 %v3014
        %v3263 = vunpack.c.l.b16 %v3015
        %v3264 = vunpack.c.l.b16 %v3016
        %v3265 = vunpack.c.l.b16 %v3017
        %v3266 = vunpack.c.l.b16 %v3018
        %v3267 = vunpack.c.l.b16 %v3019
        %v3268 = vunpack.c.l.b16 %v3020
        %v3269 = vunpack.c.l.b16 %v3021
        %v3270 = vunpack.c.l.b16 %v3022
        %v3271 = vunpack.c.l.b16 %v3023
        %v3272 = vunpack.c.l.b16 %v3024
        %v3273 = vunpack.c.l.b16 %v3025
        %v3274 = vunpack.c.l.b16 %v3026
        %v3275 = vunpack.c.l.b16 %v3027
        %v3276 = vunpack.c.l.b16 %v3028
        %v3277 = vunpack.c.l.b16 %v3029
        %v3278 = vunpack.c.l.b16 %v3030
        %v3279 = vunpack.c.l.b16 %v3031
        %v3280 = vunpack.c.l.b16 %v3032
        %v3281 = vunpack.c.l.b16 %v3033
        %v3282 = vunpack.c.l.b16 %v3034
        %v3283 = vunpack.c.l.b16 %v3035
        %v3284 = vunpack.c.l.b16 %v3036
        %v3285 = vunpack.c.l.b16 %v3037
        %v3286 = vunpack.c.l.b16 %v3038
        %v3287 = vunpack.c.l.b16 %v3039
        %v3288 = vunpack.c.l.b16 %v3040
        %v3289 = vunpack.c.l.b16 %v3041
        %v3290 = vunpack.c.l.b16 %v3042
        %v3291 = vunpack.c.l.b16 %v3043
        %v3292 = vunpack.c.l.b16 %v3044
        %v3293 = vunpack.c.l.b16 %v3045
        %v3294 = vunpack.c.l.b16 %v3046
        %v3295 = vunpack.c.l.b16 %v3047
        %v3296 = vunpack.c.l.b16 %v3048
        %v3297 = vunpack.c.l.b16 %v3049
        %v3298 = vunpack.c.l.b16 %v3050
        %v3299 = vunpack.c.l.b16 %v3051
        %v3300 = vunpack.c.l.b16 %v3052
        %v3301 = vunpack.c.l.b16 %v3053
        %v3302 = vunpack.c.l.b16 %v3054
        %v3303 = vunpack.c.l.b16 %v3055
        %v3304 = vunpack.c.l.b16 %v3056
        %v3305 = vunpack.c.l.b16 %v3057
        %v3306 = vunpack.c.l.b16 %v3058
        %v3307 = vunpack.c.l.b16 %v3059
        %v3308 = vunpack.c.l.b16 %v3060
        %v3309 = vunpack.c.l.b16 %v3061
        %v3310 = vunpack.c.l.b16 %v3062
        %v3311 = vunpack.c.l.b16 %v3063
        %v3312 = vunpack.c.l.b16 %v3064
        %v3313 = vunpack.c.l.b16 %v3065
        %v3314 = vunpack.c.l.b16 %v3066
        %v3315 = vunpack.c.l.b16 %v3067
        %v3316 = vunpack.c.l.b16 %v3068
        %v3317 = vunpack.c.l.b16 %v3069
        %v3318 = vunpack.c.l.b16 %v3070
        %v3319 = vunpack.c.l.b16 %v3071
        %v3320 = vunpack.c.l.b16 %v3072
        %v3321 = vunpack.c.l.b16 %v3073
        %v3322 = vunpack.c.l.b16 %v3074
        %v3323 = vunpack.c.l.b16 %v3075
        %v3324 = vunpack.c.l.b16 %v3076
        %v3325 = vunpack.c.l.b16 %v3077
        %v3326 = vunpack.c.l.b16 %v3078
        %v3327 = vpack.c.b16 %v3256, %v3255
        %v3328 = vpack.c.b16 %v3258, %v3257
        %v3329 = vpack.c.b16 %v3260, %v3259
        %v3330 = vpack.c.b16 %v3262, %v3261
        %v3331 = vpack.c.b16 %v3264, %v3263
        %v3332 = vpack.c.b16 %v3266, %v3265
        %v3333 = vpack.c.b16 %v3268, %v3267
        %v3334 = vpack.c.b16 %v3270, %v3269
        %v3335 = vpack.c.b16 %v3272, %v3271
        %v3336 = vpack.c.b16 %v3274, %v3273
        %v3337 = vpack.c.b16 %v3276, %v3275
        %v3338 = vpack.c.b16 %v3278, %v3277
        %v3339 = vpack.c.b16 %v3280, %v3279
        %v3340 = vpack.c.b16 %v3282, %v3281
        %v3341 = vpack.c.b16 %v3284, %v3283
        %v3342 = vpack.c.b16 %v3286, %v3285
        %v3343 = vpack.c.b16 %v3288, %v3287
        %v3344 = vpack.c.b16 %v3290, %v3289
        %v3345 = vpack.c.b16 %v3292, %v3291
        %v3346 = vpack.c.b16 %v3294, %v3293
        %v3347 = vpack.c.b16 %v3296, %v3295
        %v3348 = vpack.c.b16 %v3298, %v3297
        %v3349 = vpack.c.b16 %v3300, %v3299
        %v3350 = vpack.c.b16 %v3302, %v3301
        %v3351 = vpack.c.b16 %v3304, %v3303
        %v3352 = vpack.c.b16 %v3306, %v3305
        %v3353 = vpack.c.b16 %v3308, %v3307
        %v3354 = vpack.c.b16 %v3310, %v3309
        %v3355 = vpack.c.b16 %v3312, %v3311
        %v3356 = vpack.c.b16 %v3314, %v3313
        %v3357 = vpack.c.b16 %v3316, %v3315
        %v3358 = vpack.c.b16 %v3318, %v3317
        %v3359 = vpack.c.b16 %v3320, %v3319
        %v3360 = vpack.c.b16 %v3322, %v3321
        %v3361 = vpack.c.b16 %v3324, %v3323
        %v3362 = vpack.c.b16 %v3326, %v3325
        %v3400 = vsel %vm366, %v3151, 0
        %v3403 = vsel %vm366, %v3156, 0
        %v3406 = vsel %vm366, %v3161, 0
        %v3409 = vsel %vm366, %v3166, 0
        %3411 = vmatpush.bf16.msra.mxu0 %v3334
        %3412 = vmatpush.bf16.msra.mxu0 %v3333
        %3413 = vmatpush.bf16.msra.mxu0 %v3332
        %3414 = vmatpush.bf16.msra.mxu0 %v3331
        %3415 = vmatpush.bf16.msra.mxu0 %v3330
        %3416 = vmatpush.bf16.msra.mxu0 %v3329
        %3417 = vmatpush.bf16.msra.mxu0 %v3328
        %3418 = vmatpush.bf16.msra.mxu0 %v3327
        %3419 = vmatmul.bf16.gmra.mxu0 %v3147
        %v3420 = vpop.f32.mrf.mxu0
        %v3421 = vadd.f32 %v3081, %v3420
        %v3422 = vpop.f32.mrf.mxu0
        %v3423 = vadd.f32 %v3081, %v3422
        %3424 = vmatmul.bf16.gmra.mxu0 %v3152
        %v3425 = vpop.f32.mrf.mxu0
        %v3426 = vadd.f32 %v3081, %v3425
        %v3427 = vpop.f32.mrf.mxu0
        %v3428 = vadd.f32 %v3081, %v3427
        %3429 = vmatmul.bf16.gmra.mxu0 %v3157
        %v3430 = vpop.f32.mrf.mxu0
        %v3431 = vadd.f32 %v3081, %v3430
        %v3432 = vpop.f32.mrf.mxu0
        %v3433 = vadd.f32 %v3081, %v3432
        %3434 = vmatmul.bf16.gmra.mxu0 %v3162
        %v3435 = vpop.f32.mrf.mxu0
        %v3436 = vadd.f32 %v3081, %v3435
        %v3437 = vpop.f32.mrf.mxu0
        %v3438 = vadd.f32 %v3081, %v3437
        %3439 = vdwg.mxu0
        %3440 = vmatpush.bf16.msra.mxu0 %v3342
        %3441 = vmatpush.bf16.msra.mxu0 %v3341
        %3442 = vmatpush.bf16.msra.mxu0 %v3340
        %3443 = vmatpush.bf16.msra.mxu0 %v3339
        %3444 = vmatpush.bf16.msra.mxu0 %v3338
        %3445 = vmatpush.bf16.msra.mxu0 %v3337
        %3446 = vmatpush.bf16.msra.mxu0 %v3336
        %3447 = vmatpush.bf16.msra.mxu0 %v3335
        %3448 = vmatmul.bf16.gmra.mxu0 %v3148
        %v3449 = vpop.f32.mrf.mxu0
        %v3450 = vadd.f32 %v3421, %v3449
        %v3451 = vpop.f32.mrf.mxu0
        %v3452 = vadd.f32 %v3423, %v3451
        %3453 = vmatmul.bf16.gmra.mxu0 %v3153
        %v3454 = vpop.f32.mrf.mxu0
        %v3455 = vadd.f32 %v3426, %v3454
        %v3456 = vpop.f32.mrf.mxu0
        %v3457 = vadd.f32 %v3428, %v3456
        %3458 = vmatmul.bf16.gmra.mxu0 %v3158
        %v3459 = vpop.f32.mrf.mxu0
        %v3460 = vadd.f32 %v3431, %v3459
        %v3461 = vpop.f32.mrf.mxu0
        %v3462 = vadd.f32 %v3433, %v3461
        %3463 = vmatmul.bf16.gmra.mxu0 %v3163
        %v3464 = vpop.f32.mrf.mxu0
        %v3465 = vadd.f32 %v3436, %v3464
        %v3466 = vpop.f32.mrf.mxu0
        %v3467 = vadd.f32 %v3438, %v3466
        %3468 = vdwg.mxu0
        %3469 = vmatpush.bf16.msra.mxu0 %v3350
        %3470 = vmatpush.bf16.msra.mxu0 %v3349
        %3471 = vmatpush.bf16.msra.mxu0 %v3348
        %3472 = vmatpush.bf16.msra.mxu0 %v3347
        %3473 = vmatpush.bf16.msra.mxu0 %v3346
        %3474 = vmatpush.bf16.msra.mxu0 %v3345
        %3475 = vmatpush.bf16.msra.mxu0 %v3344
        %3476 = vmatpush.bf16.msra.mxu0 %v3343
        %3477 = vmatmul.bf16.gmra.mxu0 %v3149
        %v3478 = vpop.f32.mrf.mxu0
        %v3479 = vadd.f32 %v3450, %v3478
        %v3480 = vpop.f32.mrf.mxu0
        %v3481 = vadd.f32 %v3452, %v3480
        %3482 = vmatmul.bf16.gmra.mxu0 %v3154
        %v3483 = vpop.f32.mrf.mxu0
        %v3484 = vadd.f32 %v3455, %v3483
        %v3485 = vpop.f32.mrf.mxu0
        %v3486 = vadd.f32 %v3457, %v3485
        %3487 = vmatmul.bf16.gmra.mxu0 %v3159
        %v3488 = vpop.f32.mrf.mxu0
        %v3489 = vadd.f32 %v3460, %v3488
        %v3490 = vpop.f32.mrf.mxu0
        %v3491 = vadd.f32 %v3462, %v3490
        %3492 = vmatmul.bf16.gmra.mxu0 %v3164
        %v3493 = vpop.f32.mrf.mxu0
        %v3494 = vadd.f32 %v3465, %v3493
        %v3495 = vpop.f32.mrf.mxu0
        %v3496 = vadd.f32 %v3467, %v3495
        %3497 = vdwg.mxu0
        %3498 = vmatpush.bf16.msra.mxu0 %v3358
        %3499 = vmatpush.bf16.msra.mxu0 %v3357
        %3500 = vmatpush.bf16.msra.mxu0 %v3356
        %3501 = vmatpush.bf16.msra.mxu0 %v3355
        %3502 = vmatpush.bf16.msra.mxu0 %v3354
        %3503 = vmatpush.bf16.msra.mxu0 %v3353
        %3504 = vmatpush.bf16.msra.mxu0 %v3352
        %3505 = vmatpush.bf16.msra.mxu0 %v3351
        %3506 = vmatmul.bf16.gmra.mxu0 %v3150
        %v3507 = vpop.f32.mrf.mxu0
        %v3508 = vadd.f32 %v3479, %v3507
        %v3509 = vpop.f32.mrf.mxu0
        %v3510 = vadd.f32 %v3481, %v3509
        %3511 = vmatmul.bf16.gmra.mxu0 %v3155
        %v3512 = vpop.f32.mrf.mxu0
        %v3513 = vadd.f32 %v3484, %v3512
        %v3514 = vpop.f32.mrf.mxu0
        %v3515 = vadd.f32 %v3486, %v3514
        %3516 = vmatmul.bf16.gmra.mxu0 %v3160
        %v3517 = vpop.f32.mrf.mxu0
        %v3518 = vadd.f32 %v3489, %v3517
        %v3519 = vpop.f32.mrf.mxu0
        %v3520 = vadd.f32 %v3491, %v3519
        %3521 = vmatmul.bf16.gmra.mxu0 %v3165
        %v3522 = vpop.f32.mrf.mxu0
        %v3523 = vadd.f32 %v3494, %v3522
        %v3524 = vpop.f32.mrf.mxu0
        %v3525 = vadd.f32 %v3496, %v3524
        %3526 = vdwg.mxu0
        %3527 = vmatpush.bf16.msra.mxu0 0
        %3528 = vmatpush.bf16.msra.mxu0 0
        %3529 = vmatpush.bf16.msra.mxu0 0
        %3530 = vmatpush.bf16.msra.mxu0 0
        %3531 = vmatpush.bf16.msra.mxu0 %v3362
        %3532 = vmatpush.bf16.msra.mxu0 %v3361
        %3533 = vmatpush.bf16.msra.mxu0 %v3360
        %3534 = vmatpush.bf16.msra.mxu0 %v3359
        %3535 = vmatmul.bf16.gmra.mxu0 %v3400
        %v3536 = vpop.f32.mrf.mxu0
        %v3537 = vadd.f32 %v3508, %v3536
        %v3538 = vpop.f32.mrf.mxu0
        %v3539 = vadd.f32 %v3510, %v3538
        %3540 = vmatmul.bf16.gmra.mxu0 %v3403
        %v3541 = vpop.f32.mrf.mxu0
        %v3542 = vadd.f32 %v3513, %v3541
        %v3543 = vpop.f32.mrf.mxu0
        %v3544 = vadd.f32 %v3515, %v3543
        %3545 = vmatmul.bf16.gmra.mxu0 %v3406
        %v3546 = vpop.f32.mrf.mxu0
        %v3547 = vadd.f32 %v3518, %v3546
        %v3548 = vpop.f32.mrf.mxu0
        %v3549 = vadd.f32 %v3520, %v3548
        %3550 = vmatmul.bf16.gmra.mxu0 %v3409
        %v3551 = vpop.f32.mrf.mxu0
        %v3552 = vadd.f32 %v3523, %v3551
        %v3553 = vpop.f32.mrf.mxu0
        %v3554 = vadd.f32 %v3525, %v3553
        %3555 = vdwg.mxu0
        %v3556 = vmax.f32 %v3537, 0.0
        %v3557 = vmax.f32 %v3539, 0.0
        %v3558 = vmax.f32 %v3542, 0.0
        %v3559 = vmax.f32 %v3544, 0.0
        %v3560 = vmax.f32 %v3547, 0.0
        %v3561 = vmax.f32 %v3549, 0.0
        %v3562 = vmax.f32 %v3552, 0.0
        %v3563 = vmax.f32 %v3554, 0.0
        %v3564 = vld [vmem:[%s359] sm:$0xff]
        %v3565 = vld [vmem:[%s359 + $0x8] sm:$0xff]
        %v3566 = vld [vmem:[%s359 + $0x10] sm:$0xff]
        %v3567 = vld [vmem:[%s359 + $0x18] sm:$0xff]
        %v3568 = vld [vmem:[%s359 + $0x20] sm:$0xff]
        %v3569 = vld [vmem:[%s359 + $0x28] sm:$0xff]
        %v3570 = vld [vmem:[%s359 + $0x30] sm:$0xff]
        %v3571 = vld [vmem:[%s359 + $0x38] sm:$0xff]
        %v3572 = vadd.f32 %v3556, %v3564
        %v3573 = vadd.f32 %v3557, %v3565
        %v3574 = vadd.f32 %v3558, %v3566
        %v3575 = vadd.f32 %v3559, %v3567
        %v3576 = vadd.f32 %v3560, %v3568
        %v3577 = vadd.f32 %v3561, %v3569
        %v3578 = vadd.f32 %v3562, %v3570
        %v3579 = vadd.f32 %v3563, %v3571
        %3580 = vst.msk [vmem:[%s354] sm:$0xff] %vm366, %v3572
        %3581 = vst.msk [vmem:[%s354 + $0x8] sm:$0xff] %vm366, %v3573
        %3582 = vst.msk [vmem:[%s354 + $0x10] sm:$0xff] %vm366, %v3574
        %3583 = vst.msk [vmem:[%s354 + $0x18] sm:$0xff] %vm366, %v3575
        %3584 = vst.msk [vmem:[%s354 + $0x20] sm:$0xff] %vm366, %v3576
        %3585 = vst.msk [vmem:[%s354 + $0x28] sm:$0xff] %vm366, %v3577
        %3586 = vst.msk [vmem:[%s354 + $0x30] sm:$0xff] %vm366, %v3578
        %3587 = vst.msk [vmem:[%s354 + $0x38] sm:$0xff] %vm366, %v3579
        %s3588 = sand.u32 %s231, 1
        %s3589 = scalar_lea.sflag [#allocation7], %s3588
        %s3590 = sand.u32 %s231, 1
        %s3591 = smul.addr %s3590, 64
        %s3592 = scalar_lea.vmem [#allocation9], %s3591
        // Predicated region
        $region61: #{tpu_custom_call.1} parent=55 // pred_check
          %p3593 = pneg %p241
        $region62: #{tpu_custom_call.1} parent=55 // pred_check_branch
          %3595 = sbr.rel (%p3593) target = $region64
        $region63: #{tpu_custom_call.1} parent=55 // pred_region
          %3597 = vsyncadd %s3589, 0
          %s3598 = smul.addr %s24, 8
          %s3599 = smul.addr %s3598, 8
          %s3600 = scalar_lea.hbm %s9, %s3599
          %s3601 = sshll.u32 %s3592, 4
          %s3602 = int_to_ptr.vmem [resolvable:$true] %s3601
          %s3603 = sshll.u32 %s3600, 4
          %s3604 = int_to_ptr.hbm [resolvable:$true] %s3603
          %3609 = dma.vmem_to_hbm [thread:$0]  %s3602, 1024, %s3604, %s3589, 128, 128, 8
        $region64: #{tpu_custom_call.1} parent=55 // pred_fallthru
          _
      $region56: #{tpu_custom_call.1} parent=5 // pred_fallthru
        _
      %p3610 = scmp.le.s32.totalorder 2, %s19
      // Predicated region
      $region65: #{tpu_custom_call.1} parent=5 // pred_check
        %p3611 = pneg %p3610
      $region66: #{tpu_custom_call.1} parent=5 // pred_check_branch
        %3613 = sbr.rel (%p3611) target = $region68
      $region67: #{tpu_custom_call.1} parent=5 // pred_region
        %s3614 = ssub.s32 %s19, 2
        // Predicated region
        $region69: #{tpu_custom_call.1} parent=67 // pred_check
          %p3615 = pneg %p247
        $region70: #{tpu_custom_call.1} parent=67 // pred_check_branch
          %3617 = sbr.rel (%p3615) target = $region72
        $region71: #{tpu_custom_call.1} parent=67 // pred_region
          %s3618 = sand.u32 %s232, 1
          %s3619 = scalar_lea.sflag [#allocation7], %s3618
          %s3620 = sand.u32 %s232, 1
          %s3621 = smul.addr %s3620, 64
          %s3622 = scalar_lea.vmem [#allocation9], %s3621
          %3624 = dma.done %s3619, 1024
        $region72: #{tpu_custom_call.1} parent=67 // pred_fallthru
          _
      $region68: #{tpu_custom_call.1} parent=5 // pred_fallthru
        _
    $region6: #{tpu_custom_call.1} parent=1 // loop_footer
      %s23 = sadd.s32 1, %s19
    $region7: #{tpu_custom_call.1} parent=1 // loop_footer_branch
      %18 = sbr.rel target = $region3
    $region8: #{tpu_custom_call.1} parent=1 // loop_exit
      _
    %3625 = vsyncpa [#allocation7], 1
    %s3626 = scalar_lea.sflag [#allocation7], 1
    %3627 = vsyncpa %s3626, 1
    %3628 = vsyncpa [#allocation8], 1
    %s3629 = scalar_lea.sflag [#allocation8], 1
    %3630 = vsyncpa %s3629, 1

</llo_original>
